<compile_context>
chip_gen: v6e
topology: v6e:2x2x1
jax: 0.10.0
libtpu: 0.0.40
codegen_flags: <defaults>
</compile_context>

<pallas_src>
import functools

import jax
import jax.numpy as jnp
from jax import lax
from jax.experimental import pallas as pl
from jax.experimental.pallas import tpu as pltpu


def _sae_topk_kernel(x_ref, bdec_ref, wenc_ref, benc_ref, wdec_ref,
                     xhat_ref, enc_ref,
                     xc_ref, acts_ref, thresh_ref, *cand_scratch,
                     k: int, k_cand: int, kp: int, ns: int, ts: int):
    j = pl.program_id(1)
    use_cand = len(cand_scratch) == 1

    # ---- once per batch tile: hoist (x - b_dec) -> bf16 ----------------------
    @pl.when(j == 0)
    def _prep():
        xc_ref[...] = (x_ref[...] - bdec_ref[...]).astype(jnp.bfloat16)

    # ---- Phase 0: encoder, one W_enc column block per step -------------------
    @pl.when(j < ns)
    def _encode():
        pre = jnp.dot(xc_ref[...], wenc_ref[...],
                      preferred_element_type=jnp.float32) + benc_ref[...]  # (tb,ts) f32
        a = jnp.maximum(pre, 0.0)
        a_store = a.astype(acts_ref.dtype)
        col = pl.multiple_of(j * ts, 128)
        acts_ref[:, pl.ds(col, ts)] = a_store

        if use_cand:
            # Extract this block's top-min(k, ts) values into a 128-lane slab.
            # Pure VPU/XLU work -> hidden under the MXU matmul above.  Ties at
            # equal values are de-duplicated per pass (same semantics as the
            # global threshold scan below).
            cand_ref = cand_scratch[0]
            a_cmp = a_store.astype(jnp.float32)       # compare what was stored
            tb = a_cmp.shape[0]
            lane = lax.broadcasted_iota(jnp.int32, (tb, kp), 1)
            cand = jnp.full((tb, kp), -jnp.inf, jnp.float32)
            work = a_cmp
            for t in range(k_cand):
                m = jnp.max(work, axis=-1, keepdims=True)
                cand = jnp.where(lane == t, m, cand)
                work = jnp.where(work < m, work, -jnp.inf)
            ccol = pl.multiple_of(j * kp, 128)
            cand_ref[:, pl.ds(ccol, kp)] = cand

    # ---- Phase boundary: k-th largest per row (threshold) --------------------
    @pl.when(j == ns)
    def _threshold():
        if use_cand:
            vals = cand_scratch[0][...]               # (tb, ns*kp) f32, small
        else:
            # TODO(synk): for k > 128 this d_sae-wide scan is the fallback; a
            # count-based binary search on the threshold (~30 passes,
            # k-independent) would be cheaper here.
            vals = acts_ref[...].astype(jnp.float32)  # (tb, d_sae)
        m = jnp.max(vals, axis=-1, keepdims=True)
        # k is compile-time -> statically unrolled.  Ties at the k-th value
        # keep all tied entries (>k nonzeros), unlike torch.topk's exact-k.
        for _ in range(k - 1):
            m = jnp.max(jnp.where(vals < m, vals, -jnp.inf),
                        axis=-1, keepdims=True)
        thresh_ref[...] = m
        xhat_ref[...] = jnp.zeros_like(xhat_ref)

    # ---- Phase 1: decoder, one W_dec row block per step -----------------------
    @pl.when(j >= ns)
    def _decode():
        jj = j - ns
        col = pl.multiple_of(jj * ts, 128)
        blk = acts_ref[:, pl.ds(col, ts)].astype(jnp.float32)
        masked = jnp.where(blk >= thresh_ref[...], blk, 0.0)
        enc_ref[...] = masked.astype(enc_ref.dtype)
        xhat_ref[...] += jnp.dot(masked.astype(jnp.bfloat16), wdec_ref[...],
                                 preferred_element_type=jnp.float32)

    @pl.when(j == 2 * ns - 1)
    def _finalize():
        xhat_ref[...] += bdec_ref[...]


def sae_topk_forward(x, W_enc, b_enc, W_dec, b_dec, k, *,
                     tb=None, ts=None,
                     acts_dtype=jnp.float32, enc_dtype=jnp.float32):
    """Fused TopK-SAE forward.  Returns (x_hat, encoded_acts).

    acts_dtype / enc_dtype: set to jnp.bfloat16 on v7x to halve the dominant
    VMEM term (tb*d_sae) / the enc HBM writeback, at the cost of bf16-rounded
    activation values (default f32 matches the PyTorch reference exactly).
    """
    B, d_in = x.shape
    d_sae = W_enc.shape[1]
    assert W_enc.shape == (d_in, d_sae) and W_dec.shape == (d_sae, d_in)
    assert 1 <= k <= d_sae

    # ---- chip-aware VMEM budget ----------------------------------------------
    try:
        vmem_cap = int(pltpu.get_tpu_info().vmem_capacity_bytes)
    except Exception:
        vmem_cap = 64 * 2 ** 20                       # conservative fallback
    two_core = vmem_cap <= 80 * 2 ** 20               # v7x-like: 64 MiB/TC, 2 TCs
    budget = min(vmem_cap - 16 * 2 ** 20, 100 * 2 ** 20)

    # ---- d_sae tile (prefer 512 -> full 256-wide MXU tiles, fewer grid steps) -
    if ts is None:
        ts = d_sae
        for cand in (512, 256, 128):
            if d_sae % cand == 0:
                ts = cand
                break
    assert d_sae % ts == 0 and (ts % 128 == 0 or ts == d_sae)
    ns = d_sae // ts

    # top-k candidate slab: per encoder block keep its top-min(k, ts) values so
    # the boundary threshold scan runs over ns*128 columns instead of d_sae.
    k_cand = min(k, ts)
    use_cand = k_cand <= 128
    kp = 128

    acts_bytes = jnp.dtype(acts_dtype).itemsize
    enc_bytes = jnp.dtype(enc_dtype).itemsize

    # ---- batch tile: as large as the VMEM budget allows -----------------------
    # Streamed-weight arithmetic intensity ~= tb FLOP/byte, so maximize tb.
    fixed = (2 * d_in * ts * 2        # W_enc blocks (bf16, double-buffered)
             + 2 * ts * d_in * 2      # W_dec blocks (bf16, double-buffered)
             + 2 * (d_in + ts) * 4)   # biases
    per_row = (d_sae * acts_bytes                     # acts scratch
               + (ns * kp * 4 if use_cand else 0)     # top-k candidates
               + d_in * 2                             # (x - b_dec) bf16 scratch
               + 2 * d_in * 4                         # x input blocks
               + 2 * d_in * 4                         # x_hat output blocks
               + 2 * ts * enc_bytes                   # enc output blocks
               + 4)                                   # threshold
    if tb is None:
        tb_cap = max(8, int((budget - fixed) // per_row))
        divisors = [d for d in range(1, B + 1)
                    if B % d == 0 and (d % 8 == 0 or d == B)]
        # 2-TC parts: keep nb >= 2 so the "parallel" batch axis shards across
        # both cores.  1-TC parts: tb = B so weights stream exactly once.
        pick = [d for d in sorted(divisors, reverse=True)
                if d <= tb_cap and (not two_core or B // d >= 2)]
        if not pick:
            pick = [d for d in sorted(divisors, reverse=True) if d <= tb_cap]
        tb = pick[0] if pick else min(divisors)
    assert B % tb == 0 and (tb % 8 == 0 or tb == B)
    nb = B // tb

    # bf16 weights: native MXU dtype, halves weight DMA bytes and VMEM blocks.
    x = x.astype(jnp.float32)
    W_enc = W_enc.astype(jnp.bfloat16)
    W_dec = W_dec.astype(jnp.bfloat16)
    b_dec2 = b_dec.reshape(1, d_in).astype(jnp.float32)
    b_enc2 = b_enc.reshape(1, d_sae).astype(jnp.float32)

    kernel = functools.partial(_sae_topk_kernel, k=k, k_cand=k_cand, kp=kp,
                               ns=ns, ts=ts)
    grid = (nb, 2 * ns)

    # Tight VMEM estimate + modest headroom, kept under physical VMEM.
    vmem_estimate = fixed + tb * per_row
    vmem_limit = int(max(32 * 2 ** 20,
                         min(vmem_cap - 8 * 2 ** 20,
                             vmem_estimate + 16 * 2 ** 20)))

    cost = pl.CostEstimate(
        flops=4 * B * d_in * d_sae,
        transcendentals=0,
        bytes_accessed=(B * d_in * 4                        # x
                        + nb * (d_in * d_sae * 2) * 2       # W_enc+W_dec per batch tile
                        + d_sae * 4 + d_in * 4              # biases
                        + B * d_sae * enc_bytes             # enc
                        + B * d_in * 4),                    # x_hat
    )

    scratch_shapes = [
        pltpu.VMEM((tb, d_in), jnp.bfloat16),   # xc = (x - b_dec), hoisted
        pltpu.VMEM((tb, d_sae), acts_dtype),    # full activations per batch tile
        pltpu.VMEM((tb, 1), jnp.float32),       # per-row top-k threshold
    ]
    if use_cand:
        scratch_shapes.append(pltpu.VMEM((tb, ns * kp), jnp.float32))

    return pl.pallas_call(
        kernel,
        out_shape=(
            jax.ShapeDtypeStruct((B, d_in), jnp.float32),   # x_hat
            jax.ShapeDtypeStruct((B, d_sae), enc_dtype),    # encoded_acts
        ),
        grid_spec=pltpu.PrefetchScalarGridSpec(
            num_scalar_prefetch=0,
            grid=grid,
            in_specs=[
                pl.BlockSpec((tb, d_in), lambda i, j: (i, 0)),                       # x
                pl.BlockSpec((1, d_in), lambda i, j: (0, 0)),                        # b_dec
                pl.BlockSpec((d_in, ts), lambda i, j: (0, jnp.minimum(j, ns - 1))),  # W_enc
                pl.BlockSpec((1, ts), lambda i, j: (0, jnp.minimum(j, ns - 1))),     # b_enc
                pl.BlockSpec((ts, d_in), lambda i, j: (jnp.maximum(j - ns, 0), 0)),  # W_dec
            ],
            out_specs=(
                pl.BlockSpec((tb, d_in), lambda i, j: (i, 0)),                       # x_hat (resident acc)
                pl.BlockSpec((tb, ts), lambda i, j: (i, jnp.maximum(j - ns, 0))),    # enc
            ),
            scratch_shapes=scratch_shapes,
        ),
        compiler_params=pltpu.CompilerParams(
            dimension_semantics=("parallel", "arbitrary"),
            vmem_limit_bytes=vmem_limit,
        ),
        cost_estimate=cost,
    )(x, b_dec2, W_enc, b_enc2, W_dec)


def init_params(key, d_in, d_sae):
    """Deterministic param init mirroring AutoEncoderTopK.__init__."""
    gain = jnp.sqrt(2.0)
    bound = jnp.sqrt(3.0) * gain / jnp.sqrt(jnp.float32(d_sae))
    W_enc = jax.random.uniform(key, (d_in, d_sae), jnp.float32,
                               minval=-bound, maxval=bound)
    b_enc = jnp.zeros((d_sae,), jnp.float32)
    W_dec = W_enc.T
    eps = jnp.finfo(jnp.float32).eps
    norm = jnp.linalg.norm(W_dec, axis=1, keepdims=True)
    W_dec = W_dec / (norm + eps)
    b_dec = jnp.zeros((d_in,), jnp.float32)
    return W_enc, b_enc, W_dec, b_dec


def reference_forward(x, W_enc, b_enc, W_dec, b_dec, k):
    """Pure-JAX reference using the same bf16-matmul / f32-accumulate recipe."""
    xc = (x - b_dec).astype(jnp.bfloat16)
    pre = jnp.dot(xc, W_enc.astype(jnp.bfloat16),
                  preferred_element_type=jnp.float32) + b_enc
    acts = jax.nn.relu(pre)
    vals, idx = lax.top_k(acts, k)
    enc = jnp.zeros_like(acts).at[jnp.arange(x.shape[0])[:, None], idx].set(vals)
    x_hat = jnp.dot(enc.astype(jnp.bfloat16), W_dec.astype(jnp.bfloat16),
                    preferred_element_type=jnp.float32) + b_dec
    return x_hat, enc


if __name__ == "__main__":
    B, d_in, d_sae, k = 64, 128, 1024, 16

    key = jax.random.PRNGKey(0)
    k_w, k_x = jax.random.split(key)
    W_enc, b_enc, W_dec, b_dec = init_params(k_w, d_in, d_sae)
    x = jax.random.normal(k_x, (B, d_in), jnp.float32)

    # Feed identical bf16 weights to kernel and reference so the check tests
    # kernel structure (tiling / top-k / accumulation), not quantization.
    W_enc_bf = W_enc.astype(jnp.bfloat16)
    W_dec_bf = W_dec.astype(jnp.bfloat16)

    # Auto-picked tiles: ts=512 (ns=2 streamed blocks), tb as large as VMEM
    # allows (B or B/2 depending on chip generation).
    x_hat, enc = sae_topk_forward(x, W_enc_bf, b_enc, W_dec_bf, b_dec, k)
    x_hat, enc = jax.block_until_ready((x_hat, enc))

    x_hat_ref, enc_ref = reference_forward(x, W_enc_bf, b_enc, W_dec_bf, b_dec, k)

    assert x_hat.shape == (B, d_in) and enc.shape == (B, d_sae)
    assert jnp.allclose(enc, enc_ref, atol=2e-3, rtol=2e-3), \
        float(jnp.max(jnp.abs(enc - enc_ref)))
    assert jnp.allclose(x_hat, x_hat_ref, atol=2e-3, rtol=2e-3), \
        float(jnp.max(jnp.abs(x_hat - x_hat_ref)))
    # sanity: at least k nonzeros per row (ties at the k-th value keep extras)
    assert bool(jnp.all(jnp.sum(enc != 0, axis=-1) >= k))

    print("KERNEL_OK")
</pallas_src>

<mosaic_0001>
module attributes {stable_mosaic.version = 11 : i64} {
  func.func @_sae_topk_kernel(%arg0: i32, %arg1: i32, %arg2: memref<32x128xf32, #tpu.memory_space<vmem>>, %arg3: memref<1x128xf32, #tpu.memory_space<vmem>>, %arg4: memref<128x512xbf16, #tpu.memory_space<vmem>>, %arg5: memref<1x512xf32, #tpu.memory_space<vmem>>, %arg6: memref<512x128xbf16, #tpu.memory_space<vmem>>, %arg7: memref<32x128xf32, #tpu.memory_space<vmem>>, %arg8: memref<32x512xf32, #tpu.memory_space<vmem>>, %arg9: memref<32x128xbf16, #tpu.memory_space<vmem>>, %arg10: memref<32x1024xf32, #tpu.memory_space<vmem>>, %arg11: memref<32x1xf32, #tpu.memory_space<vmem>>, %arg12: memref<32x256xf32, #tpu.memory_space<vmem>>) attributes {dimension_semantics = [#tpu.dimension_semantics<parallel>, #tpu.dimension_semantics<arbitrary>], iteration_bounds = array<i64: 2, 4>, scalar_prefetch = 0 : i64, scratch_operands = 4 : i64, tpu.core_type = #tpu.core_type<tc>, window_params = [{transform_indices = @transform_0, window_bounds = array<i64: 32, 128>}, {pipeline_mode = #tpu.pipeline_mode<synchronous>, transform_indices = @transform_1, window_bounds = array<i64: 1, 128>}, {transform_indices = @transform_2, window_bounds = array<i64: 128, 512>}, {transform_indices = @transform_3, window_bounds = array<i64: 1, 512>}, {transform_indices = @transform_4, window_bounds = array<i64: 512, 128>}, {transform_indices = @transform_5, window_bounds = array<i64: 32, 128>}, {transform_indices = @transform_6, window_bounds = array<i64: 32, 512>}]} {
    %c0_i32 = arith.constant 0 : i32
    %0 = arith.cmpi eq, %arg1, %c0_i32 : i32
    %1 = arith.extui %0 : i1 to i32
    %c0_i32_0 = arith.constant 0 : i32
    %2 = arith.cmpi ne, %1, %c0_i32_0 : i32
    scf.if %2 {
      %c0 = arith.constant 0 : index
      %c0_7 = arith.constant 0 : index
      %15 = vector.load %arg2[%c0, %c0_7] : memref<32x128xf32, #tpu.memory_space<vmem>>, vector<32x128xf32>
      %c0_8 = arith.constant 0 : index
      %c0_9 = arith.constant 0 : index
      %16 = vector.load %arg3[%c0_8, %c0_9] : memref<1x128xf32, #tpu.memory_space<vmem>>, vector<1x128xf32>
      %17 = vector.broadcast %16 : vector<1x128xf32> to vector<32x128xf32>
      %18 = arith.subf %15, %17 : vector<32x128xf32>
      %19 = arith.truncf %18 : vector<32x128xf32> to vector<32x128xbf16>
      %c0_10 = arith.constant 0 : index
      %c0_11 = arith.constant 0 : index
      %20 = vector.load %arg9[%c0_10, %c0_11] : memref<32x128xbf16, #tpu.memory_space<vmem>>, vector<32x128xbf16>
      tpu.vector_store %arg9[%c0_10, %c0_11], %19 {strides = array<i32>} : memref<32x128xbf16, #tpu.memory_space<vmem>>, vector<32x128xbf16>,
    } else {
    }
    %c2_i32 = arith.constant 2 : i32
    %3 = arith.cmpi slt, %arg1, %c2_i32 : i32
    %4 = arith.extui %3 : i1 to i32
    %c0_i32_1 = arith.constant 0 : i32
    %5 = arith.cmpi ne, %4, %c0_i32_1 : i32
    scf.if %5 {
      %c0 = arith.constant 0 : index
      %c0_7 = arith.constant 0 : index
      %15 = vector.load %arg9[%c0, %c0_7] : memref<32x128xbf16, #tpu.memory_space<vmem>>, vector<32x128xbf16>
      %c0_8 = arith.constant 0 : index
      %c0_9 = arith.constant 0 : index
      %16 = vector.load %arg4[%c0_8, %c0_9] : memref<128x512xbf16, #tpu.memory_space<vmem>>, vector<128x512xbf16>
      %cst = arith.constant dense<0.000000e+00> : vector<32x512xf32>
      %17 = tpu.matmul %15, %16, %cst {dimension_numbers = #tpu.dot_dimension_numbers<[1], [0], [0], [1], [0, 0, 1, 1], [], []>} : vector<32x128xbf16>, vector<128x512xbf16>, vector<32x512xf32> -> vector<32x512xf32>
      %c0_10 = arith.constant 0 : index
      %c0_11 = arith.constant 0 : index
      %18 = vector.load %arg5[%c0_10, %c0_11] : memref<1x512xf32, #tpu.memory_space<vmem>>, vector<1x512xf32>
      %19 = vector.broadcast %18 : vector<1x512xf32> to vector<32x512xf32>
      %20 = arith.addf %17, %19 : vector<32x512xf32>
      %cst_12 = arith.constant 0.000000e+00 : f32
      %21 = vector.broadcast %cst_12 : f32 to vector<32x512xf32>
      %22 = arith.maximumf %20, %21 : vector<32x512xf32>
      %c512_i32 = arith.constant 512 : i32
      %23 = arith.muli %arg1, %c512_i32 : i32
      %24 = tpu.assume_multiple %23, 128 : i32
      %c0_13 = arith.constant 0 : index
      %25 = arith.index_cast %24 : i32 to index
      %26 = vector.load %arg10[%c0_13, %25] : memref<32x1024xf32, #tpu.memory_space<vmem>>, vector<32x512xf32>
      tpu.vector_store %arg10[%c0_13, %25], %22 {strides = array<i32>} : memref<32x1024xf32, #tpu.memory_space<vmem>>, vector<32x512xf32>,
      %27 = tpu.iota {dimensions = array<i32: 1>} : vector<32x128xi32>
      %cst_14 = arith.constant 0xFF800000 : f32
      %28 = vector.broadcast %cst_14 : f32 to vector<32x128xf32>
      %cst_15 = arith.constant dense<0xFF800000> : vector<32xf32>
      %29 = vector.multi_reduction <maximumf>, %22, %cst_15 [1] : vector<32x512xf32> to vector<32xf32>
      %30 = vector.shape_cast %29 : vector<32xf32> to vector<32x1xf32>
      %c0_i32_16 = arith.constant 0 : i32
      %31 = vector.broadcast %c0_i32_16 : i32 to vector<32x128xi32>
      %32 = arith.cmpi eq, %27, %31 : vector<32x128xi32>
      %33 = vector.shape_cast %30 : vector<32x1xf32> to vector<32x1xf32>
      %34 = vector.broadcast %33 : vector<32x1xf32> to vector<32x128xf32>
      %35 = arith.select %32, %34, %28 : vector<32x128xi1>, vector<32x128xf32>
      %36 = vector.broadcast %30 : vector<32x1xf32> to vector<32x512xf32>
      %37 = arith.cmpf olt, %22, %36 : vector<32x512xf32>
      %cst_17 = arith.constant 0xFF800000 : f32
      %38 = vector.broadcast %cst_17 : f32 to vector<32x512xf32>
      %39 = arith.select %37, %22, %38 : vector<32x512xi1>, vector<32x512xf32>
      %cst_18 = arith.constant dense<0xFF800000> : vector<32xf32>
      %40 = vector.multi_reduction <maximumf>, %39, %cst_18 [1] : vector<32x512xf32> to vector<32xf32>
      %41 = vector.shape_cast %40 : vector<32xf32> to vector<32x1xf32>
      %c1_i32 = arith.constant 1 : i32
      %42 = vector.broadcast %c1_i32 : i32 to vector<32x128xi32>
      %43 = arith.cmpi eq, %27, %42 : vector<32x128xi32>
      %44 = vector.shape_cast %41 : vector<32x1xf32> to vector<32x1xf32>
      %45 = vector.broadcast %44 : vector<32x1xf32> to vector<32x128xf32>
      %46 = arith.select %43, %45, %35 : vector<32x128xi1>, vector<32x128xf32>
      %47 = vector.broadcast %41 : vector<32x1xf32> to vector<32x512xf32>
      %48 = arith.cmpf olt, %39, %47 : vector<32x512xf32>
      %cst_19 = arith.constant 0xFF800000 : f32
      %49 = vector.broadcast %cst_19 : f32 to vector<32x512xf32>
      %50 = arith.select %48, %39, %49 : vector<32x512xi1>, vector<32x512xf32>
      %cst_20 = arith.constant dense<0xFF800000> : vector<32xf32>
      %51 = vector.multi_reduction <maximumf>, %50, %cst_20 [1] : vector<32x512xf32> to vector<32xf32>
      %52 = vector.shape_cast %51 : vector<32xf32> to vector<32x1xf32>
      %c2_i32_21 = arith.constant 2 : i32
      %53 = vector.broadcast %c2_i32_21 : i32 to vector<32x128xi32>
      %54 = arith.cmpi eq, %27, %53 : vector<32x128xi32>
      %55 = vector.shape_cast %52 : vector<32x1xf32> to vector<32x1xf32>
      %56 = vector.broadcast %55 : vector<32x1xf32> to vector<32x128xf32>
      %57 = arith.select %54, %56, %46 : vector<32x128xi1>, vector<32x128xf32>
      %58 = vector.broadcast %52 : vector<32x1xf32> to vector<32x512xf32>
      %59 = arith.cmpf olt, %50, %58 : vector<32x512xf32>
      %cst_22 = arith.constant 0xFF800000 : f32
      %60 = vector.broadcast %cst_22 : f32 to vector<32x512xf32>
      %61 = arith.select %59, %50, %60 : vector<32x512xi1>, vector<32x512xf32>
      %cst_23 = arith.constant dense<0xFF800000> : vector<32xf32>
      %62 = vector.multi_reduction <maximumf>, %61, %cst_23 [1] : vector<32x512xf32> to vector<32xf32>
      %63 = vector.shape_cast %62 : vector<32xf32> to vector<32x1xf32>
      %c3_i32_24 = arith.constant 3 : i32
      %64 = vector.broadcast %c3_i32_24 : i32 to vector<32x128xi32>
      %65 = arith.cmpi eq, %27, %64 : vector<32x128xi32>
      %66 = vector.shape_cast %63 : vector<32x1xf32> to vector<32x1xf32>
      %67 = vector.broadcast %66 : vector<32x1xf32> to vector<32x128xf32>
      %68 = arith.select %65, %67, %57 : vector<32x128xi1>, vector<32x128xf32>
      %69 = vector.broadcast %63 : vector<32x1xf32> to vector<32x512xf32>
      %70 = arith.cmpf olt, %61, %69 : vector<32x512xf32>
      %cst_25 = arith.constant 0xFF800000 : f32
      %71 = vector.broadcast %cst_25 : f32 to vector<32x512xf32>
      %72 = arith.select %70, %61, %71 : vector<32x512xi1>, vector<32x512xf32>
      %cst_26 = arith.constant dense<0xFF800000> : vector<32xf32>
      %73 = vector.multi_reduction <maximumf>, %72, %cst_26 [1] : vector<32x512xf32> to vector<32xf32>
      %74 = vector.shape_cast %73 : vector<32xf32> to vector<32x1xf32>
      %c4_i32 = arith.constant 4 : i32
      %75 = vector.broadcast %c4_i32 : i32 to vector<32x128xi32>
      %76 = arith.cmpi eq, %27, %75 : vector<32x128xi32>
      %77 = vector.shape_cast %74 : vector<32x1xf32> to vector<32x1xf32>
      %78 = vector.broadcast %77 : vector<32x1xf32> to vector<32x128xf32>
      %79 = arith.select %76, %78, %68 : vector<32x128xi1>, vector<32x128xf32>
      %80 = vector.broadcast %74 : vector<32x1xf32> to vector<32x512xf32>
      %81 = arith.cmpf olt, %72, %80 : vector<32x512xf32>
      %cst_27 = arith.constant 0xFF800000 : f32
      %82 = vector.broadcast %cst_27 : f32 to vector<32x512xf32>
      %83 = arith.select %81, %72, %82 : vector<32x512xi1>, vector<32x512xf32>
      %cst_28 = arith.constant dense<0xFF800000> : vector<32xf32>
      %84 = vector.multi_reduction <maximumf>, %83, %cst_28 [1] : vector<32x512xf32> to vector<32xf32>
      %85 = vector.shape_cast %84 : vector<32xf32> to vector<32x1xf32>
      %c5_i32 = arith.constant 5 : i32
      %86 = vector.broadcast %c5_i32 : i32 to vector<32x128xi32>
      %87 = arith.cmpi eq, %27, %86 : vector<32x128xi32>
      %88 = vector.shape_cast %85 : vector<32x1xf32> to vector<32x1xf32>
      %89 = vector.broadcast %88 : vector<32x1xf32> to vector<32x128xf32>
      %90 = arith.select %87, %89, %79 : vector<32x128xi1>, vector<32x128xf32>
      %91 = vector.broadcast %85 : vector<32x1xf32> to vector<32x512xf32>
      %92 = arith.cmpf olt, %83, %91 : vector<32x512xf32>
      %cst_29 = arith.constant 0xFF800000 : f32
      %93 = vector.broadcast %cst_29 : f32 to vector<32x512xf32>
      %94 = arith.select %92, %83, %93 : vector<32x512xi1>, vector<32x512xf32>
      %cst_30 = arith.constant dense<0xFF800000> : vector<32xf32>
      %95 = vector.multi_reduction <maximumf>, %94, %cst_30 [1] : vector<32x512xf32> to vector<32xf32>
      %96 = vector.shape_cast %95 : vector<32xf32> to vector<32x1xf32>
      %c6_i32 = arith.constant 6 : i32
      %97 = vector.broadcast %c6_i32 : i32 to vector<32x128xi32>
      %98 = arith.cmpi eq, %27, %97 : vector<32x128xi32>
      %99 = vector.shape_cast %96 : vector<32x1xf32> to vector<32x1xf32>
      %100 = vector.broadcast %99 : vector<32x1xf32> to vector<32x128xf32>
      %101 = arith.select %98, %100, %90 : vector<32x128xi1>, vector<32x128xf32>
      %102 = vector.broadcast %96 : vector<32x1xf32> to vector<32x512xf32>
      %103 = arith.cmpf olt, %94, %102 : vector<32x512xf32>
      %cst_31 = arith.constant 0xFF800000 : f32
      %104 = vector.broadcast %cst_31 : f32 to vector<32x512xf32>
      %105 = arith.select %103, %94, %104 : vector<32x512xi1>, vector<32x512xf32>
      %cst_32 = arith.constant dense<0xFF800000> : vector<32xf32>
      %106 = vector.multi_reduction <maximumf>, %105, %cst_32 [1] : vector<32x512xf32> to vector<32xf32>
      %107 = vector.shape_cast %106 : vector<32xf32> to vector<32x1xf32>
      %c7_i32 = arith.constant 7 : i32
      %108 = vector.broadcast %c7_i32 : i32 to vector<32x128xi32>
      %109 = arith.cmpi eq, %27, %108 : vector<32x128xi32>
      %110 = vector.shape_cast %107 : vector<32x1xf32> to vector<32x1xf32>
      %111 = vector.broadcast %110 : vector<32x1xf32> to vector<32x128xf32>
      %112 = arith.select %109, %111, %101 : vector<32x128xi1>, vector<32x128xf32>
      %113 = vector.broadcast %107 : vector<32x1xf32> to vector<32x512xf32>
      %114 = arith.cmpf olt, %105, %113 : vector<32x512xf32>
      %cst_33 = arith.constant 0xFF800000 : f32
      %115 = vector.broadcast %cst_33 : f32 to vector<32x512xf32>
      %116 = arith.select %114, %105, %115 : vector<32x512xi1>, vector<32x512xf32>
      %cst_34 = arith.constant dense<0xFF800000> : vector<32xf32>
      %117 = vector.multi_reduction <maximumf>, %116, %cst_34 [1] : vector<32x512xf32> to vector<32xf32>
      %118 = vector.shape_cast %117 : vector<32xf32> to vector<32x1xf32>
      %c8_i32 = arith.constant 8 : i32
      %119 = vector.broadcast %c8_i32 : i32 to vector<32x128xi32>
      %120 = arith.cmpi eq, %27, %119 : vector<32x128xi32>
      %121 = vector.shape_cast %118 : vector<32x1xf32> to vector<32x1xf32>
      %122 = vector.broadcast %121 : vector<32x1xf32> to vector<32x128xf32>
      %123 = arith.select %120, %122, %112 : vector<32x128xi1>, vector<32x128xf32>
      %124 = vector.broadcast %118 : vector<32x1xf32> to vector<32x512xf32>
      %125 = arith.cmpf olt, %116, %124 : vector<32x512xf32>
      %cst_35 = arith.constant 0xFF800000 : f32
      %126 = vector.broadcast %cst_35 : f32 to vector<32x512xf32>
      %127 = arith.select %125, %116, %126 : vector<32x512xi1>, vector<32x512xf32>
      %cst_36 = arith.constant dense<0xFF800000> : vector<32xf32>
      %128 = vector.multi_reduction <maximumf>, %127, %cst_36 [1] : vector<32x512xf32> to vector<32xf32>
      %129 = vector.shape_cast %128 : vector<32xf32> to vector<32x1xf32>
      %c9_i32 = arith.constant 9 : i32
      %130 = vector.broadcast %c9_i32 : i32 to vector<32x128xi32>
      %131 = arith.cmpi eq, %27, %130 : vector<32x128xi32>
      %132 = vector.shape_cast %129 : vector<32x1xf32> to vector<32x1xf32>
      %133 = vector.broadcast %132 : vector<32x1xf32> to vector<32x128xf32>
      %134 = arith.select %131, %133, %123 : vector<32x128xi1>, vector<32x128xf32>
      %135 = vector.broadcast %129 : vector<32x1xf32> to vector<32x512xf32>
      %136 = arith.cmpf olt, %127, %135 : vector<32x512xf32>
      %cst_37 = arith.constant 0xFF800000 : f32
      %137 = vector.broadcast %cst_37 : f32 to vector<32x512xf32>
      %138 = arith.select %136, %127, %137 : vector<32x512xi1>, vector<32x512xf32>
      %cst_38 = arith.constant dense<0xFF800000> : vector<32xf32>
      %139 = vector.multi_reduction <maximumf>, %138, %cst_38 [1] : vector<32x512xf32> to vector<32xf32>
      %140 = vector.shape_cast %139 : vector<32xf32> to vector<32x1xf32>
      %c10_i32 = arith.constant 10 : i32
      %141 = vector.broadcast %c10_i32 : i32 to vector<32x128xi32>
      %142 = arith.cmpi eq, %27, %141 : vector<32x128xi32>
      %143 = vector.shape_cast %140 : vector<32x1xf32> to vector<32x1xf32>
      %144 = vector.broadcast %143 : vector<32x1xf32> to vector<32x128xf32>
      %145 = arith.select %142, %144, %134 : vector<32x128xi1>, vector<32x128xf32>
      %146 = vector.broadcast %140 : vector<32x1xf32> to vector<32x512xf32>
      %147 = arith.cmpf olt, %138, %146 : vector<32x512xf32>
      %cst_39 = arith.constant 0xFF800000 : f32
      %148 = vector.broadcast %cst_39 : f32 to vector<32x512xf32>
      %149 = arith.select %147, %138, %148 : vector<32x512xi1>, vector<32x512xf32>
      %cst_40 = arith.constant dense<0xFF800000> : vector<32xf32>
      %150 = vector.multi_reduction <maximumf>, %149, %cst_40 [1] : vector<32x512xf32> to vector<32xf32>
      %151 = vector.shape_cast %150 : vector<32xf32> to vector<32x1xf32>
      %c11_i32 = arith.constant 11 : i32
      %152 = vector.broadcast %c11_i32 : i32 to vector<32x128xi32>
      %153 = arith.cmpi eq, %27, %152 : vector<32x128xi32>
      %154 = vector.shape_cast %151 : vector<32x1xf32> to vector<32x1xf32>
      %155 = vector.broadcast %154 : vector<32x1xf32> to vector<32x128xf32>
      %156 = arith.select %153, %155, %145 : vector<32x128xi1>, vector<32x128xf32>
      %157 = vector.broadcast %151 : vector<32x1xf32> to vector<32x512xf32>
      %158 = arith.cmpf olt, %149, %157 : vector<32x512xf32>
      %cst_41 = arith.constant 0xFF800000 : f32
      %159 = vector.broadcast %cst_41 : f32 to vector<32x512xf32>
      %160 = arith.select %158, %149, %159 : vector<32x512xi1>, vector<32x512xf32>
      %cst_42 = arith.constant dense<0xFF800000> : vector<32xf32>
      %161 = vector.multi_reduction <maximumf>, %160, %cst_42 [1] : vector<32x512xf32> to vector<32xf32>
      %162 = vector.shape_cast %161 : vector<32xf32> to vector<32x1xf32>
      %c12_i32 = arith.constant 12 : i32
      %163 = vector.broadcast %c12_i32 : i32 to vector<32x128xi32>
      %164 = arith.cmpi eq, %27, %163 : vector<32x128xi32>
      %165 = vector.shape_cast %162 : vector<32x1xf32> to vector<32x1xf32>
      %166 = vector.broadcast %165 : vector<32x1xf32> to vector<32x128xf32>
      %167 = arith.select %164, %166, %156 : vector<32x128xi1>, vector<32x128xf32>
      %168 = vector.broadcast %162 : vector<32x1xf32> to vector<32x512xf32>
      %169 = arith.cmpf olt, %160, %168 : vector<32x512xf32>
      %cst_43 = arith.constant 0xFF800000 : f32
      %170 = vector.broadcast %cst_43 : f32 to vector<32x512xf32>
      %171 = arith.select %169, %160, %170 : vector<32x512xi1>, vector<32x512xf32>
      %cst_44 = arith.constant dense<0xFF800000> : vector<32xf32>
      %172 = vector.multi_reduction <maximumf>, %171, %cst_44 [1] : vector<32x512xf32> to vector<32xf32>
      %173 = vector.shape_cast %172 : vector<32xf32> to vector<32x1xf32>
      %c13_i32 = arith.constant 13 : i32
      %174 = vector.broadcast %c13_i32 : i32 to vector<32x128xi32>
      %175 = arith.cmpi eq, %27, %174 : vector<32x128xi32>
      %176 = vector.shape_cast %173 : vector<32x1xf32> to vector<32x1xf32>
      %177 = vector.broadcast %176 : vector<32x1xf32> to vector<32x128xf32>
      %178 = arith.select %175, %177, %167 : vector<32x128xi1>, vector<32x128xf32>
      %179 = vector.broadcast %173 : vector<32x1xf32> to vector<32x512xf32>
      %180 = arith.cmpf olt, %171, %179 : vector<32x512xf32>
      %cst_45 = arith.constant 0xFF800000 : f32
      %181 = vector.broadcast %cst_45 : f32 to vector<32x512xf32>
      %182 = arith.select %180, %171, %181 : vector<32x512xi1>, vector<32x512xf32>
      %cst_46 = arith.constant dense<0xFF800000> : vector<32xf32>
      %183 = vector.multi_reduction <maximumf>, %182, %cst_46 [1] : vector<32x512xf32> to vector<32xf32>
      %184 = vector.shape_cast %183 : vector<32xf32> to vector<32x1xf32>
      %c14_i32 = arith.constant 14 : i32
      %185 = vector.broadcast %c14_i32 : i32 to vector<32x128xi32>
      %186 = arith.cmpi eq, %27, %185 : vector<32x128xi32>
      %187 = vector.shape_cast %184 : vector<32x1xf32> to vector<32x1xf32>
      %188 = vector.broadcast %187 : vector<32x1xf32> to vector<32x128xf32>
      %189 = arith.select %186, %188, %178 : vector<32x128xi1>, vector<32x128xf32>
      %190 = vector.broadcast %184 : vector<32x1xf32> to vector<32x512xf32>
      %191 = arith.cmpf olt, %182, %190 : vector<32x512xf32>
      %cst_47 = arith.constant 0xFF800000 : f32
      %192 = vector.broadcast %cst_47 : f32 to vector<32x512xf32>
      %193 = arith.select %191, %182, %192 : vector<32x512xi1>, vector<32x512xf32>
      %cst_48 = arith.constant dense<0xFF800000> : vector<32xf32>
      %194 = vector.multi_reduction <maximumf>, %193, %cst_48 [1] : vector<32x512xf32> to vector<32xf32>
      %195 = vector.shape_cast %194 : vector<32xf32> to vector<32x1xf32>
      %c15_i32 = arith.constant 15 : i32
      %196 = vector.broadcast %c15_i32 : i32 to vector<32x128xi32>
      %197 = arith.cmpi eq, %27, %196 : vector<32x128xi32>
      %198 = vector.shape_cast %195 : vector<32x1xf32> to vector<32x1xf32>
      %199 = vector.broadcast %198 : vector<32x1xf32> to vector<32x128xf32>
      %200 = arith.select %197, %199, %189 : vector<32x128xi1>, vector<32x128xf32>
      %c128_i32 = arith.constant 128 : i32
      %201 = arith.muli %arg1, %c128_i32 : i32
      %202 = tpu.assume_multiple %201, 128 : i32
      %c0_49 = arith.constant 0 : index
      %203 = arith.index_cast %202 : i32 to index
      %204 = vector.load %arg12[%c0_49, %203] : memref<32x256xf32, #tpu.memory_space<vmem>>, vector<32x128xf32>
      tpu.vector_store %arg12[%c0_49, %203], %200 {strides = array<i32>} : memref<32x256xf32, #tpu.memory_space<vmem>>, vector<32x128xf32>,
    } else {
    }
    %c2_i32_2 = arith.constant 2 : i32
    %6 = arith.cmpi eq, %arg1, %c2_i32_2 : i32
    %7 = arith.extui %6 : i1 to i32
    %c0_i32_3 = arith.constant 0 : i32
    %8 = arith.cmpi ne, %7, %c0_i32_3 : i32
    scf.if %8 {
      %c0 = arith.constant 0 : index
      %c0_7 = arith.constant 0 : index
      %15 = vector.load %arg12[%c0, %c0_7] : memref<32x256xf32, #tpu.memory_space<vmem>>, vector<32x256xf32>
      %cst = arith.constant dense<0xFF800000> : vector<32xf32>
      %16 = vector.multi_reduction <maximumf>, %15, %cst [1] : vector<32x256xf32> to vector<32xf32>
      %17 = vector.shape_cast %16 : vector<32xf32> to vector<32x1xf32>
      %18 = vector.broadcast %17 : vector<32x1xf32> to vector<32x256xf32>
      %19 = arith.cmpf olt, %15, %18 : vector<32x256xf32>
      %cst_8 = arith.constant 0xFF800000 : f32
      %20 = vector.broadcast %cst_8 : f32 to vector<32x256xf32>
      %21 = arith.select %19, %15, %20 : vector<32x256xi1>, vector<32x256xf32>
      %cst_9 = arith.constant dense<0xFF800000> : vector<32xf32>
      %22 = vector.multi_reduction <maximumf>, %21, %cst_9 [1] : vector<32x256xf32> to vector<32xf32>
      %23 = vector.shape_cast %22 : vector<32xf32> to vector<32x1xf32>
      %24 = vector.broadcast %23 : vector<32x1xf32> to vector<32x256xf32>
      %25 = arith.cmpf olt, %15, %24 : vector<32x256xf32>
      %cst_10 = arith.constant 0xFF800000 : f32
      %26 = vector.broadcast %cst_10 : f32 to vector<32x256xf32>
      %27 = arith.select %25, %15, %26 : vector<32x256xi1>, vector<32x256xf32>
      %cst_11 = arith.constant dense<0xFF800000> : vector<32xf32>
      %28 = vector.multi_reduction <maximumf>, %27, %cst_11 [1] : vector<32x256xf32> to vector<32xf32>
      %29 = vector.shape_cast %28 : vector<32xf32> to vector<32x1xf32>
      %30 = vector.broadcast %29 : vector<32x1xf32> to vector<32x256xf32>
      %31 = arith.cmpf olt, %15, %30 : vector<32x256xf32>
      %cst_12 = arith.constant 0xFF800000 : f32
      %32 = vector.broadcast %cst_12 : f32 to vector<32x256xf32>
      %33 = arith.select %31, %15, %32 : vector<32x256xi1>, vector<32x256xf32>
      %cst_13 = arith.constant dense<0xFF800000> : vector<32xf32>
      %34 = vector.multi_reduction <maximumf>, %33, %cst_13 [1] : vector<32x256xf32> to vector<32xf32>
      %35 = vector.shape_cast %34 : vector<32xf32> to vector<32x1xf32>
      %36 = vector.broadcast %35 : vector<32x1xf32> to vector<32x256xf32>
      %37 = arith.cmpf olt, %15, %36 : vector<32x256xf32>
      %cst_14 = arith.constant 0xFF800000 : f32
      %38 = vector.broadcast %cst_14 : f32 to vector<32x256xf32>
      %39 = arith.select %37, %15, %38 : vector<32x256xi1>, vector<32x256xf32>
      %cst_15 = arith.constant dense<0xFF800000> : vector<32xf32>
      %40 = vector.multi_reduction <maximumf>, %39, %cst_15 [1] : vector<32x256xf32> to vector<32xf32>
      %41 = vector.shape_cast %40 : vector<32xf32> to vector<32x1xf32>
      %42 = vector.broadcast %41 : vector<32x1xf32> to vector<32x256xf32>
      %43 = arith.cmpf olt, %15, %42 : vector<32x256xf32>
      %cst_16 = arith.constant 0xFF800000 : f32
      %44 = vector.broadcast %cst_16 : f32 to vector<32x256xf32>
      %45 = arith.select %43, %15, %44 : vector<32x256xi1>, vector<32x256xf32>
      %cst_17 = arith.constant dense<0xFF800000> : vector<32xf32>
      %46 = vector.multi_reduction <maximumf>, %45, %cst_17 [1] : vector<32x256xf32> to vector<32xf32>
      %47 = vector.shape_cast %46 : vector<32xf32> to vector<32x1xf32>
      %48 = vector.broadcast %47 : vector<32x1xf32> to vector<32x256xf32>
      %49 = arith.cmpf olt, %15, %48 : vector<32x256xf32>
      %cst_18 = arith.constant 0xFF800000 : f32
      %50 = vector.broadcast %cst_18 : f32 to vector<32x256xf32>
      %51 = arith.select %49, %15, %50 : vector<32x256xi1>, vector<32x256xf32>
      %cst_19 = arith.constant dense<0xFF800000> : vector<32xf32>
      %52 = vector.multi_reduction <maximumf>, %51, %cst_19 [1] : vector<32x256xf32> to vector<32xf32>
      %53 = vector.shape_cast %52 : vector<32xf32> to vector<32x1xf32>
      %54 = vector.broadcast %53 : vector<32x1xf32> to vector<32x256xf32>
      %55 = arith.cmpf olt, %15, %54 : vector<32x256xf32>
      %cst_20 = arith.constant 0xFF800000 : f32
      %56 = vector.broadcast %cst_20 : f32 to vector<32x256xf32>
      %57 = arith.select %55, %15, %56 : vector<32x256xi1>, vector<32x256xf32>
      %cst_21 = arith.constant dense<0xFF800000> : vector<32xf32>
      %58 = vector.multi_reduction <maximumf>, %57, %cst_21 [1] : vector<32x256xf32> to vector<32xf32>
      %59 = vector.shape_cast %58 : vector<32xf32> to vector<32x1xf32>
      %60 = vector.broadcast %59 : vector<32x1xf32> to vector<32x256xf32>
      %61 = arith.cmpf olt, %15, %60 : vector<32x256xf32>
      %cst_22 = arith.constant 0xFF800000 : f32
      %62 = vector.broadcast %cst_22 : f32 to vector<32x256xf32>
      %63 = arith.select %61, %15, %62 : vector<32x256xi1>, vector<32x256xf32>
      %cst_23 = arith.constant dense<0xFF800000> : vector<32xf32>
      %64 = vector.multi_reduction <maximumf>, %63, %cst_23 [1] : vector<32x256xf32> to vector<32xf32>
      %65 = vector.shape_cast %64 : vector<32xf32> to vector<32x1xf32>
      %66 = vector.broadcast %65 : vector<32x1xf32> to vector<32x256xf32>
      %67 = arith.cmpf olt, %15, %66 : vector<32x256xf32>
      %cst_24 = arith.constant 0xFF800000 : f32
      %68 = vector.broadcast %cst_24 : f32 to vector<32x256xf32>
      %69 = arith.select %67, %15, %68 : vector<32x256xi1>, vector<32x256xf32>
      %cst_25 = arith.constant dense<0xFF800000> : vector<32xf32>
      %70 = vector.multi_reduction <maximumf>, %69, %cst_25 [1] : vector<32x256xf32> to vector<32xf32>
      %71 = vector.shape_cast %70 : vector<32xf32> to vector<32x1xf32>
      %72 = vector.broadcast %71 : vector<32x1xf32> to vector<32x256xf32>
      %73 = arith.cmpf olt, %15, %72 : vector<32x256xf32>
      %cst_26 = arith.constant 0xFF800000 : f32
      %74 = vector.broadcast %cst_26 : f32 to vector<32x256xf32>
      %75 = arith.select %73, %15, %74 : vector<32x256xi1>, vector<32x256xf32>
      %cst_27 = arith.constant dense<0xFF800000> : vector<32xf32>
      %76 = vector.multi_reduction <maximumf>, %75, %cst_27 [1] : vector<32x256xf32> to vector<32xf32>
      %77 = vector.shape_cast %76 : vector<32xf32> to vector<32x1xf32>
      %78 = vector.broadcast %77 : vector<32x1xf32> to vector<32x256xf32>
      %79 = arith.cmpf olt, %15, %78 : vector<32x256xf32>
      %cst_28 = arith.constant 0xFF800000 : f32
      %80 = vector.broadcast %cst_28 : f32 to vector<32x256xf32>
      %81 = arith.select %79, %15, %80 : vector<32x256xi1>, vector<32x256xf32>
      %cst_29 = arith.constant dense<0xFF800000> : vector<32xf32>
      %82 = vector.multi_reduction <maximumf>, %81, %cst_29 [1] : vector<32x256xf32> to vector<32xf32>
      %83 = vector.shape_cast %82 : vector<32xf32> to vector<32x1xf32>
      %84 = vector.broadcast %83 : vector<32x1xf32> to vector<32x256xf32>
      %85 = arith.cmpf olt, %15, %84 : vector<32x256xf32>
      %cst_30 = arith.constant 0xFF800000 : f32
      %86 = vector.broadcast %cst_30 : f32 to vector<32x256xf32>
      %87 = arith.select %85, %15, %86 : vector<32x256xi1>, vector<32x256xf32>
      %cst_31 = arith.constant dense<0xFF800000> : vector<32xf32>
      %88 = vector.multi_reduction <maximumf>, %87, %cst_31 [1] : vector<32x256xf32> to vector<32xf32>
      %89 = vector.shape_cast %88 : vector<32xf32> to vector<32x1xf32>
      %90 = vector.broadcast %89 : vector<32x1xf32> to vector<32x256xf32>
      %91 = arith.cmpf olt, %15, %90 : vector<32x256xf32>
      %cst_32 = arith.constant 0xFF800000 : f32
      %92 = vector.broadcast %cst_32 : f32 to vector<32x256xf32>
      %93 = arith.select %91, %15, %92 : vector<32x256xi1>, vector<32x256xf32>
      %cst_33 = arith.constant dense<0xFF800000> : vector<32xf32>
      %94 = vector.multi_reduction <maximumf>, %93, %cst_33 [1] : vector<32x256xf32> to vector<32xf32>
      %95 = vector.shape_cast %94 : vector<32xf32> to vector<32x1xf32>
      %96 = vector.broadcast %95 : vector<32x1xf32> to vector<32x256xf32>
      %97 = arith.cmpf olt, %15, %96 : vector<32x256xf32>
      %cst_34 = arith.constant 0xFF800000 : f32
      %98 = vector.broadcast %cst_34 : f32 to vector<32x256xf32>
      %99 = arith.select %97, %15, %98 : vector<32x256xi1>, vector<32x256xf32>
      %cst_35 = arith.constant dense<0xFF800000> : vector<32xf32>
      %100 = vector.multi_reduction <maximumf>, %99, %cst_35 [1] : vector<32x256xf32> to vector<32xf32>
      %101 = vector.shape_cast %100 : vector<32xf32> to vector<32x1xf32>
      %102 = vector.broadcast %101 : vector<32x1xf32> to vector<32x256xf32>
      %103 = arith.cmpf olt, %15, %102 : vector<32x256xf32>
      %cst_36 = arith.constant 0xFF800000 : f32
      %104 = vector.broadcast %cst_36 : f32 to vector<32x256xf32>
      %105 = arith.select %103, %15, %104 : vector<32x256xi1>, vector<32x256xf32>
      %cst_37 = arith.constant dense<0xFF800000> : vector<32xf32>
      %106 = vector.multi_reduction <maximumf>, %105, %cst_37 [1] : vector<32x256xf32> to vector<32xf32>
      %107 = vector.shape_cast %106 : vector<32xf32> to vector<32x1xf32>
      %c0_38 = arith.constant 0 : index
      %c0_39 = arith.constant 0 : index
      %108 = vector.load %arg11[%c0_38, %c0_39] : memref<32x1xf32, #tpu.memory_space<vmem>>, vector<32x1xf32>
      tpu.vector_store %arg11[%c0_38, %c0_39], %107 {strides = array<i32>} : memref<32x1xf32, #tpu.memory_space<vmem>>, vector<32x1xf32>,
      %cst_40 = arith.constant 0.000000e+00 : f32
      %109 = vector.broadcast %cst_40 : f32 to vector<32x128xf32>
      %c0_41 = arith.constant 0 : index
      %c0_42 = arith.constant 0 : index
      %110 = vector.load %arg7[%c0_41, %c0_42] : memref<32x128xf32, #tpu.memory_space<vmem>>, vector<32x128xf32>
      tpu.vector_store %arg7[%c0_41, %c0_42], %109 {strides = array<i32>} : memref<32x128xf32, #tpu.memory_space<vmem>>, vector<32x128xf32>,
    } else {
    }
    %c2_i32_4 = arith.constant 2 : i32
    %9 = arith.cmpi sge, %arg1, %c2_i32_4 : i32
    %10 = arith.extui %9 : i1 to i32
    %c0_i32_5 = arith.constant 0 : i32
    %11 = arith.cmpi ne, %10, %c0_i32_5 : i32
    scf.if %11 {
      %c2_i32_7 = arith.constant 2 : i32
      %15 = arith.subi %arg1, %c2_i32_7 : i32
      %c512_i32 = arith.constant 512 : i32
      %16 = arith.muli %15, %c512_i32 : i32
      %17 = tpu.assume_multiple %16, 128 : i32
      %c0 = arith.constant 0 : index
      %18 = arith.index_cast %17 : i32 to index
      %19 = vector.load %arg10[%c0, %18] : memref<32x1024xf32, #tpu.memory_space<vmem>>, vector<32x512xf32>
      %c0_8 = arith.constant 0 : index
      %c0_9 = arith.constant 0 : index
      %20 = vector.load %arg11[%c0_8, %c0_9] : memref<32x1xf32, #tpu.memory_space<vmem>>, vector<32x1xf32>
      %21 = vector.broadcast %20 : vector<32x1xf32> to vector<32x512xf32>
      %22 = arith.cmpf oge, %19, %21 : vector<32x512xf32>
      %cst = arith.constant 0.000000e+00 : f32
      %23 = vector.broadcast %cst : f32 to vector<32x512xf32>
      %24 = arith.select %22, %19, %23 : vector<32x512xi1>, vector<32x512xf32>
      %c0_10 = arith.constant 0 : index
      %c0_11 = arith.constant 0 : index
      %25 = vector.load %arg8[%c0_10, %c0_11] : memref<32x512xf32, #tpu.memory_space<vmem>>, vector<32x512xf32>
      tpu.vector_store %arg8[%c0_10, %c0_11], %24 {strides = array<i32>} : memref<32x512xf32, #tpu.memory_space<vmem>>, vector<32x512xf32>,
      %c0_12 = arith.constant 0 : index
      %c0_13 = arith.constant 0 : index
      %26 = vector.load %arg7[%c0_12, %c0_13] : memref<32x128xf32, #tpu.memory_space<vmem>>, vector<32x128xf32>
      %27 = arith.truncf %24 : vector<32x512xf32> to vector<32x512xbf16>
      %c0_14 = arith.constant 0 : index
      %c0_15 = arith.constant 0 : index
      %28 = vector.load %arg6[%c0_14, %c0_15] : memref<512x128xbf16, #tpu.memory_space<vmem>>, vector<512x128xbf16>
      %cst_16 = arith.constant dense<0.000000e+00> : vector<32x128xf32>
      %29 = tpu.matmul %27, %28, %cst_16 {dimension_numbers = #tpu.dot_dimension_numbers<[1], [0], [0], [1], [0, 0, 1, 1], [], []>} : vector<32x512xbf16>, vector<512x128xbf16>, vector<32x128xf32> -> vector<32x128xf32>
      %30 = arith.addf %26, %29 : vector<32x128xf32>
      %c0_17 = arith.constant 0 : index
      %c0_18 = arith.constant 0 : index
      %31 = vector.load %arg7[%c0_17, %c0_18] : memref<32x128xf32, #tpu.memory_space<vmem>>, vector<32x128xf32>
      tpu.vector_store %arg7[%c0_17, %c0_18], %30 {strides = array<i32>} : memref<32x128xf32, #tpu.memory_space<vmem>>, vector<32x128xf32>,
    } else {
    }
    %c3_i32 = arith.constant 3 : i32
    %12 = arith.cmpi eq, %arg1, %c3_i32 : i32
    %13 = arith.extui %12 : i1 to i32
    %c0_i32_6 = arith.constant 0 : i32
    %14 = arith.cmpi ne, %13, %c0_i32_6 : i32
    scf.if %14 {
      %c0 = arith.constant 0 : index
      %c0_7 = arith.constant 0 : index
      %15 = vector.load %arg7[%c0, %c0_7] : memref<32x128xf32, #tpu.memory_space<vmem>>, vector<32x128xf32>
      %c0_8 = arith.constant 0 : index
      %c0_9 = arith.constant 0 : index
      %16 = vector.load %arg3[%c0_8, %c0_9] : memref<1x128xf32, #tpu.memory_space<vmem>>, vector<1x128xf32>
      %17 = vector.broadcast %16 : vector<1x128xf32> to vector<32x128xf32>
      %18 = arith.addf %15, %17 : vector<32x128xf32>
      %c0_10 = arith.constant 0 : index
      %c0_11 = arith.constant 0 : index
      %19 = vector.load %arg7[%c0_10, %c0_11] : memref<32x128xf32, #tpu.memory_space<vmem>>, vector<32x128xf32>
      tpu.vector_store %arg7[%c0_10, %c0_11], %18 {strides = array<i32>} : memref<32x128xf32, #tpu.memory_space<vmem>>, vector<32x128xf32>,
    } else {
    }
    return
  }
  func.func @transform_0(%arg0: i32, %arg1: i32) -> (i32, i32) {
    %c0_i32 = arith.constant 0 : i32
    %c0_i32_0 = arith.constant 0 : i32
    return %arg0, %c0_i32 : i32, i32
  }
  func.func @transform_1(%arg0: i32, %arg1: i32) -> (i32, i32) {
    %c0_i32 = arith.constant 0 : i32
    %c0_i32_0 = arith.constant 0 : i32
    %c0_i32_1 = arith.constant 0 : i32
    return %c0_i32, %c0_i32_0 : i32, i32
  }
  func.func @transform_2(%arg0: i32, %arg1: i32) -> (i32, i32) {
    %c1_i32 = arith.constant 1 : i32
    %0 = arith.minsi %arg1, %c1_i32 : i32
    %c0_i32 = arith.constant 0 : i32
    %c0_i32_0 = arith.constant 0 : i32
    return %c0_i32, %0 : i32, i32
  }
  func.func @transform_3(%arg0: i32, %arg1: i32) -> (i32, i32) {
    %c1_i32 = arith.constant 1 : i32
    %0 = arith.minsi %arg1, %c1_i32 : i32
    %c0_i32 = arith.constant 0 : i32
    %c0_i32_0 = arith.constant 0 : i32
    return %c0_i32, %0 : i32, i32
  }
  func.func @transform_4(%arg0: i32, %arg1: i32) -> (i32, i32) {
    %c2_i32 = arith.constant 2 : i32
    %0 = arith.subi %arg1, %c2_i32 : i32
    %c0_i32 = arith.constant 0 : i32
    %1 = arith.maxsi %0, %c0_i32 : i32
    %c0_i32_0 = arith.constant 0 : i32
    %c0_i32_1 = arith.constant 0 : i32
    return %1, %c0_i32_0 : i32, i32
  }
  func.func @transform_5(%arg0: i32, %arg1: i32) -> (i32, i32) {
    %c0_i32 = arith.constant 0 : i32
    %c0_i32_0 = arith.constant 0 : i32
    return %arg0, %c0_i32 : i32, i32
  }
  func.func @transform_6(%arg0: i32, %arg1: i32) -> (i32, i32) {
    %c2_i32 = arith.constant 2 : i32
    %0 = arith.subi %arg1, %c2_i32 : i32
    %c0_i32 = arith.constant 0 : i32
    %1 = arith.maxsi %0, %c0_i32 : i32
    %c0_i32_0 = arith.constant 0 : i32
    return %arg0, %1 : i32, i32
  }
}

</mosaic_0001>

<llo_original>
// kernel: tpu_custom_call.1
$region0: #{tpu_custom_call.1}
  #allocation0 [shape = 'u32[]', space=smem, size = 0x4, offset = 0x4, fixed_abs, tag = 'smem constant byte address 0x4 - core index']
  #allocation1 [shape = 'u32[144,128]{1,0:T(1,128)}', space=vmem, size = 0x12000, scoped, tag = 'internal scratch']
  #allocation2 [shape = 'bf16[32,128]{1,0:T(8,128)(2,1)}', space=vmem, size = 0x2000, scoped, tag = 'scratch operand']
  #allocation3 [shape = 'f32[32,1024]{1,0:T(8,128)}', space=vmem, size = 0x20000, scoped, tag = 'scratch operand']
  #allocation4 [shape = 'f32[32,1]{1,0:T(8,128)}', space=vmem, size = 0x4000, scoped, tag = 'scratch operand']
  #allocation5 [shape = 'f32[32,256]{1,0:T(8,128)}', space=vmem, size = 0x8000, scoped, tag = 'scratch operand']
  %s0 = inlined_call_operand.hbm [shape: f32[64,128], index: 0, kind: input, shape index: {}]
  %s1 = inlined_call_operand.vmem [shape: f32[1,128], index: 1, kind: input, shape index: {}]
  %s2 = inlined_call_operand.hbm [shape: bf16[128,1024], index: 2, kind: input, shape index: {}]
  %s3 = inlined_call_operand.hbm [shape: f32[1,1024], index: 3, kind: input, shape index: {}]
  %s4 = inlined_call_operand.hbm [shape: bf16[1024,128], index: 4, kind: input, shape index: {}]
  %s5 = inlined_call_operand.hbm [shape: f32[64,128], index: 5, kind: output, shape index: {0}]
  %s6 = inlined_call_operand.hbm [shape: f32[64,1024], index: 6, kind: output, shape index: {1}]
  %7 = xla_tuple %s5, %s6
  %s8 = sld [smem:[#allocation0]]
  $region97: #{tpu_custom_call.1} parent=0
    _
  %s10 = ssub.s32 1, %s8
  %s11 = scalar_select 0, %s10, %s8
  $region1: #{tpu_custom_call.1} parent=0
    #allocation6 [shape = 'u8[32768]{0}', space=vmem, size = 0x8000, scoped, tag = 'input window, operand 0']
    #allocation7 [shape = 's32[2]{0}', space=sflag, size = 0x8, scoped, tag = 'scoped memory for tpu_custom_call.1']
    #allocation8 [shape = 's32[2]{0}', space=sflag, size = 0x8, scoped, tag = 'scoped memory for tpu_custom_call.1']
    #allocation9 [shape = 'u8[262144]{0}', space=vmem, size = 0x40000, scoped, tag = 'input window, operand 2']
    #allocation10 [shape = 's32[2]{0}', space=sflag, size = 0x8, scoped, tag = 'scoped memory for tpu_custom_call.1']
    #allocation11 [shape = 'u8[4096]{0}', space=vmem, size = 0x1000, scoped, tag = 'input window, operand 3']
    #allocation12 [shape = 'u8[262144]{0}', space=vmem, size = 0x40000, scoped, tag = 'input window, operand 4']
    #allocation13 [shape = 's32[2]{0}', space=sflag, size = 0x8, scoped, tag = 'scoped memory for tpu_custom_call.1']
    #allocation14 [shape = 'u8[32768]{0}', space=vmem, size = 0x8000, scoped, tag = 'output window, operand 0']
    #allocation15 [shape = 'u8[131072]{0}', space=vmem, size = 0x20000, scoped, tag = 'output window, operand 1']
    #allocation16 [shape = 's32[2]{0}', space=sflag, size = 0x8, scoped, tag = 'scoped memory for tpu_custom_call.1']
    %12 = vsyncpa [#allocation7], 0
    %s13 = scalar_lea.sflag [#allocation7], 1
    %14 = vsyncpa %s13, 0
    %15 = vsyncpa [#allocation10], 0
    %s16 = scalar_lea.sflag [#allocation10], 1
    %17 = vsyncpa %s16, 0
    %18 = vsyncpa [#allocation13], 0
    %s19 = scalar_lea.sflag [#allocation13], 1
    %20 = vsyncpa %s19, 0
    %21 = vsyncpa [#allocation8], 0
    %s22 = scalar_lea.sflag [#allocation8], 1
    %23 = vsyncpa %s22, 0
    %24 = vsyncpa [#allocation16], 0
    %s25 = scalar_lea.sflag [#allocation16], 1
    %26 = vsyncpa %s25, 0
    loop: start=0, step=1, limit=10
    $region2: #{tpu_custom_call.1} parent=1 // loop_pre_header
      _
    $region3: #{tpu_custom_call.1} parent=1 // loop_header
      %s28 = sphi 0, %s32
      %p29 = scmp.ge.s32.totalorder %s28, 10
      %s35 = sphi 0, %s47
      %s36 = sphi 0, %s43
      %s37 = sphi 0, %s35
      %s38 = sphi 0, %s36
      %s39 = sphi 0, %s37
      %s40 = sphi 0, %s38
      %s50 = sphi 0, %s52
      %s53 = sphi 0, %s50
      %s54 = sphi 0, %s53
      %s70 = sphi 0, %s54
      %s74 = sphi 0, %s74
      %s76 = sphi 0, %s74
      %s77 = sphi 0, %s76
      %s91 = sphi 0, %s77
      %s101 = sphi 0, %s103
      %s104 = sphi 0, %s101
      %s105 = sphi 0, %s104
      %s121 = sphi 0, %s105
      %s131 = sphi 0, %s133
      %s134 = sphi 0, %s131
      %s135 = sphi 0, %s134
      %s151 = sphi 0, %s135
      %s163 = sphi 0, %s165
      %s166 = sphi 0, %s163
      %s167 = sphi 0, %s166
      %s183 = sphi 0, %s167
      %s189 = sphi 0, %s191
      %s192 = sphi 0, %s189
      %s193 = sphi 0, %s192
      %s209 = sphi 0, %s193
      %s223 = sphi 0, %s225
      %s226 = sphi 0, %s223
      %s227 = sphi 0, %s226
      %s243 = sphi 0, %s227
    $region4: #{tpu_custom_call.1} parent=1 // loop_header_branch
      %31 = sbr.rel (%p29) target = $region8
    $region5: #{tpu_custom_call.1} parent=1 // loop_body
      %s33 = ssub.s32 %s28, 1
      %s34 = ssub.s32 %s28, 2
      %s41 = sadd.s32 1, %s36
      %p42 = scmp.ge.s32.totalorder %s41, 4
      %s43 = scalar_select %p42, 0, %s41
      %s44 = sadd.s32 1, %s35
      %s45 = scalar_select %p42, %s44, %s35
      %p46 = scmp.ge.s32.totalorder %s45, 2
      %s47 = scalar_select %p46, 0, %s45
      %s48 = ssub.s32 %s35, %s47
      %p49 = scmp.eq.s32.totalorder %s48, 0
      %s51 = sadd.s32 %s50, 1
      %s52 = scalar_select %p49, %s50, %s51
      %p55 = pneg %p49
      %p56 = scmp.eq.s32.totalorder %s28, 7
      %p57 = por %p55, %p56
      %p58 = scmp.ne.s32.totalorder %s50, %s53
      %p59 = scmp.eq.s32.totalorder %s28, 0
      %p60 = por %p58, %p59
      %p61 = scmp.ne.s32.totalorder %s50, %s53
      %p62 = scmp.eq.s32.totalorder %s33, 7
      %p63 = por %p61, %p62
      %p64 = scmp.ne.s32.totalorder %s53, %s54
      %p65 = scmp.eq.s32.totalorder %s33, 0
      %p66 = por %p64, %p65
      %p67 = scmp.ne.s32.totalorder %s53, %s54
      %p68 = scmp.eq.s32.totalorder %s34, 7
      %p69 = por %p67, %p68
      %p71 = scmp.ne.s32.totalorder %s54, %s70
      %p72 = scmp.eq.s32.totalorder %s34, 0
      %p73 = por %p71, %p72
      %s75 = sadd.s32 %s74, 1
      %p78 = scmp.eq.s32.totalorder %s28, 7
      %p79 = scmp.ne.s32.totalorder %s74, %s76
      %p80 = scmp.eq.s32.totalorder %s28, 0
      %p81 = por %p79, %p80
      %p82 = scmp.ne.s32.totalorder %s74, %s76
      %p83 = scmp.eq.s32.totalorder %s33, 7
      %p84 = por %p82, %p83
      %p85 = scmp.ne.s32.totalorder %s76, %s77
      %p86 = scmp.eq.s32.totalorder %s33, 0
      %p87 = por %p85, %p86
      %p88 = scmp.ne.s32.totalorder %s76, %s77
      %p89 = scmp.eq.s32.totalorder %s34, 7
      %p90 = por %p88, %p89
      %p92 = scmp.ne.s32.totalorder %s77, %s91
      %p93 = scmp.eq.s32.totalorder %s34, 0
      %p94 = por %p92, %p93
      %p95 = scmp.lt.s32.totalorder %s36, 1
      %s96 = scalar_select %p95, %s36, 1
      %p97 = scmp.lt.s32.totalorder %s43, 1
      %s98 = scalar_select %p97, %s43, 1
      %s99 = ssub.s32 %s96, %s98
      %p100 = scmp.eq.s32.totalorder %s99, 0
      %s102 = sadd.s32 %s101, 1
      %s103 = scalar_select %p100, %s101, %s102
      %p106 = pneg %p100
      %p107 = scmp.eq.s32.totalorder %s28, 7
      %p108 = por %p106, %p107
      %p109 = scmp.ne.s32.totalorder %s101, %s104
      %p110 = scmp.eq.s32.totalorder %s28, 0
      %p111 = por %p109, %p110
      %p112 = scmp.ne.s32.totalorder %s101, %s104
      %p113 = scmp.eq.s32.totalorder %s33, 7
      %p114 = por %p112, %p113
      %p115 = scmp.ne.s32.totalorder %s104, %s105
      %p116 = scmp.eq.s32.totalorder %s33, 0
      %p117 = por %p115, %p116
      %p118 = scmp.ne.s32.totalorder %s104, %s105
      %p119 = scmp.eq.s32.totalorder %s34, 7
      %p120 = por %p118, %p119
      %p122 = scmp.ne.s32.totalorder %s105, %s121
      %p123 = scmp.eq.s32.totalorder %s34, 0
      %p124 = por %p122, %p123
      %p125 = scmp.lt.s32.totalorder %s36, 1
      %s126 = scalar_select %p125, %s36, 1
      %p127 = scmp.lt.s32.totalorder %s43, 1
      %s128 = scalar_select %p127, %s43, 1
      %s129 = ssub.s32 %s126, %s128
      %p130 = scmp.eq.s32.totalorder %s129, 0
      %s132 = sadd.s32 %s131, 1
      %s133 = scalar_select %p130, %s131, %s132
      %p136 = pneg %p130
      %p137 = scmp.eq.s32.totalorder %s28, 7
      %p138 = por %p136, %p137
      %p139 = scmp.ne.s32.totalorder %s131, %s134
      %p140 = scmp.eq.s32.totalorder %s28, 0
      %p141 = por %p139, %p140
      %p142 = scmp.ne.s32.totalorder %s131, %s134
      %p143 = scmp.eq.s32.totalorder %s33, 7
      %p144 = por %p142, %p143
      %p145 = scmp.ne.s32.totalorder %s134, %s135
      %p146 = scmp.eq.s32.totalorder %s33, 0
      %p147 = por %p145, %p146
      %p148 = scmp.ne.s32.totalorder %s134, %s135
      %p149 = scmp.eq.s32.totalorder %s34, 7
      %p150 = por %p148, %p149
      %p152 = scmp.ne.s32.totalorder %s135, %s151
      %p153 = scmp.eq.s32.totalorder %s34, 0
      %p154 = por %p152, %p153
      %s155 = ssub.s32 %s36, 2
      %p156 = scmp.gt.s32.totalorder %s155, 0
      %s157 = scalar_select %p156, %s155, 0
      %s158 = ssub.s32 %s43, 2
      %p159 = scmp.gt.s32.totalorder %s158, 0
      %s160 = scalar_select %p159, %s158, 0
      %s161 = ssub.s32 %s157, %s160
      %p162 = scmp.eq.s32.totalorder %s161, 0
      %s164 = sadd.s32 %s163, 1
      %s165 = scalar_select %p162, %s163, %s164
      %p168 = pneg %p162
      %p169 = scmp.eq.s32.totalorder %s28, 7
      %p170 = por %p168, %p169
      %p171 = scmp.ne.s32.totalorder %s163, %s166
      %p172 = scmp.eq.s32.totalorder %s28, 0
      %p173 = por %p171, %p172
      %p174 = scmp.ne.s32.totalorder %s163, %s166
      %p175 = scmp.eq.s32.totalorder %s33, 7
      %p176 = por %p174, %p175
      %p177 = scmp.ne.s32.totalorder %s166, %s167
      %p178 = scmp.eq.s32.totalorder %s33, 0
      %p179 = por %p177, %p178
      %p180 = scmp.ne.s32.totalorder %s166, %s167
      %p181 = scmp.eq.s32.totalorder %s34, 7
      %p182 = por %p180, %p181
      %p184 = scmp.ne.s32.totalorder %s167, %s183
      %p185 = scmp.eq.s32.totalorder %s34, 0
      %p186 = por %p184, %p185
      %s187 = ssub.s32 %s35, %s47
      %p188 = scmp.eq.s32.totalorder %s187, 0
      %s190 = sadd.s32 %s189, 1
      %s191 = scalar_select %p188, %s189, %s190
      %p194 = pneg %p188
      %p195 = scmp.eq.s32.totalorder %s28, 7
      %p196 = por %p194, %p195
      %p197 = scmp.ne.s32.totalorder %s189, %s192
      %p198 = scmp.eq.s32.totalorder %s28, 0
      %p199 = por %p197, %p198
      %p200 = scmp.ne.s32.totalorder %s189, %s192
      %p201 = scmp.eq.s32.totalorder %s33, 7
      %p202 = por %p200, %p201
      %p203 = scmp.ne.s32.totalorder %s192, %s193
      %p204 = scmp.eq.s32.totalorder %s33, 0
      %p205 = por %p203, %p204
      %p206 = scmp.ne.s32.totalorder %s192, %s193
      %p207 = scmp.eq.s32.totalorder %s34, 7
      %p208 = por %p206, %p207
      %p210 = scmp.ne.s32.totalorder %s193, %s209
      %p211 = scmp.eq.s32.totalorder %s34, 0
      %p212 = por %p210, %p211
      %s213 = ssub.s32 %s36, 2
      %p214 = scmp.gt.s32.totalorder %s213, 0
      %s215 = scalar_select %p214, %s213, 0
      %s216 = ssub.s32 %s43, 2
      %p217 = scmp.gt.s32.totalorder %s216, 0
      %s218 = scalar_select %p217, %s216, 0
      %s219 = ssub.s32 %s35, %s47
      %s220 = ssub.s32 %s215, %s218
      %s221 = sor.u32 %s219, %s220
      %p222 = scmp.eq.s32.totalorder %s221, 0
      %s224 = sadd.s32 %s223, 1
      %s225 = scalar_select %p222, %s223, %s224
      %p228 = pneg %p222
      %p229 = scmp.eq.s32.totalorder %s28, 7
      %p230 = por %p228, %p229
      %p231 = scmp.ne.s32.totalorder %s223, %s226
      %p232 = scmp.eq.s32.totalorder %s28, 0
      %p233 = por %p231, %p232
      %p234 = scmp.ne.s32.totalorder %s223, %s226
      %p235 = scmp.eq.s32.totalorder %s33, 7
      %p236 = por %p234, %p235
      %p237 = scmp.ne.s32.totalorder %s226, %s227
      %p238 = scmp.eq.s32.totalorder %s33, 0
      %p239 = por %p237, %p238
      %p240 = scmp.ne.s32.totalorder %s226, %s227
      %p241 = scmp.eq.s32.totalorder %s34, 7
      %p242 = por %p240, %p241
      %p244 = scmp.ne.s32.totalorder %s227, %s243
      %p245 = scmp.eq.s32.totalorder %s34, 0
      %p246 = por %p244, %p245
      %p247 = scmp.le.s32.totalorder 1, %s28
      %p248 = scmp.lt.s32.totalorder %s28, 9
      %p249 = pnand %p247, %p248
      %p250 = pneg %p249
      // Predicated region
      $region9: #{tpu_custom_call.1} parent=5 // pred_check
        _
      $region10: #{tpu_custom_call.1} parent=5 // pred_check_branch
        %252 = sbr.rel (%p249) target = $region12
      $region11: #{tpu_custom_call.1} parent=5 // pred_region
        %s253 = ssub.s32 %s28, 1
        // Predicated region
        $region13: #{tpu_custom_call.1} parent=11 // pred_check
          %p254 = pneg %p87
        $region14: #{tpu_custom_call.1} parent=11 // pred_check_branch
          %256 = sbr.rel (%p254) target = $region16
        $region15: #{tpu_custom_call.1} parent=11 // pred_region
          _
        $region16: #{tpu_custom_call.1} parent=11 // pred_fallthru
          _
      $region12: #{tpu_custom_call.1} parent=5 // pred_fallthru
        _
      %p257 = scmp.lt.s32.totalorder %s28, 8
      // Predicated region
      $region17: #{tpu_custom_call.1} parent=5 // pred_check
        %p258 = pneg %p257
      $region18: #{tpu_custom_call.1} parent=5 // pred_check_branch
        %260 = sbr.rel (%p258) target = $region20
      $region19: #{tpu_custom_call.1} parent=5 // pred_region
        // Predicated region
        $region21: #{tpu_custom_call.1} parent=19 // pred_check
          %p261 = pneg %p60
        $region22: #{tpu_custom_call.1} parent=19 // pred_check_branch
          %263 = sbr.rel (%p261) target = $region24
        $region23: #{tpu_custom_call.1} parent=19 // pred_region
          %s264 = sand.u32 %s50, 1
          %s265 = scalar_lea.sflag [#allocation7], %s264
          %s266 = sand.u32 %s50, 1
          %s267 = smul.addr %s266, 32
          %s268 = scalar_lea.vmem [#allocation6], %s267
          %s269 = smul.u32 4, %s35
          %s271 = ssub.s32 512, 512
          %272 = vsyncadd %s265, %s271
          %s273 = smul.addr %s269, 128
          %s274 = scalar_lea.hbm %s0, %s273
          %s275 = sshll.u32 %s268, 4
          %s276 = int_to_ptr.vmem [resolvable:$true] %s275
          %281 = dma.hbm_to_vmem [thread:$0]  %s274, 512, %s276, %s265, 128, 128, 8
        $region24: #{tpu_custom_call.1} parent=19 // pred_fallthru
          _
        // Predicated region
        $region25: #{tpu_custom_call.1} parent=19 // pred_check
          %p282 = pneg %p111
        $region26: #{tpu_custom_call.1} parent=19 // pred_check_branch
          %284 = sbr.rel (%p282) target = $region28
        $region27: #{tpu_custom_call.1} parent=19 // pred_region
          %s285 = sand.u32 %s28, 1
          %s286 = scalar_lea.sflag [#allocation10], %s285
          %s287 = sand.u32 %s101, 1
          %s288 = smul.addr %s287, 256
          %s289 = scalar_lea.vmem [#allocation9], %s288
          %p290 = scmp.lt.s32.totalorder %s36, 1
          %s291 = scalar_select %p290, %s36, 1
          %s292 = smul.u32 4, %s291
          %s294 = ssub.s32 4096, 4096
          %295 = vsyncadd %s286, %s294
          %s296 = smul.addr %s292, 64
          %s297 = scalar_lea.hbm %s2, %s296
          %s298 = sshll.u32 %s289, 4
          %s299 = int_to_ptr.vmem [resolvable:$true] %s298
          %304 = dma.hbm_to_vmem [thread:$0]  %s297, 4096, %s299, %s286, 512, 256, 16
        $region28: #{tpu_custom_call.1} parent=19 // pred_fallthru
          _
        // Predicated region
        $region29: #{tpu_custom_call.1} parent=19 // pred_check
          %p305 = pneg %p141
        $region30: #{tpu_custom_call.1} parent=19 // pred_check_branch
          %307 = sbr.rel (%p305) target = $region32
        $region31: #{tpu_custom_call.1} parent=19 // pred_region
          %s308 = sand.u32 %s28, 1
          %s309 = scalar_lea.sflag [#allocation10], %s308
          %s310 = sand.u32 %s131, 1
          %s311 = smul.addr %s310, 4
          %s312 = scalar_lea.vmem [#allocation11], %s311
          %p313 = scmp.lt.s32.totalorder %s36, 1
          %s314 = scalar_select %p313, %s36, 1
          %s315 = smul.u32 4, %s314
          %s317 = ssub.s32 64, 64
          %318 = vsyncadd %s309, %s317
          %s319 = smul.addr %s315, 16
          %s320 = scalar_lea.hbm %s3, %s319
          %s322 = sshll.u32 %s312, 4
          %s323 = int_to_ptr.vmem [resolvable:$true] %s322
          %325 = dma.hbm_to_vmem [thread:$0]  %s320, 64, %s323, %s309
        $region32: #{tpu_custom_call.1} parent=19 // pred_fallthru
          _
        // Predicated region
        $region33: #{tpu_custom_call.1} parent=19 // pred_check
          %p326 = pneg %p173
        $region34: #{tpu_custom_call.1} parent=19 // pred_check_branch
          %328 = sbr.rel (%p326) target = $region36
        $region35: #{tpu_custom_call.1} parent=19 // pred_region
          %s329 = sand.u32 %s163, 1
          %s330 = scalar_lea.sflag [#allocation13], %s329
          %s331 = sand.u32 %s163, 1
          %s332 = smul.addr %s331, 256
          %s333 = scalar_lea.vmem [#allocation12], %s332
          %s334 = ssub.s32 %s36, 2
          %p335 = scmp.gt.s32.totalorder %s334, 0
          %s336 = scalar_select %p335, %s334, 0
          %s337 = smul.u32 64, %s336
          %s339 = ssub.s32 4096, 4096
          %340 = vsyncadd %s330, %s339
          %s341 = smul.addr %s337, 64
          %s342 = scalar_lea.hbm %s4, %s341
          %s343 = sshll.u32 %s333, 4
          %s344 = int_to_ptr.vmem [resolvable:$true] %s343
          %349 = dma.hbm_to_vmem [thread:$0]  %s342, 4096, %s344, %s330, 64, 64, 4
        $region36: #{tpu_custom_call.1} parent=19 // pred_fallthru
          _
      $region20: #{tpu_custom_call.1} parent=5 // pred_fallthru
        _
      %p350 = scmp.le.s32.totalorder 1, %s28
      %p351 = scmp.lt.s32.totalorder %s28, 9
      %p352 = pnand %p350, %p351
      %p353 = pneg %p352
      // Predicated region
      $region37: #{tpu_custom_call.1} parent=5 // pred_check
        _
      $region38: #{tpu_custom_call.1} parent=5 // pred_check_branch
        %355 = sbr.rel (%p352) target = $region40
      $region39: #{tpu_custom_call.1} parent=5 // pred_region
        %s356 = ssub.s32 %s28, 1
        %s357 = sand.u32 %s53, 1
        %s358 = scalar_lea.sflag [#allocation7], %s357
        %s359 = sand.u32 %s53, 1
        %s360 = smul.addr %s359, 32
        %s361 = scalar_lea.vmem [#allocation6], %s360
        // Predicated region
        $region41: #{tpu_custom_call.1} parent=39 // pred_check
          %p362 = pneg %p66
        $region42: #{tpu_custom_call.1} parent=39 // pred_check_branch
          %364 = sbr.rel (%p362) target = $region44
        $region43: #{tpu_custom_call.1} parent=39 // pred_region
          %365 = dma.done %s358, 512
        $region44: #{tpu_custom_call.1} parent=39 // pred_fallthru
          _
        %s366 = sand.u32 %s33, 1
        %s367 = scalar_lea.sflag [#allocation10], %s366
        %s368 = sand.u32 %s104, 1
        %s369 = smul.addr %s368, 256
        %s370 = scalar_lea.vmem [#allocation9], %s369
        // Predicated region
        $region45: #{tpu_custom_call.1} parent=39 // pred_check
          %p371 = pneg %p117
        $region46: #{tpu_custom_call.1} parent=39 // pred_check_branch
          %373 = sbr.rel (%p371) target = $region48
        $region47: #{tpu_custom_call.1} parent=39 // pred_region
          %374 = dma.done %s367, 4096
        $region48: #{tpu_custom_call.1} parent=39 // pred_fallthru
          _
        %s375 = sand.u32 %s33, 1
        %s376 = scalar_lea.sflag [#allocation10], %s375
        %s377 = sand.u32 %s134, 1
        %s378 = smul.addr %s377, 4
        %s379 = scalar_lea.vmem [#allocation11], %s378
        // Predicated region
        $region49: #{tpu_custom_call.1} parent=39 // pred_check
          %p380 = pneg %p147
        $region50: #{tpu_custom_call.1} parent=39 // pred_check_branch
          %382 = sbr.rel (%p380) target = $region52
        $region51: #{tpu_custom_call.1} parent=39 // pred_region
          %383 = dma.done %s376, 64
        $region52: #{tpu_custom_call.1} parent=39 // pred_fallthru
          _
        %s384 = sand.u32 %s166, 1
        %s385 = scalar_lea.sflag [#allocation13], %s384
        %s386 = sand.u32 %s166, 1
        %s387 = smul.addr %s386, 256
        %s388 = scalar_lea.vmem [#allocation12], %s387
        // Predicated region
        $region53: #{tpu_custom_call.1} parent=39 // pred_check
          %p389 = pneg %p179
        $region54: #{tpu_custom_call.1} parent=39 // pred_check_branch
          %391 = sbr.rel (%p389) target = $region56
        $region55: #{tpu_custom_call.1} parent=39 // pred_region
          %392 = dma.done %s385, 4096
        $region56: #{tpu_custom_call.1} parent=39 // pred_fallthru
          _
        %s393 = sand.u32 %s53, 1
        %s394 = scalar_lea.sflag [#allocation7], %s393
        %s395 = sand.u32 %s53, 1
        %s396 = smul.addr %s395, 32
        %s397 = scalar_lea.vmem [#allocation6], %s396
        %p398 = pneg %p66
        %p399 = pneg %p63
        %p400 = pneg %p87
        %p401 = pneg %p84
        %s402 = sand.u32 %s33, 1
        %s403 = scalar_lea.sflag [#allocation10], %s402
        %s404 = sand.u32 %s104, 1
        %s405 = smul.addr %s404, 256
        %s406 = scalar_lea.vmem [#allocation9], %s405
        %p407 = pneg %p117
        %p408 = pneg %p114
        %s409 = sand.u32 %s33, 1
        %s410 = scalar_lea.sflag [#allocation10], %s409
        %s411 = sand.u32 %s134, 1
        %s412 = smul.addr %s411, 4
        %s413 = scalar_lea.vmem [#allocation11], %s412
        %p414 = pneg %p147
        %p415 = pneg %p144
        %s416 = sand.u32 %s166, 1
        %s417 = scalar_lea.sflag [#allocation13], %s416
        %s418 = sand.u32 %s166, 1
        %s419 = smul.addr %s418, 256
        %s420 = scalar_lea.vmem [#allocation12], %s419
        %p421 = pneg %p179
        %p422 = pneg %p176
        %p423 = pneg %p205
        %p424 = pneg %p202
        %s425 = sand.u32 %s192, 1
        %s426 = scalar_lea.sflag [#allocation8], %s425
        %s427 = sand.u32 %s192, 1
        %s428 = smul.addr %s427, 32
        %s429 = scalar_lea.vmem [#allocation14], %s428
        %p430 = pneg %p239
        %p431 = pneg %p236
        %s432 = sand.u32 %s226, 1
        %s433 = scalar_lea.sflag [#allocation16], %s432
        %s434 = sand.u32 %s226, 1
        %s435 = smul.addr %s434, 128
        %s436 = scalar_lea.vmem [#allocation15], %s435
        %s437 = smul.u32 4, %s37
        %p438 = scmp.lt.s32.totalorder %s38, 1
        %s439 = scalar_select %p438, %s38, 1
        %s440 = smul.u32 4, %s439
        %p441 = scmp.lt.s32.totalorder %s38, 1
        %s442 = scalar_select %p441, %s38, 1
        %s443 = smul.u32 4, %s442
        %s444 = ssub.s32 %s38, 2
        %p445 = scmp.gt.s32.totalorder %s444, 0
        %s446 = scalar_select %p445, %s444, 0
        %s447 = smul.u32 64, %s446
        %s448 = smul.u32 4, %s37
        %s449 = ssub.s32 %s38, 2
        %p450 = scmp.gt.s32.totalorder %s449, 0
        %s451 = scalar_select %p450, %s449, 0
        %s452 = smul.u32 4, %s37
        %s453 = smul.u32 4, %s451
        %p455 = scmp.eq.s32.totalorder %s38, 0
        // Predicated region
        $region57: #{tpu_custom_call.1} parent=39 // pred_check
          %p456 = pneg %p455
        $region58: #{tpu_custom_call.1} parent=39 // pred_check_branch
          %458 = sbr.rel (%p456) target = $region60
        $region59: #{tpu_custom_call.1} parent=39 // pred_region
          %v459 = vld [vmem:[%s361] sm:$0xff]
          %v460 = vld [vmem:[%s361 + $0x8] sm:$0xff]
          %v461 = vld [vmem:[%s361 + $0x10] sm:$0xff]
          %v462 = vld [vmem:[%s361 + $0x18] sm:$0xff]
          %v463 = vld [vmem:[%s1] sm:$0x1]
          %v465 = vlaneseq
          %v466 = vshrl.u32 %v465, 7
          %v467 = vsub.s32 0, %v466
          %v468 = vrot.slane %v463, %v467
          %v470 = vsub.f32 %v459, %v468
          %v471 = vsub.f32 %v460, %v468
          %v472 = vsub.f32 %v461, %v468
          %v473 = vsub.f32 %v462, %v468
          %v474 = vpack.c.bf16 %v471, %v470
          %v475 = vpack.c.bf16 %v473, %v472
          %v478 = vunpack.c.l.b16 %v474
          %v479 = vunpack.c.h.b16 %v474
          %v480 = vunpack.c.l.b16 %v475
          %v481 = vunpack.c.h.b16 %v475
          %v482 = vpack.c.b16 %v478, %v478
          %v483 = vpack.c.b16 %v479, %v479
          %v484 = vpack.c.b16 %v480, %v480
          %v485 = vpack.c.b16 %v481, %v481
          %490 = vst [vmem:[#allocation2] sm:$0xf] %v482
          %491 = vst [vmem:[#allocation2 + $0x4] sm:$0xf] %v483
          %492 = vst [vmem:[#allocation2 + $0x8] sm:$0xf] %v484
          %493 = vst [vmem:[#allocation2 + $0xc] sm:$0xf] %v485
        $region60: #{tpu_custom_call.1} parent=39 // pred_fallthru
          _
        %p494 = scmp.lt.s32.totalorder %s38, 2
        // Predicated region
        $region61: #{tpu_custom_call.1} parent=39 // pred_check
          %p495 = pneg %p494
        $region62: #{tpu_custom_call.1} parent=39 // pred_check_branch
          %497 = sbr.rel (%p495) target = $region64
        $region63: #{tpu_custom_call.1} parent=39 // pred_region
          %v498 = vld [vmem:[#allocation2] sm:$0xf]
          %v499 = vld [vmem:[#allocation2 + $0x4] sm:$0xf]
          %v500 = vld [vmem:[#allocation2 + $0x8] sm:$0xf]
          %v501 = vld [vmem:[#allocation2 + $0xc] sm:$0xf]
          %v502 = vld [vmem:[%s370] sm:$0xff]
          %v503 = vld [vmem:[%s370 + $0x8] sm:$0xff]
          %v504 = vld [vmem:[%s370 + $0x10] sm:$0xff]
          %v505 = vld [vmem:[%s370 + $0x18] sm:$0xff]
          %v506 = vld [vmem:[%s370 + $0x20] sm:$0xff]
          %v507 = vld [vmem:[%s370 + $0x28] sm:$0xff]
          %v508 = vld [vmem:[%s370 + $0x30] sm:$0xff]
          %v509 = vld [vmem:[%s370 + $0x38] sm:$0xff]
          %v510 = vld [vmem:[%s370 + $0x40] sm:$0xff]
          %v511 = vld [vmem:[%s370 + $0x48] sm:$0xff]
          %v512 = vld [vmem:[%s370 + $0x50] sm:$0xff]
          %v513 = vld [vmem:[%s370 + $0x58] sm:$0xff]
          %v514 = vld [vmem:[%s370 + $0x60] sm:$0xff]
          %v515 = vld [vmem:[%s370 + $0x68] sm:$0xff]
          %v516 = vld [vmem:[%s370 + $0x70] sm:$0xff]
          %v517 = vld [vmem:[%s370 + $0x78] sm:$0xff]
          %v518 = vld [vmem:[%s370 + $0x80] sm:$0xff]
          %v519 = vld [vmem:[%s370 + $0x88] sm:$0xff]
          %v520 = vld [vmem:[%s370 + $0x90] sm:$0xff]
          %v521 = vld [vmem:[%s370 + $0x98] sm:$0xff]
          %v522 = vld [vmem:[%s370 + $0xa0] sm:$0xff]
          %v523 = vld [vmem:[%s370 + $0xa8] sm:$0xff]
          %v524 = vld [vmem:[%s370 + $0xb0] sm:$0xff]
          %v525 = vld [vmem:[%s370 + $0xb8] sm:$0xff]
          %v526 = vld [vmem:[%s370 + $0xc0] sm:$0xff]
          %v527 = vld [vmem:[%s370 + $0xc8] sm:$0xff]
          %v528 = vld [vmem:[%s370 + $0xd0] sm:$0xff]
          %v529 = vld [vmem:[%s370 + $0xd8] sm:$0xff]
          %v530 = vld [vmem:[%s370 + $0xe0] sm:$0xff]
          %v531 = vld [vmem:[%s370 + $0xe8] sm:$0xff]
          %v532 = vld [vmem:[%s370 + $0xf0] sm:$0xff]
          %v533 = vld [vmem:[%s370 + $0xf8] sm:$0xff]
          %v534 = vld [vmem:[%s379] sm:$0xf]
          %v536 = vlaneseq
          %v537 = vshrl.u32 %v536, 7
          %v538 = vsub.s32 0, %v537
          %v539 = vrot.slane %v534, %v538
          %v540 = vlaneseq
          %v541 = vshrl.u32 %v540, 7
          %v542 = vsub.s32 1, %v541
          %v543 = vrot.slane %v534, %v542
          %v544 = vlaneseq
          %v545 = vshrl.u32 %v544, 7
          %v546 = vsub.s32 2, %v545
          %v547 = vrot.slane %v534, %v546
          %v548 = vlaneseq
          %v549 = vshrl.u32 %v548, 7
          %v550 = vsub.s32 3, %v549
          %v551 = vrot.slane %v534, %v550
          %v560 = vunpack.c.l.b16 %v498
          %v561 = vunpack.c.l.b16 %v499
          %v562 = vunpack.c.l.b16 %v500
          %v563 = vunpack.c.l.b16 %v501
          %v564 = vpack.c.b16 %v561, %v560
          %v565 = vpack.c.b16 %v563, %v562
          %v600 = vunpack.c.l.b16 %v502
          %v601 = vunpack.c.h.b16 %v502
          %v602 = vunpack.c.l.b16 %v503
          %v603 = vunpack.c.h.b16 %v503
          %v604 = vunpack.c.l.b16 %v504
          %v605 = vunpack.c.h.b16 %v504
          %v606 = vunpack.c.l.b16 %v505
          %v607 = vunpack.c.h.b16 %v505
          %v608 = vunpack.c.l.b16 %v506
          %v609 = vunpack.c.h.b16 %v506
          %v610 = vunpack.c.l.b16 %v507
          %v611 = vunpack.c.h.b16 %v507
          %v612 = vunpack.c.l.b16 %v508
          %v613 = vunpack.c.h.b16 %v508
          %v614 = vunpack.c.l.b16 %v509
          %v615 = vunpack.c.h.b16 %v509
          %v616 = vunpack.c.l.b16 %v510
          %v617 = vunpack.c.h.b16 %v510
          %v618 = vunpack.c.l.b16 %v511
          %v619 = vunpack.c.h.b16 %v511
          %v620 = vunpack.c.l.b16 %v512
          %v621 = vunpack.c.h.b16 %v512
          %v622 = vunpack.c.l.b16 %v513
          %v623 = vunpack.c.h.b16 %v513
          %v624 = vunpack.c.l.b16 %v514
          %v625 = vunpack.c.h.b16 %v514
          %v626 = vunpack.c.l.b16 %v515
          %v627 = vunpack.c.h.b16 %v515
          %v628 = vunpack.c.l.b16 %v516
          %v629 = vunpack.c.h.b16 %v516
          %v630 = vunpack.c.l.b16 %v517
          %v631 = vunpack.c.h.b16 %v517
          %v632 = vunpack.c.l.b16 %v518
          %v633 = vunpack.c.h.b16 %v518
          %v634 = vunpack.c.l.b16 %v519
          %v635 = vunpack.c.h.b16 %v519
          %v636 = vunpack.c.l.b16 %v520
          %v637 = vunpack.c.h.b16 %v520
          %v638 = vunpack.c.l.b16 %v521
          %v639 = vunpack.c.h.b16 %v521
          %v640 = vunpack.c.l.b16 %v522
          %v641 = vunpack.c.h.b16 %v522
          %v642 = vunpack.c.l.b16 %v523
          %v643 = vunpack.c.h.b16 %v523
          %v644 = vunpack.c.l.b16 %v524
          %v645 = vunpack.c.h.b16 %v524
          %v646 = vunpack.c.l.b16 %v525
          %v647 = vunpack.c.h.b16 %v525
          %v648 = vunpack.c.l.b16 %v526
          %v649 = vunpack.c.h.b16 %v526
          %v650 = vunpack.c.l.b16 %v527
          %v651 = vunpack.c.h.b16 %v527
          %v652 = vunpack.c.l.b16 %v528
          %v653 = vunpack.c.h.b16 %v528
          %v654 = vunpack.c.l.b16 %v529
          %v655 = vunpack.c.h.b16 %v529
          %v656 = vunpack.c.l.b16 %v530
          %v657 = vunpack.c.h.b16 %v530
          %v658 = vunpack.c.l.b16 %v531
          %v659 = vunpack.c.h.b16 %v531
          %v660 = vunpack.c.l.b16 %v532
          %v661 = vunpack.c.h.b16 %v532
          %v662 = vunpack.c.l.b16 %v533
          %v663 = vunpack.c.h.b16 %v533
          %v664 = vpack.c.b16 %v604, %v600
          %v665 = vpack.c.b16 %v605, %v601
          %v666 = vpack.c.b16 %v606, %v602
          %v667 = vpack.c.b16 %v607, %v603
          %v668 = vpack.c.b16 %v612, %v608
          %v669 = vpack.c.b16 %v613, %v609
          %v670 = vpack.c.b16 %v614, %v610
          %v671 = vpack.c.b16 %v615, %v611
          %v672 = vpack.c.b16 %v620, %v616
          %v673 = vpack.c.b16 %v621, %v617
          %v674 = vpack.c.b16 %v622, %v618
          %v675 = vpack.c.b16 %v623, %v619
          %v676 = vpack.c.b16 %v628, %v624
          %v677 = vpack.c.b16 %v629, %v625
          %v678 = vpack.c.b16 %v630, %v626
          %v679 = vpack.c.b16 %v631, %v627
          %v680 = vpack.c.b16 %v636, %v632
          %v681 = vpack.c.b16 %v637, %v633
          %v682 = vpack.c.b16 %v638, %v634
          %v683 = vpack.c.b16 %v639, %v635
          %v684 = vpack.c.b16 %v644, %v640
          %v685 = vpack.c.b16 %v645, %v641
          %v686 = vpack.c.b16 %v646, %v642
          %v687 = vpack.c.b16 %v647, %v643
          %v688 = vpack.c.b16 %v652, %v648
          %v689 = vpack.c.b16 %v653, %v649
          %v690 = vpack.c.b16 %v654, %v650
          %v691 = vpack.c.b16 %v655, %v651
          %v692 = vpack.c.b16 %v660, %v656
          %v693 = vpack.c.b16 %v661, %v657
          %v694 = vpack.c.b16 %v662, %v658
          %v695 = vpack.c.b16 %v663, %v659
          %728 = vmatprep.subr.bf16.mxu0 %v693
          %729 = vmatpush1.bf16.msra.mxu0 %v692
          %730 = vmatprep.subr.bf16.mxu0 %v689
          %731 = vmatpush1.bf16.msra.mxu0 %v688
          %732 = vmatprep.subr.bf16.mxu0 %v685
          %733 = vmatpush1.bf16.msra.mxu0 %v684
          %734 = vmatprep.subr.bf16.mxu0 %v681
          %735 = vmatpush1.bf16.msra.mxu0 %v680
          %736 = vmatprep.subr.bf16.mxu0 %v677
          %737 = vmatpush1.bf16.msra.mxu0 %v676
          %738 = vmatprep.subr.bf16.mxu0 %v673
          %739 = vmatpush1.bf16.msra.mxu0 %v672
          %740 = vmatprep.subr.bf16.mxu0 %v669
          %741 = vmatpush1.bf16.msra.mxu0 %v668
          %742 = vmatprep.subr.bf16.mxu0 %v665
          %743 = vmatpush1.bf16.msra.mxu0 %v664
          %744 = vmatprep.subr.bf16.mxu0 0
          %745 = vmatpush2.bf16.msra.mxu0 0
          %746 = vmatprep.subr.bf16.mxu0 0
          %747 = vmatpush2.bf16.msra.mxu0 0
          %748 = vmatprep.subr.bf16.mxu0 0
          %749 = vmatpush2.bf16.msra.mxu0 0
          %750 = vmatprep.subr.bf16.mxu0 0
          %751 = vmatpush2.bf16.msra.mxu0 0
          %752 = vmatprep.subr.bf16.mxu0 0
          %753 = vmatpush2.bf16.msra.mxu0 0
          %754 = vmatprep.subr.bf16.mxu0 0
          %755 = vmatpush2.bf16.msra.mxu0 0
          %756 = vmatprep.subr.bf16.mxu0 0
          %757 = vmatpush2.bf16.msra.mxu0 0
          %758 = vmatprep.subr.bf16.mxu0 0
          %759 = vmatpush2.bf16.msra.mxu0 0
          %760 = vmatprep.mubr.bf16.mxu0 0
          %761 = vmatmul.mubr.bf16.gmra.mxu0 %v564
          %v762 = vpop.f32.mrf.mxu0
          %v763 = vadd.f32 %v539, %v762
          %v764 = vpop.f32.mrf.mxu0
          %v765 = vadd.f32 %v543, %v764
          %v766 = vpop.f32.mrf.mxu0
          %v767 = vadd.f32 %v539, %v766
          %v768 = vpop.f32.mrf.mxu0
          %v769 = vadd.f32 %v543, %v768
          %770 = vmatprep.mubr.bf16.mxu0 0
          %771 = vmatmul.mubr.bf16.gmra.mxu0 %v565
          %v772 = vpop.f32.mrf.mxu0
          %v773 = vadd.f32 %v539, %v772
          %v774 = vpop.f32.mrf.mxu0
          %v775 = vadd.f32 %v543, %v774
          %v776 = vpop.f32.mrf.mxu0
          %v777 = vadd.f32 %v539, %v776
          %v778 = vpop.f32.mrf.mxu0
          %v779 = vadd.f32 %v543, %v778
          %780 = vdwg.mxu0
          %781 = vmatprep.subr.bf16.mxu0 %v695
          %782 = vmatpush1.bf16.msra.mxu0 %v694
          %783 = vmatprep.subr.bf16.mxu0 %v691
          %784 = vmatpush1.bf16.msra.mxu0 %v690
          %785 = vmatprep.subr.bf16.mxu0 %v687
          %786 = vmatpush1.bf16.msra.mxu0 %v686
          %787 = vmatprep.subr.bf16.mxu0 %v683
          %788 = vmatpush1.bf16.msra.mxu0 %v682
          %789 = vmatprep.subr.bf16.mxu0 %v679
          %790 = vmatpush1.bf16.msra.mxu0 %v678
          %791 = vmatprep.subr.bf16.mxu0 %v675
          %792 = vmatpush1.bf16.msra.mxu0 %v674
          %793 = vmatprep.subr.bf16.mxu0 %v671
          %794 = vmatpush1.bf16.msra.mxu0 %v670
          %795 = vmatprep.subr.bf16.mxu0 %v667
          %796 = vmatpush1.bf16.msra.mxu0 %v666
          %797 = vmatprep.subr.bf16.mxu0 0
          %798 = vmatpush2.bf16.msra.mxu0 0
          %799 = vmatprep.subr.bf16.mxu0 0
          %800 = vmatpush2.bf16.msra.mxu0 0
          %801 = vmatprep.subr.bf16.mxu0 0
          %802 = vmatpush2.bf16.msra.mxu0 0
          %803 = vmatprep.subr.bf16.mxu0 0
          %804 = vmatpush2.bf16.msra.mxu0 0
          %805 = vmatprep.subr.bf16.mxu0 0
          %806 = vmatpush2.bf16.msra.mxu0 0
          %807 = vmatprep.subr.bf16.mxu0 0
          %808 = vmatpush2.bf16.msra.mxu0 0
          %809 = vmatprep.subr.bf16.mxu0 0
          %810 = vmatpush2.bf16.msra.mxu0 0
          %811 = vmatprep.subr.bf16.mxu0 0
          %812 = vmatpush2.bf16.msra.mxu0 0
          %813 = vmatprep.mubr.bf16.mxu0 0
          %814 = vmatmul.mubr.bf16.gmra.mxu0 %v564
          %v815 = vpop.f32.mrf.mxu0
          %v816 = vadd.f32 %v547, %v815
          %v817 = vpop.f32.mrf.mxu0
          %v818 = vadd.f32 %v551, %v817
          %v819 = vpop.f32.mrf.mxu0
          %v820 = vadd.f32 %v547, %v819
          %v821 = vpop.f32.mrf.mxu0
          %v822 = vadd.f32 %v551, %v821
          %823 = vmatprep.mubr.bf16.mxu0 0
          %824 = vmatmul.mubr.bf16.gmra.mxu0 %v565
          %v825 = vpop.f32.mrf.mxu0
          %v826 = vadd.f32 %v547, %v825
          %v827 = vpop.f32.mrf.mxu0
          %v828 = vadd.f32 %v551, %v827
          %v829 = vpop.f32.mrf.mxu0
          %v830 = vadd.f32 %v547, %v829
          %v831 = vpop.f32.mrf.mxu0
          %v832 = vadd.f32 %v551, %v831
          %833 = vdwg.mxu0
          %v834 = vmax.f32 %v763, 0.0
          %v835 = vmax.f32 %v765, 0.0
          %v836 = vmax.f32 %v816, 0.0
          %v837 = vmax.f32 %v818, 0.0
          %v838 = vmax.f32 %v767, 0.0
          %v839 = vmax.f32 %v769, 0.0
          %v840 = vmax.f32 %v820, 0.0
          %v841 = vmax.f32 %v822, 0.0
          %v842 = vmax.f32 %v773, 0.0
          %v843 = vmax.f32 %v775, 0.0
          %v844 = vmax.f32 %v826, 0.0
          %v845 = vmax.f32 %v828, 0.0
          %v846 = vmax.f32 %v777, 0.0
          %v847 = vmax.f32 %v779, 0.0
          %v848 = vmax.f32 %v830, 0.0
          %v849 = vmax.f32 %v832, 0.0
          %s850 = smul.u32 %s38, 512
          %s851 = sshra.s32 %s850, 7
          %s852 = sand.u32 %s850, 127
          %s853 = smul.addr %s851, 8
          %s854 = scalar_lea.vmem [#allocation3], %s853
          %855 = vst [vmem:[%s854] sm:$0xff] %v834
          %856 = vst [vmem:[%s854 + $0x8] sm:$0xff] %v835
          %857 = vst [vmem:[%s854 + $0x10] sm:$0xff] %v836
          %858 = vst [vmem:[%s854 + $0x18] sm:$0xff] %v837
          %859 = vst [vmem:[%s854 + $0x40] sm:$0xff] %v838
          %860 = vst [vmem:[%s854 + $0x48] sm:$0xff] %v839
          %861 = vst [vmem:[%s854 + $0x50] sm:$0xff] %v840
          %862 = vst [vmem:[%s854 + $0x58] sm:$0xff] %v841
          %863 = vst [vmem:[%s854 + $0x80] sm:$0xff] %v842
          %864 = vst [vmem:[%s854 + $0x88] sm:$0xff] %v843
          %865 = vst [vmem:[%s854 + $0x90] sm:$0xff] %v844
          %866 = vst [vmem:[%s854 + $0x98] sm:$0xff] %v845
          %867 = vst [vmem:[%s854 + $0xc0] sm:$0xff] %v846
          %868 = vst [vmem:[%s854 + $0xc8] sm:$0xff] %v847
          %869 = vst [vmem:[%s854 + $0xd0] sm:$0xff] %v848
          %870 = vst [vmem:[%s854 + $0xd8] sm:$0xff] %v849
          %v871 = vlaneseq
          %v872 = vand.u32 %v871, 127
          %v873 = vmax.f32 %v834, %v835
          %v874 = vmax.f32 %v873, %v836
          %v875 = vmax.f32 %v874, %v837
          %876 = vmax.xlane.f32.xlu0 %v875
          %v877 = vpop.xlane.xlu0 %876
          %v878 = vmax.f32 %v838, %v839
          %v879 = vmax.f32 %v878, %v840
          %v880 = vmax.f32 %v879, %v841
          %881 = vmax.xlane.f32.xlu0 %v880
          %v882 = vpop.xlane.xlu0 %881
          %v883 = vmax.f32 %v842, %v843
          %v884 = vmax.f32 %v883, %v844
          %v885 = vmax.f32 %v884, %v845
          %886 = vmax.xlane.f32.xlu0 %v885
          %v887 = vpop.xlane.xlu0 %886
          %v888 = vmax.f32 %v846, %v847
          %v889 = vmax.f32 %v888, %v848
          %v890 = vmax.f32 %v889, %v849
          %891 = vmax.xlane.f32.xlu0 %v890
          %v892 = vpop.xlane.xlu0 %891
          %vm893 = vcmp.eq.s32.totalorder %v872, 0
          %v894 = vsel %vm893, %v877, -inf
          %v895 = vsel %vm893, %v882, -inf
          %v896 = vsel %vm893, %v887, -inf
          %v897 = vsel %vm893, %v892, -inf
          %vm898 = vcmp.lt.f32.partialorder %v834, %v877
          %vm899 = vcmp.lt.f32.partialorder %v835, %v877
          %vm900 = vcmp.lt.f32.partialorder %v836, %v877
          %vm901 = vcmp.lt.f32.partialorder %v837, %v877
          %vm902 = vcmp.lt.f32.partialorder %v838, %v882
          %vm903 = vcmp.lt.f32.partialorder %v839, %v882
          %vm904 = vcmp.lt.f32.partialorder %v840, %v882
          %vm905 = vcmp.lt.f32.partialorder %v841, %v882
          %vm906 = vcmp.lt.f32.partialorder %v842, %v887
          %vm907 = vcmp.lt.f32.partialorder %v843, %v887
          %vm908 = vcmp.lt.f32.partialorder %v844, %v887
          %vm909 = vcmp.lt.f32.partialorder %v845, %v887
          %vm910 = vcmp.lt.f32.partialorder %v846, %v892
          %vm911 = vcmp.lt.f32.partialorder %v847, %v892
          %vm912 = vcmp.lt.f32.partialorder %v848, %v892
          %vm913 = vcmp.lt.f32.partialorder %v849, %v892
          %v914 = vsel %vm898, %v834, -inf
          %v915 = vsel %vm899, %v835, -inf
          %v916 = vsel %vm900, %v836, -inf
          %v917 = vsel %vm901, %v837, -inf
          %v918 = vsel %vm902, %v838, -inf
          %v919 = vsel %vm903, %v839, -inf
          %v920 = vsel %vm904, %v840, -inf
          %v921 = vsel %vm905, %v841, -inf
          %v922 = vsel %vm906, %v842, -inf
          %v923 = vsel %vm907, %v843, -inf
          %v924 = vsel %vm908, %v844, -inf
          %v925 = vsel %vm909, %v845, -inf
          %v926 = vsel %vm910, %v846, -inf
          %v927 = vsel %vm911, %v847, -inf
          %v928 = vsel %vm912, %v848, -inf
          %v929 = vsel %vm913, %v849, -inf
          %v930 = vmax.f32 %v914, %v915
          %v931 = vmax.f32 %v930, %v916
          %v932 = vmax.f32 %v931, %v917
          %933 = vmax.xlane.f32.xlu0 %v932
          %v934 = vpop.xlane.xlu0 %933
          %v935 = vmax.f32 %v918, %v919
          %v936 = vmax.f32 %v935, %v920
          %v937 = vmax.f32 %v936, %v921
          %938 = vmax.xlane.f32.xlu0 %v937
          %v939 = vpop.xlane.xlu0 %938
          %v940 = vmax.f32 %v922, %v923
          %v941 = vmax.f32 %v940, %v924
          %v942 = vmax.f32 %v941, %v925
          %943 = vmax.xlane.f32.xlu0 %v942
          %v944 = vpop.xlane.xlu0 %943
          %v945 = vmax.f32 %v926, %v927
          %v946 = vmax.f32 %v945, %v928
          %v947 = vmax.f32 %v946, %v929
          %948 = vmax.xlane.f32.xlu0 %v947
          %v949 = vpop.xlane.xlu0 %948
          %vm950 = vcmp.eq.s32.totalorder %v872, 1
          %v951 = vsel %vm950, %v934, %v894
          %v952 = vsel %vm950, %v939, %v895
          %v953 = vsel %vm950, %v944, %v896
          %v954 = vsel %vm950, %v949, %v897
          %vm955 = vcmp.lt.f32.partialorder %v914, %v934
          %vm956 = vcmp.lt.f32.partialorder %v915, %v934
          %vm957 = vcmp.lt.f32.partialorder %v916, %v934
          %vm958 = vcmp.lt.f32.partialorder %v917, %v934
          %vm959 = vcmp.lt.f32.partialorder %v918, %v939
          %vm960 = vcmp.lt.f32.partialorder %v919, %v939
          %vm961 = vcmp.lt.f32.partialorder %v920, %v939
          %vm962 = vcmp.lt.f32.partialorder %v921, %v939
          %vm963 = vcmp.lt.f32.partialorder %v922, %v944
          %vm964 = vcmp.lt.f32.partialorder %v923, %v944
          %vm965 = vcmp.lt.f32.partialorder %v924, %v944
          %vm966 = vcmp.lt.f32.partialorder %v925, %v944
          %vm967 = vcmp.lt.f32.partialorder %v926, %v949
          %vm968 = vcmp.lt.f32.partialorder %v927, %v949
          %vm969 = vcmp.lt.f32.partialorder %v928, %v949
          %vm970 = vcmp.lt.f32.partialorder %v929, %v949
          %v971 = vsel %vm955, %v914, -inf
          %v972 = vsel %vm956, %v915, -inf
          %v973 = vsel %vm957, %v916, -inf
          %v974 = vsel %vm958, %v917, -inf
          %v975 = vsel %vm959, %v918, -inf
          %v976 = vsel %vm960, %v919, -inf
          %v977 = vsel %vm961, %v920, -inf
          %v978 = vsel %vm962, %v921, -inf
          %v979 = vsel %vm963, %v922, -inf
          %v980 = vsel %vm964, %v923, -inf
          %v981 = vsel %vm965, %v924, -inf
          %v982 = vsel %vm966, %v925, -inf
          %v983 = vsel %vm967, %v926, -inf
          %v984 = vsel %vm968, %v927, -inf
          %v985 = vsel %vm969, %v928, -inf
          %v986 = vsel %vm970, %v929, -inf
          %v987 = vmax.f32 %v971, %v972
          %v988 = vmax.f32 %v987, %v973
          %v989 = vmax.f32 %v988, %v974
          %990 = vmax.xlane.f32.xlu0 %v989
          %v991 = vpop.xlane.xlu0 %990
          %v992 = vmax.f32 %v975, %v976
          %v993 = vmax.f32 %v992, %v977
          %v994 = vmax.f32 %v993, %v978
          %995 = vmax.xlane.f32.xlu0 %v994
          %v996 = vpop.xlane.xlu0 %995
          %v997 = vmax.f32 %v979, %v980
          %v998 = vmax.f32 %v997, %v981
          %v999 = vmax.f32 %v998, %v982
          %1000 = vmax.xlane.f32.xlu0 %v999
          %v1001 = vpop.xlane.xlu0 %1000
          %v1002 = vmax.f32 %v983, %v984
          %v1003 = vmax.f32 %v1002, %v985
          %v1004 = vmax.f32 %v1003, %v986
          %1005 = vmax.xlane.f32.xlu0 %v1004
          %v1006 = vpop.xlane.xlu0 %1005
          %vm1007 = vcmp.eq.s32.totalorder %v872, 2
          %v1008 = vsel %vm1007, %v991, %v951
          %v1009 = vsel %vm1007, %v996, %v952
          %v1010 = vsel %vm1007, %v1001, %v953
          %v1011 = vsel %vm1007, %v1006, %v954
          %vm1012 = vcmp.lt.f32.partialorder %v971, %v991
          %vm1013 = vcmp.lt.f32.partialorder %v972, %v991
          %vm1014 = vcmp.lt.f32.partialorder %v973, %v991
          %vm1015 = vcmp.lt.f32.partialorder %v974, %v991
          %vm1016 = vcmp.lt.f32.partialorder %v975, %v996
          %vm1017 = vcmp.lt.f32.partialorder %v976, %v996
          %vm1018 = vcmp.lt.f32.partialorder %v977, %v996
          %vm1019 = vcmp.lt.f32.partialorder %v978, %v996
          %vm1020 = vcmp.lt.f32.partialorder %v979, %v1001
          %vm1021 = vcmp.lt.f32.partialorder %v980, %v1001
          %vm1022 = vcmp.lt.f32.partialorder %v981, %v1001
          %vm1023 = vcmp.lt.f32.partialorder %v982, %v1001
          %vm1024 = vcmp.lt.f32.partialorder %v983, %v1006
          %vm1025 = vcmp.lt.f32.partialorder %v984, %v1006
          %vm1026 = vcmp.lt.f32.partialorder %v985, %v1006
          %vm1027 = vcmp.lt.f32.partialorder %v986, %v1006
          %v1028 = vsel %vm1012, %v971, -inf
          %v1029 = vsel %vm1013, %v972, -inf
          %v1030 = vsel %vm1014, %v973, -inf
          %v1031 = vsel %vm1015, %v974, -inf
          %v1032 = vsel %vm1016, %v975, -inf
          %v1033 = vsel %vm1017, %v976, -inf
          %v1034 = vsel %vm1018, %v977, -inf
          %v1035 = vsel %vm1019, %v978, -inf
          %v1036 = vsel %vm1020, %v979, -inf
          %v1037 = vsel %vm1021, %v980, -inf
          %v1038 = vsel %vm1022, %v981, -inf
          %v1039 = vsel %vm1023, %v982, -inf
          %v1040 = vsel %vm1024, %v983, -inf
          %v1041 = vsel %vm1025, %v984, -inf
          %v1042 = vsel %vm1026, %v985, -inf
          %v1043 = vsel %vm1027, %v986, -inf
          %v1044 = vmax.f32 %v1028, %v1029
          %v1045 = vmax.f32 %v1044, %v1030
          %v1046 = vmax.f32 %v1045, %v1031
          %1047 = vmax.xlane.f32.xlu0 %v1046
          %v1048 = vpop.xlane.xlu0 %1047
          %v1049 = vmax.f32 %v1032, %v1033
          %v1050 = vmax.f32 %v1049, %v1034
          %v1051 = vmax.f32 %v1050, %v1035
          %1052 = vmax.xlane.f32.xlu0 %v1051
          %v1053 = vpop.xlane.xlu0 %1052
          %v1054 = vmax.f32 %v1036, %v1037
          %v1055 = vmax.f32 %v1054, %v1038
          %v1056 = vmax.f32 %v1055, %v1039
          %1057 = vmax.xlane.f32.xlu0 %v1056
          %v1058 = vpop.xlane.xlu0 %1057
          %v1059 = vmax.f32 %v1040, %v1041
          %v1060 = vmax.f32 %v1059, %v1042
          %v1061 = vmax.f32 %v1060, %v1043
          %1062 = vmax.xlane.f32.xlu0 %v1061
          %v1063 = vpop.xlane.xlu0 %1062
          %vm1064 = vcmp.eq.s32.totalorder %v872, 3
          %v1065 = vsel %vm1064, %v1048, %v1008
          %v1066 = vsel %vm1064, %v1053, %v1009
          %v1067 = vsel %vm1064, %v1058, %v1010
          %v1068 = vsel %vm1064, %v1063, %v1011
          %vm1069 = vcmp.lt.f32.partialorder %v1028, %v1048
          %vm1070 = vcmp.lt.f32.partialorder %v1029, %v1048
          %vm1071 = vcmp.lt.f32.partialorder %v1030, %v1048
          %vm1072 = vcmp.lt.f32.partialorder %v1031, %v1048
          %vm1073 = vcmp.lt.f32.partialorder %v1032, %v1053
          %vm1074 = vcmp.lt.f32.partialorder %v1033, %v1053
          %vm1075 = vcmp.lt.f32.partialorder %v1034, %v1053
          %vm1076 = vcmp.lt.f32.partialorder %v1035, %v1053
          %vm1077 = vcmp.lt.f32.partialorder %v1036, %v1058
          %vm1078 = vcmp.lt.f32.partialorder %v1037, %v1058
          %vm1079 = vcmp.lt.f32.partialorder %v1038, %v1058
          %vm1080 = vcmp.lt.f32.partialorder %v1039, %v1058
          %vm1081 = vcmp.lt.f32.partialorder %v1040, %v1063
          %vm1082 = vcmp.lt.f32.partialorder %v1041, %v1063
          %vm1083 = vcmp.lt.f32.partialorder %v1042, %v1063
          %vm1084 = vcmp.lt.f32.partialorder %v1043, %v1063
          %v1085 = vsel %vm1069, %v1028, -inf
          %v1086 = vsel %vm1070, %v1029, -inf
          %v1087 = vsel %vm1071, %v1030, -inf
          %v1088 = vsel %vm1072, %v1031, -inf
          %v1089 = vsel %vm1073, %v1032, -inf
          %v1090 = vsel %vm1074, %v1033, -inf
          %v1091 = vsel %vm1075, %v1034, -inf
          %v1092 = vsel %vm1076, %v1035, -inf
          %v1093 = vsel %vm1077, %v1036, -inf
          %v1094 = vsel %vm1078, %v1037, -inf
          %v1095 = vsel %vm1079, %v1038, -inf
          %v1096 = vsel %vm1080, %v1039, -inf
          %v1097 = vsel %vm1081, %v1040, -inf
          %v1098 = vsel %vm1082, %v1041, -inf
          %v1099 = vsel %vm1083, %v1042, -inf
          %v1100 = vsel %vm1084, %v1043, -inf
          %v1101 = vmax.f32 %v1085, %v1086
          %v1102 = vmax.f32 %v1101, %v1087
          %v1103 = vmax.f32 %v1102, %v1088
          %1104 = vmax.xlane.f32.xlu0 %v1103
          %v1105 = vpop.xlane.xlu0 %1104
          %v1106 = vmax.f32 %v1089, %v1090
          %v1107 = vmax.f32 %v1106, %v1091
          %v1108 = vmax.f32 %v1107, %v1092
          %1109 = vmax.xlane.f32.xlu0 %v1108
          %v1110 = vpop.xlane.xlu0 %1109
          %v1111 = vmax.f32 %v1093, %v1094
          %v1112 = vmax.f32 %v1111, %v1095
          %v1113 = vmax.f32 %v1112, %v1096
          %1114 = vmax.xlane.f32.xlu0 %v1113
          %v1115 = vpop.xlane.xlu0 %1114
          %v1116 = vmax.f32 %v1097, %v1098
          %v1117 = vmax.f32 %v1116, %v1099
          %v1118 = vmax.f32 %v1117, %v1100
          %1119 = vmax.xlane.f32.xlu0 %v1118
          %v1120 = vpop.xlane.xlu0 %1119
          %vm1121 = vcmp.eq.s32.totalorder %v872, 4
          %v1122 = vsel %vm1121, %v1105, %v1065
          %v1123 = vsel %vm1121, %v1110, %v1066
          %v1124 = vsel %vm1121, %v1115, %v1067
          %v1125 = vsel %vm1121, %v1120, %v1068
          %vm1126 = vcmp.lt.f32.partialorder %v1085, %v1105
          %vm1127 = vcmp.lt.f32.partialorder %v1086, %v1105
          %vm1128 = vcmp.lt.f32.partialorder %v1087, %v1105
          %vm1129 = vcmp.lt.f32.partialorder %v1088, %v1105
          %vm1130 = vcmp.lt.f32.partialorder %v1089, %v1110
          %vm1131 = vcmp.lt.f32.partialorder %v1090, %v1110
          %vm1132 = vcmp.lt.f32.partialorder %v1091, %v1110
          %vm1133 = vcmp.lt.f32.partialorder %v1092, %v1110
          %vm1134 = vcmp.lt.f32.partialorder %v1093, %v1115
          %vm1135 = vcmp.lt.f32.partialorder %v1094, %v1115
          %vm1136 = vcmp.lt.f32.partialorder %v1095, %v1115
          %vm1137 = vcmp.lt.f32.partialorder %v1096, %v1115
          %vm1138 = vcmp.lt.f32.partialorder %v1097, %v1120
          %vm1139 = vcmp.lt.f32.partialorder %v1098, %v1120
          %vm1140 = vcmp.lt.f32.partialorder %v1099, %v1120
          %vm1141 = vcmp.lt.f32.partialorder %v1100, %v1120
          %v1142 = vsel %vm1126, %v1085, -inf
          %v1143 = vsel %vm1127, %v1086, -inf
          %v1144 = vsel %vm1128, %v1087, -inf
          %v1145 = vsel %vm1129, %v1088, -inf
          %v1146 = vsel %vm1130, %v1089, -inf
          %v1147 = vsel %vm1131, %v1090, -inf
          %v1148 = vsel %vm1132, %v1091, -inf
          %v1149 = vsel %vm1133, %v1092, -inf
          %v1150 = vsel %vm1134, %v1093, -inf
          %v1151 = vsel %vm1135, %v1094, -inf
          %v1152 = vsel %vm1136, %v1095, -inf
          %v1153 = vsel %vm1137, %v1096, -inf
          %v1154 = vsel %vm1138, %v1097, -inf
          %v1155 = vsel %vm1139, %v1098, -inf
          %v1156 = vsel %vm1140, %v1099, -inf
          %v1157 = vsel %vm1141, %v1100, -inf
          %v1158 = vmax.f32 %v1142, %v1143
          %v1159 = vmax.f32 %v1158, %v1144
          %v1160 = vmax.f32 %v1159, %v1145
          %1161 = vmax.xlane.f32.xlu0 %v1160
          %v1162 = vpop.xlane.xlu0 %1161
          %v1163 = vmax.f32 %v1146, %v1147
          %v1164 = vmax.f32 %v1163, %v1148
          %v1165 = vmax.f32 %v1164, %v1149
          %1166 = vmax.xlane.f32.xlu0 %v1165
          %v1167 = vpop.xlane.xlu0 %1166
          %v1168 = vmax.f32 %v1150, %v1151
          %v1169 = vmax.f32 %v1168, %v1152
          %v1170 = vmax.f32 %v1169, %v1153
          %1171 = vmax.xlane.f32.xlu0 %v1170
          %v1172 = vpop.xlane.xlu0 %1171
          %v1173 = vmax.f32 %v1154, %v1155
          %v1174 = vmax.f32 %v1173, %v1156
          %v1175 = vmax.f32 %v1174, %v1157
          %1176 = vmax.xlane.f32.xlu0 %v1175
          %v1177 = vpop.xlane.xlu0 %1176
          %vm1178 = vcmp.eq.s32.totalorder %v872, 5
          %v1179 = vsel %vm1178, %v1162, %v1122
          %v1180 = vsel %vm1178, %v1167, %v1123
          %v1181 = vsel %vm1178, %v1172, %v1124
          %v1182 = vsel %vm1178, %v1177, %v1125
          %vm1183 = vcmp.lt.f32.partialorder %v1142, %v1162
          %vm1184 = vcmp.lt.f32.partialorder %v1143, %v1162
          %vm1185 = vcmp.lt.f32.partialorder %v1144, %v1162
          %vm1186 = vcmp.lt.f32.partialorder %v1145, %v1162
          %vm1187 = vcmp.lt.f32.partialorder %v1146, %v1167
          %vm1188 = vcmp.lt.f32.partialorder %v1147, %v1167
          %vm1189 = vcmp.lt.f32.partialorder %v1148, %v1167
          %vm1190 = vcmp.lt.f32.partialorder %v1149, %v1167
          %vm1191 = vcmp.lt.f32.partialorder %v1150, %v1172
          %vm1192 = vcmp.lt.f32.partialorder %v1151, %v1172
          %vm1193 = vcmp.lt.f32.partialorder %v1152, %v1172
          %vm1194 = vcmp.lt.f32.partialorder %v1153, %v1172
          %vm1195 = vcmp.lt.f32.partialorder %v1154, %v1177
          %vm1196 = vcmp.lt.f32.partialorder %v1155, %v1177
          %vm1197 = vcmp.lt.f32.partialorder %v1156, %v1177
          %vm1198 = vcmp.lt.f32.partialorder %v1157, %v1177
          %v1199 = vsel %vm1183, %v1142, -inf
          %v1200 = vsel %vm1184, %v1143, -inf
          %v1201 = vsel %vm1185, %v1144, -inf
          %v1202 = vsel %vm1186, %v1145, -inf
          %v1203 = vsel %vm1187, %v1146, -inf
          %v1204 = vsel %vm1188, %v1147, -inf
          %v1205 = vsel %vm1189, %v1148, -inf
          %v1206 = vsel %vm1190, %v1149, -inf
          %v1207 = vsel %vm1191, %v1150, -inf
          %v1208 = vsel %vm1192, %v1151, -inf
          %v1209 = vsel %vm1193, %v1152, -inf
          %v1210 = vsel %vm1194, %v1153, -inf
          %v1211 = vsel %vm1195, %v1154, -inf
          %v1212 = vsel %vm1196, %v1155, -inf
          %v1213 = vsel %vm1197, %v1156, -inf
          %v1214 = vsel %vm1198, %v1157, -inf
          %v1215 = vmax.f32 %v1199, %v1200
          %v1216 = vmax.f32 %v1215, %v1201
          %v1217 = vmax.f32 %v1216, %v1202
          %1218 = vmax.xlane.f32.xlu0 %v1217
          %v1219 = vpop.xlane.xlu0 %1218
          %v1220 = vmax.f32 %v1203, %v1204
          %v1221 = vmax.f32 %v1220, %v1205
          %v1222 = vmax.f32 %v1221, %v1206
          %1223 = vmax.xlane.f32.xlu0 %v1222
          %v1224 = vpop.xlane.xlu0 %1223
          %v1225 = vmax.f32 %v1207, %v1208
          %v1226 = vmax.f32 %v1225, %v1209
          %v1227 = vmax.f32 %v1226, %v1210
          %1228 = vmax.xlane.f32.xlu0 %v1227
          %v1229 = vpop.xlane.xlu0 %1228
          %v1230 = vmax.f32 %v1211, %v1212
          %v1231 = vmax.f32 %v1230, %v1213
          %v1232 = vmax.f32 %v1231, %v1214
          %1233 = vmax.xlane.f32.xlu0 %v1232
          %v1234 = vpop.xlane.xlu0 %1233
          %vm1235 = vcmp.eq.s32.totalorder %v872, 6
          %v1236 = vsel %vm1235, %v1219, %v1179
          %v1237 = vsel %vm1235, %v1224, %v1180
          %v1238 = vsel %vm1235, %v1229, %v1181
          %v1239 = vsel %vm1235, %v1234, %v1182
          %vm1240 = vcmp.lt.f32.partialorder %v1199, %v1219
          %vm1241 = vcmp.lt.f32.partialorder %v1200, %v1219
          %vm1242 = vcmp.lt.f32.partialorder %v1201, %v1219
          %vm1243 = vcmp.lt.f32.partialorder %v1202, %v1219
          %vm1244 = vcmp.lt.f32.partialorder %v1203, %v1224
          %vm1245 = vcmp.lt.f32.partialorder %v1204, %v1224
          %vm1246 = vcmp.lt.f32.partialorder %v1205, %v1224
          %vm1247 = vcmp.lt.f32.partialorder %v1206, %v1224
          %vm1248 = vcmp.lt.f32.partialorder %v1207, %v1229
          %vm1249 = vcmp.lt.f32.partialorder %v1208, %v1229
          %vm1250 = vcmp.lt.f32.partialorder %v1209, %v1229
          %vm1251 = vcmp.lt.f32.partialorder %v1210, %v1229
          %vm1252 = vcmp.lt.f32.partialorder %v1211, %v1234
          %vm1253 = vcmp.lt.f32.partialorder %v1212, %v1234
          %vm1254 = vcmp.lt.f32.partialorder %v1213, %v1234
          %vm1255 = vcmp.lt.f32.partialorder %v1214, %v1234
          %v1256 = vsel %vm1240, %v1199, -inf
          %v1257 = vsel %vm1241, %v1200, -inf
          %v1258 = vsel %vm1242, %v1201, -inf
          %v1259 = vsel %vm1243, %v1202, -inf
          %v1260 = vsel %vm1244, %v1203, -inf
          %v1261 = vsel %vm1245, %v1204, -inf
          %v1262 = vsel %vm1246, %v1205, -inf
          %v1263 = vsel %vm1247, %v1206, -inf
          %v1264 = vsel %vm1248, %v1207, -inf
          %v1265 = vsel %vm1249, %v1208, -inf
          %v1266 = vsel %vm1250, %v1209, -inf
          %v1267 = vsel %vm1251, %v1210, -inf
          %v1268 = vsel %vm1252, %v1211, -inf
          %v1269 = vsel %vm1253, %v1212, -inf
          %v1270 = vsel %vm1254, %v1213, -inf
          %v1271 = vsel %vm1255, %v1214, -inf
          %v1272 = vmax.f32 %v1256, %v1257
          %v1273 = vmax.f32 %v1272, %v1258
          %v1274 = vmax.f32 %v1273, %v1259
          %1275 = vmax.xlane.f32.xlu0 %v1274
          %v1276 = vpop.xlane.xlu0 %1275
          %v1277 = vmax.f32 %v1260, %v1261
          %v1278 = vmax.f32 %v1277, %v1262
          %v1279 = vmax.f32 %v1278, %v1263
          %1280 = vmax.xlane.f32.xlu0 %v1279
          %v1281 = vpop.xlane.xlu0 %1280
          %v1282 = vmax.f32 %v1264, %v1265
          %v1283 = vmax.f32 %v1282, %v1266
          %v1284 = vmax.f32 %v1283, %v1267
          %1285 = vmax.xlane.f32.xlu0 %v1284
          %v1286 = vpop.xlane.xlu0 %1285
          %v1287 = vmax.f32 %v1268, %v1269
          %v1288 = vmax.f32 %v1287, %v1270
          %v1289 = vmax.f32 %v1288, %v1271
          %1290 = vmax.xlane.f32.xlu0 %v1289
          %v1291 = vpop.xlane.xlu0 %1290
          %vm1292 = vcmp.eq.s32.totalorder %v872, 7
          %v1293 = vsel %vm1292, %v1276, %v1236
          %v1294 = vsel %vm1292, %v1281, %v1237
          %v1295 = vsel %vm1292, %v1286, %v1238
          %v1296 = vsel %vm1292, %v1291, %v1239
          %vm1297 = vcmp.lt.f32.partialorder %v1256, %v1276
          %vm1298 = vcmp.lt.f32.partialorder %v1257, %v1276
          %vm1299 = vcmp.lt.f32.partialorder %v1258, %v1276
          %vm1300 = vcmp.lt.f32.partialorder %v1259, %v1276
          %vm1301 = vcmp.lt.f32.partialorder %v1260, %v1281
          %vm1302 = vcmp.lt.f32.partialorder %v1261, %v1281
          %vm1303 = vcmp.lt.f32.partialorder %v1262, %v1281
          %vm1304 = vcmp.lt.f32.partialorder %v1263, %v1281
          %vm1305 = vcmp.lt.f32.partialorder %v1264, %v1286
          %vm1306 = vcmp.lt.f32.partialorder %v1265, %v1286
          %vm1307 = vcmp.lt.f32.partialorder %v1266, %v1286
          %vm1308 = vcmp.lt.f32.partialorder %v1267, %v1286
          %vm1309 = vcmp.lt.f32.partialorder %v1268, %v1291
          %vm1310 = vcmp.lt.f32.partialorder %v1269, %v1291
          %vm1311 = vcmp.lt.f32.partialorder %v1270, %v1291
          %vm1312 = vcmp.lt.f32.partialorder %v1271, %v1291
          %v1313 = vsel %vm1297, %v1256, -inf
          %v1314 = vsel %vm1298, %v1257, -inf
          %v1315 = vsel %vm1299, %v1258, -inf
          %v1316 = vsel %vm1300, %v1259, -inf
          %v1317 = vsel %vm1301, %v1260, -inf
          %v1318 = vsel %vm1302, %v1261, -inf
          %v1319 = vsel %vm1303, %v1262, -inf
          %v1320 = vsel %vm1304, %v1263, -inf
          %v1321 = vsel %vm1305, %v1264, -inf
          %v1322 = vsel %vm1306, %v1265, -inf
          %v1323 = vsel %vm1307, %v1266, -inf
          %v1324 = vsel %vm1308, %v1267, -inf
          %v1325 = vsel %vm1309, %v1268, -inf
          %v1326 = vsel %vm1310, %v1269, -inf
          %v1327 = vsel %vm1311, %v1270, -inf
          %v1328 = vsel %vm1312, %v1271, -inf
          %v1329 = vmax.f32 %v1313, %v1314
          %v1330 = vmax.f32 %v1329, %v1315
          %v1331 = vmax.f32 %v1330, %v1316
          %1332 = vmax.xlane.f32.xlu0 %v1331
          %v1333 = vpop.xlane.xlu0 %1332
          %v1334 = vmax.f32 %v1317, %v1318
          %v1335 = vmax.f32 %v1334, %v1319
          %v1336 = vmax.f32 %v1335, %v1320
          %1337 = vmax.xlane.f32.xlu0 %v1336
          %v1338 = vpop.xlane.xlu0 %1337
          %v1339 = vmax.f32 %v1321, %v1322
          %v1340 = vmax.f32 %v1339, %v1323
          %v1341 = vmax.f32 %v1340, %v1324
          %1342 = vmax.xlane.f32.xlu0 %v1341
          %v1343 = vpop.xlane.xlu0 %1342
          %v1344 = vmax.f32 %v1325, %v1326
          %v1345 = vmax.f32 %v1344, %v1327
          %v1346 = vmax.f32 %v1345, %v1328
          %1347 = vmax.xlane.f32.xlu0 %v1346
          %v1348 = vpop.xlane.xlu0 %1347
          %vm1349 = vcmp.eq.s32.totalorder %v872, 8
          %v1350 = vsel %vm1349, %v1333, %v1293
          %v1351 = vsel %vm1349, %v1338, %v1294
          %v1352 = vsel %vm1349, %v1343, %v1295
          %v1353 = vsel %vm1349, %v1348, %v1296
          %vm1354 = vcmp.lt.f32.partialorder %v1313, %v1333
          %vm1355 = vcmp.lt.f32.partialorder %v1314, %v1333
          %vm1356 = vcmp.lt.f32.partialorder %v1315, %v1333
          %vm1357 = vcmp.lt.f32.partialorder %v1316, %v1333
          %vm1358 = vcmp.lt.f32.partialorder %v1317, %v1338
          %vm1359 = vcmp.lt.f32.partialorder %v1318, %v1338
          %vm1360 = vcmp.lt.f32.partialorder %v1319, %v1338
          %vm1361 = vcmp.lt.f32.partialorder %v1320, %v1338
          %vm1362 = vcmp.lt.f32.partialorder %v1321, %v1343
          %vm1363 = vcmp.lt.f32.partialorder %v1322, %v1343
          %vm1364 = vcmp.lt.f32.partialorder %v1323, %v1343
          %vm1365 = vcmp.lt.f32.partialorder %v1324, %v1343
          %vm1366 = vcmp.lt.f32.partialorder %v1325, %v1348
          %vm1367 = vcmp.lt.f32.partialorder %v1326, %v1348
          %vm1368 = vcmp.lt.f32.partialorder %v1327, %v1348
          %vm1369 = vcmp.lt.f32.partialorder %v1328, %v1348
          %v1370 = vsel %vm1354, %v1313, -inf
          %v1371 = vsel %vm1355, %v1314, -inf
          %v1372 = vsel %vm1356, %v1315, -inf
          %v1373 = vsel %vm1357, %v1316, -inf
          %v1374 = vsel %vm1358, %v1317, -inf
          %v1375 = vsel %vm1359, %v1318, -inf
          %v1376 = vsel %vm1360, %v1319, -inf
          %v1377 = vsel %vm1361, %v1320, -inf
          %v1378 = vsel %vm1362, %v1321, -inf
          %v1379 = vsel %vm1363, %v1322, -inf
          %v1380 = vsel %vm1364, %v1323, -inf
          %v1381 = vsel %vm1365, %v1324, -inf
          %v1382 = vsel %vm1366, %v1325, -inf
          %v1383 = vsel %vm1367, %v1326, -inf
          %v1384 = vsel %vm1368, %v1327, -inf
          %v1385 = vsel %vm1369, %v1328, -inf
          %v1386 = vmax.f32 %v1370, %v1371
          %v1387 = vmax.f32 %v1386, %v1372
          %v1388 = vmax.f32 %v1387, %v1373
          %1389 = vmax.xlane.f32.xlu0 %v1388
          %v1390 = vpop.xlane.xlu0 %1389
          %v1391 = vmax.f32 %v1374, %v1375
          %v1392 = vmax.f32 %v1391, %v1376
          %v1393 = vmax.f32 %v1392, %v1377
          %1394 = vmax.xlane.f32.xlu0 %v1393
          %v1395 = vpop.xlane.xlu0 %1394
          %v1396 = vmax.f32 %v1378, %v1379
          %v1397 = vmax.f32 %v1396, %v1380
          %v1398 = vmax.f32 %v1397, %v1381
          %1399 = vmax.xlane.f32.xlu0 %v1398
          %v1400 = vpop.xlane.xlu0 %1399
          %v1401 = vmax.f32 %v1382, %v1383
          %v1402 = vmax.f32 %v1401, %v1384
          %v1403 = vmax.f32 %v1402, %v1385
          %1404 = vmax.xlane.f32.xlu0 %v1403
          %v1405 = vpop.xlane.xlu0 %1404
          %vm1406 = vcmp.eq.s32.totalorder %v872, 9
          %v1407 = vsel %vm1406, %v1390, %v1350
          %v1408 = vsel %vm1406, %v1395, %v1351
          %v1409 = vsel %vm1406, %v1400, %v1352
          %v1410 = vsel %vm1406, %v1405, %v1353
          %vm1411 = vcmp.lt.f32.partialorder %v1370, %v1390
          %vm1412 = vcmp.lt.f32.partialorder %v1371, %v1390
          %vm1413 = vcmp.lt.f32.partialorder %v1372, %v1390
          %vm1414 = vcmp.lt.f32.partialorder %v1373, %v1390
          %vm1415 = vcmp.lt.f32.partialorder %v1374, %v1395
          %vm1416 = vcmp.lt.f32.partialorder %v1375, %v1395
          %vm1417 = vcmp.lt.f32.partialorder %v1376, %v1395
          %vm1418 = vcmp.lt.f32.partialorder %v1377, %v1395
          %vm1419 = vcmp.lt.f32.partialorder %v1378, %v1400
          %vm1420 = vcmp.lt.f32.partialorder %v1379, %v1400
          %vm1421 = vcmp.lt.f32.partialorder %v1380, %v1400
          %vm1422 = vcmp.lt.f32.partialorder %v1381, %v1400
          %vm1423 = vcmp.lt.f32.partialorder %v1382, %v1405
          %vm1424 = vcmp.lt.f32.partialorder %v1383, %v1405
          %vm1425 = vcmp.lt.f32.partialorder %v1384, %v1405
          %vm1426 = vcmp.lt.f32.partialorder %v1385, %v1405
          %v1427 = vsel %vm1411, %v1370, -inf
          %v1428 = vsel %vm1412, %v1371, -inf
          %v1429 = vsel %vm1413, %v1372, -inf
          %v1430 = vsel %vm1414, %v1373, -inf
          %v1431 = vsel %vm1415, %v1374, -inf
          %v1432 = vsel %vm1416, %v1375, -inf
          %v1433 = vsel %vm1417, %v1376, -inf
          %v1434 = vsel %vm1418, %v1377, -inf
          %v1435 = vsel %vm1419, %v1378, -inf
          %v1436 = vsel %vm1420, %v1379, -inf
          %v1437 = vsel %vm1421, %v1380, -inf
          %v1438 = vsel %vm1422, %v1381, -inf
          %v1439 = vsel %vm1423, %v1382, -inf
          %v1440 = vsel %vm1424, %v1383, -inf
          %v1441 = vsel %vm1425, %v1384, -inf
          %v1442 = vsel %vm1426, %v1385, -inf
          %v1443 = vmax.f32 %v1427, %v1428
          %v1444 = vmax.f32 %v1443, %v1429
          %v1445 = vmax.f32 %v1444, %v1430
          %1446 = vmax.xlane.f32.xlu0 %v1445
          %v1447 = vpop.xlane.xlu0 %1446
          %v1448 = vmax.f32 %v1431, %v1432
          %v1449 = vmax.f32 %v1448, %v1433
          %v1450 = vmax.f32 %v1449, %v1434
          %1451 = vmax.xlane.f32.xlu0 %v1450
          %v1452 = vpop.xlane.xlu0 %1451
          %v1453 = vmax.f32 %v1435, %v1436
          %v1454 = vmax.f32 %v1453, %v1437
          %v1455 = vmax.f32 %v1454, %v1438
          %1456 = vmax.xlane.f32.xlu0 %v1455
          %v1457 = vpop.xlane.xlu0 %1456
          %v1458 = vmax.f32 %v1439, %v1440
          %v1459 = vmax.f32 %v1458, %v1441
          %v1460 = vmax.f32 %v1459, %v1442
          %1461 = vmax.xlane.f32.xlu0 %v1460
          %v1462 = vpop.xlane.xlu0 %1461
          %vm1463 = vcmp.eq.s32.totalorder %v872, 10
          %v1464 = vsel %vm1463, %v1447, %v1407
          %v1465 = vsel %vm1463, %v1452, %v1408
          %v1466 = vsel %vm1463, %v1457, %v1409
          %v1467 = vsel %vm1463, %v1462, %v1410
          %vm1468 = vcmp.lt.f32.partialorder %v1427, %v1447
          %vm1469 = vcmp.lt.f32.partialorder %v1428, %v1447
          %vm1470 = vcmp.lt.f32.partialorder %v1429, %v1447
          %vm1471 = vcmp.lt.f32.partialorder %v1430, %v1447
          %vm1472 = vcmp.lt.f32.partialorder %v1431, %v1452
          %vm1473 = vcmp.lt.f32.partialorder %v1432, %v1452
          %vm1474 = vcmp.lt.f32.partialorder %v1433, %v1452
          %vm1475 = vcmp.lt.f32.partialorder %v1434, %v1452
          %vm1476 = vcmp.lt.f32.partialorder %v1435, %v1457
          %vm1477 = vcmp.lt.f32.partialorder %v1436, %v1457
          %vm1478 = vcmp.lt.f32.partialorder %v1437, %v1457
          %vm1479 = vcmp.lt.f32.partialorder %v1438, %v1457
          %vm1480 = vcmp.lt.f32.partialorder %v1439, %v1462
          %vm1481 = vcmp.lt.f32.partialorder %v1440, %v1462
          %vm1482 = vcmp.lt.f32.partialorder %v1441, %v1462
          %vm1483 = vcmp.lt.f32.partialorder %v1442, %v1462
          %v1484 = vsel %vm1468, %v1427, -inf
          %v1485 = vsel %vm1469, %v1428, -inf
          %v1486 = vsel %vm1470, %v1429, -inf
          %v1487 = vsel %vm1471, %v1430, -inf
          %v1488 = vsel %vm1472, %v1431, -inf
          %v1489 = vsel %vm1473, %v1432, -inf
          %v1490 = vsel %vm1474, %v1433, -inf
          %v1491 = vsel %vm1475, %v1434, -inf
          %v1492 = vsel %vm1476, %v1435, -inf
          %v1493 = vsel %vm1477, %v1436, -inf
          %v1494 = vsel %vm1478, %v1437, -inf
          %v1495 = vsel %vm1479, %v1438, -inf
          %v1496 = vsel %vm1480, %v1439, -inf
          %v1497 = vsel %vm1481, %v1440, -inf
          %v1498 = vsel %vm1482, %v1441, -inf
          %v1499 = vsel %vm1483, %v1442, -inf
          %v1500 = vmax.f32 %v1484, %v1485
          %v1501 = vmax.f32 %v1500, %v1486
          %v1502 = vmax.f32 %v1501, %v1487
          %1503 = vmax.xlane.f32.xlu0 %v1502
          %v1504 = vpop.xlane.xlu0 %1503
          %v1505 = vmax.f32 %v1488, %v1489
          %v1506 = vmax.f32 %v1505, %v1490
          %v1507 = vmax.f32 %v1506, %v1491
          %1508 = vmax.xlane.f32.xlu0 %v1507
          %v1509 = vpop.xlane.xlu0 %1508
          %v1510 = vmax.f32 %v1492, %v1493
          %v1511 = vmax.f32 %v1510, %v1494
          %v1512 = vmax.f32 %v1511, %v1495
          %1513 = vmax.xlane.f32.xlu0 %v1512
          %v1514 = vpop.xlane.xlu0 %1513
          %v1515 = vmax.f32 %v1496, %v1497
          %v1516 = vmax.f32 %v1515, %v1498
          %v1517 = vmax.f32 %v1516, %v1499
          %1518 = vmax.xlane.f32.xlu0 %v1517
          %v1519 = vpop.xlane.xlu0 %1518
          %vm1520 = vcmp.eq.s32.totalorder %v872, 11
          %v1521 = vsel %vm1520, %v1504, %v1464
          %v1522 = vsel %vm1520, %v1509, %v1465
          %v1523 = vsel %vm1520, %v1514, %v1466
          %v1524 = vsel %vm1520, %v1519, %v1467
          %vm1525 = vcmp.lt.f32.partialorder %v1484, %v1504
          %vm1526 = vcmp.lt.f32.partialorder %v1485, %v1504
          %vm1527 = vcmp.lt.f32.partialorder %v1486, %v1504
          %vm1528 = vcmp.lt.f32.partialorder %v1487, %v1504
          %vm1529 = vcmp.lt.f32.partialorder %v1488, %v1509
          %vm1530 = vcmp.lt.f32.partialorder %v1489, %v1509
          %vm1531 = vcmp.lt.f32.partialorder %v1490, %v1509
          %vm1532 = vcmp.lt.f32.partialorder %v1491, %v1509
          %vm1533 = vcmp.lt.f32.partialorder %v1492, %v1514
          %vm1534 = vcmp.lt.f32.partialorder %v1493, %v1514
          %vm1535 = vcmp.lt.f32.partialorder %v1494, %v1514
          %vm1536 = vcmp.lt.f32.partialorder %v1495, %v1514
          %vm1537 = vcmp.lt.f32.partialorder %v1496, %v1519
          %vm1538 = vcmp.lt.f32.partialorder %v1497, %v1519
          %vm1539 = vcmp.lt.f32.partialorder %v1498, %v1519
          %vm1540 = vcmp.lt.f32.partialorder %v1499, %v1519
          %v1541 = vsel %vm1525, %v1484, -inf
          %v1542 = vsel %vm1526, %v1485, -inf
          %v1543 = vsel %vm1527, %v1486, -inf
          %v1544 = vsel %vm1528, %v1487, -inf
          %v1545 = vsel %vm1529, %v1488, -inf
          %v1546 = vsel %vm1530, %v1489, -inf
          %v1547 = vsel %vm1531, %v1490, -inf
          %v1548 = vsel %vm1532, %v1491, -inf
          %v1549 = vsel %vm1533, %v1492, -inf
          %v1550 = vsel %vm1534, %v1493, -inf
          %v1551 = vsel %vm1535, %v1494, -inf
          %v1552 = vsel %vm1536, %v1495, -inf
          %v1553 = vsel %vm1537, %v1496, -inf
          %v1554 = vsel %vm1538, %v1497, -inf
          %v1555 = vsel %vm1539, %v1498, -inf
          %v1556 = vsel %vm1540, %v1499, -inf
          %v1557 = vmax.f32 %v1541, %v1542
          %v1558 = vmax.f32 %v1557, %v1543
          %v1559 = vmax.f32 %v1558, %v1544
          %1560 = vmax.xlane.f32.xlu0 %v1559
          %v1561 = vpop.xlane.xlu0 %1560
          %v1562 = vmax.f32 %v1545, %v1546
          %v1563 = vmax.f32 %v1562, %v1547
          %v1564 = vmax.f32 %v1563, %v1548
          %1565 = vmax.xlane.f32.xlu0 %v1564
          %v1566 = vpop.xlane.xlu0 %1565
          %v1567 = vmax.f32 %v1549, %v1550
          %v1568 = vmax.f32 %v1567, %v1551
          %v1569 = vmax.f32 %v1568, %v1552
          %1570 = vmax.xlane.f32.xlu0 %v1569
          %v1571 = vpop.xlane.xlu0 %1570
          %v1572 = vmax.f32 %v1553, %v1554
          %v1573 = vmax.f32 %v1572, %v1555
          %v1574 = vmax.f32 %v1573, %v1556
          %1575 = vmax.xlane.f32.xlu0 %v1574
          %v1576 = vpop.xlane.xlu0 %1575
          %vm1577 = vcmp.eq.s32.totalorder %v872, 12
          %v1578 = vsel %vm1577, %v1561, %v1521
          %v1579 = vsel %vm1577, %v1566, %v1522
          %v1580 = vsel %vm1577, %v1571, %v1523
          %v1581 = vsel %vm1577, %v1576, %v1524
          %vm1582 = vcmp.lt.f32.partialorder %v1541, %v1561
          %vm1583 = vcmp.lt.f32.partialorder %v1542, %v1561
          %vm1584 = vcmp.lt.f32.partialorder %v1543, %v1561
          %vm1585 = vcmp.lt.f32.partialorder %v1544, %v1561
          %vm1586 = vcmp.lt.f32.partialorder %v1545, %v1566
          %vm1587 = vcmp.lt.f32.partialorder %v1546, %v1566
          %vm1588 = vcmp.lt.f32.partialorder %v1547, %v1566
          %vm1589 = vcmp.lt.f32.partialorder %v1548, %v1566
          %vm1590 = vcmp.lt.f32.partialorder %v1549, %v1571
          %vm1591 = vcmp.lt.f32.partialorder %v1550, %v1571
          %vm1592 = vcmp.lt.f32.partialorder %v1551, %v1571
          %vm1593 = vcmp.lt.f32.partialorder %v1552, %v1571
          %vm1594 = vcmp.lt.f32.partialorder %v1553, %v1576
          %vm1595 = vcmp.lt.f32.partialorder %v1554, %v1576
          %vm1596 = vcmp.lt.f32.partialorder %v1555, %v1576
          %vm1597 = vcmp.lt.f32.partialorder %v1556, %v1576
          %v1598 = vsel %vm1582, %v1541, -inf
          %v1599 = vsel %vm1583, %v1542, -inf
          %v1600 = vsel %vm1584, %v1543, -inf
          %v1601 = vsel %vm1585, %v1544, -inf
          %v1602 = vsel %vm1586, %v1545, -inf
          %v1603 = vsel %vm1587, %v1546, -inf
          %v1604 = vsel %vm1588, %v1547, -inf
          %v1605 = vsel %vm1589, %v1548, -inf
          %v1606 = vsel %vm1590, %v1549, -inf
          %v1607 = vsel %vm1591, %v1550, -inf
          %v1608 = vsel %vm1592, %v1551, -inf
          %v1609 = vsel %vm1593, %v1552, -inf
          %v1610 = vsel %vm1594, %v1553, -inf
          %v1611 = vsel %vm1595, %v1554, -inf
          %v1612 = vsel %vm1596, %v1555, -inf
          %v1613 = vsel %vm1597, %v1556, -inf
          %v1614 = vmax.f32 %v1598, %v1599
          %v1615 = vmax.f32 %v1614, %v1600
          %v1616 = vmax.f32 %v1615, %v1601
          %1617 = vmax.xlane.f32.xlu0 %v1616
          %v1618 = vpop.xlane.xlu0 %1617
          %v1619 = vmax.f32 %v1602, %v1603
          %v1620 = vmax.f32 %v1619, %v1604
          %v1621 = vmax.f32 %v1620, %v1605
          %1622 = vmax.xlane.f32.xlu0 %v1621
          %v1623 = vpop.xlane.xlu0 %1622
          %v1624 = vmax.f32 %v1606, %v1607
          %v1625 = vmax.f32 %v1624, %v1608
          %v1626 = vmax.f32 %v1625, %v1609
          %1627 = vmax.xlane.f32.xlu0 %v1626
          %v1628 = vpop.xlane.xlu0 %1627
          %v1629 = vmax.f32 %v1610, %v1611
          %v1630 = vmax.f32 %v1629, %v1612
          %v1631 = vmax.f32 %v1630, %v1613
          %1632 = vmax.xlane.f32.xlu0 %v1631
          %v1633 = vpop.xlane.xlu0 %1632
          %vm1634 = vcmp.eq.s32.totalorder %v872, 13
          %v1635 = vsel %vm1634, %v1618, %v1578
          %v1636 = vsel %vm1634, %v1623, %v1579
          %v1637 = vsel %vm1634, %v1628, %v1580
          %v1638 = vsel %vm1634, %v1633, %v1581
          %vm1639 = vcmp.lt.f32.partialorder %v1598, %v1618
          %vm1640 = vcmp.lt.f32.partialorder %v1599, %v1618
          %vm1641 = vcmp.lt.f32.partialorder %v1600, %v1618
          %vm1642 = vcmp.lt.f32.partialorder %v1601, %v1618
          %vm1643 = vcmp.lt.f32.partialorder %v1602, %v1623
          %vm1644 = vcmp.lt.f32.partialorder %v1603, %v1623
          %vm1645 = vcmp.lt.f32.partialorder %v1604, %v1623
          %vm1646 = vcmp.lt.f32.partialorder %v1605, %v1623
          %vm1647 = vcmp.lt.f32.partialorder %v1606, %v1628
          %vm1648 = vcmp.lt.f32.partialorder %v1607, %v1628
          %vm1649 = vcmp.lt.f32.partialorder %v1608, %v1628
          %vm1650 = vcmp.lt.f32.partialorder %v1609, %v1628
          %vm1651 = vcmp.lt.f32.partialorder %v1610, %v1633
          %vm1652 = vcmp.lt.f32.partialorder %v1611, %v1633
          %vm1653 = vcmp.lt.f32.partialorder %v1612, %v1633
          %vm1654 = vcmp.lt.f32.partialorder %v1613, %v1633
          %v1655 = vsel %vm1639, %v1598, -inf
          %v1656 = vsel %vm1640, %v1599, -inf
          %v1657 = vsel %vm1641, %v1600, -inf
          %v1658 = vsel %vm1642, %v1601, -inf
          %v1659 = vsel %vm1643, %v1602, -inf
          %v1660 = vsel %vm1644, %v1603, -inf
          %v1661 = vsel %vm1645, %v1604, -inf
          %v1662 = vsel %vm1646, %v1605, -inf
          %v1663 = vsel %vm1647, %v1606, -inf
          %v1664 = vsel %vm1648, %v1607, -inf
          %v1665 = vsel %vm1649, %v1608, -inf
          %v1666 = vsel %vm1650, %v1609, -inf
          %v1667 = vsel %vm1651, %v1610, -inf
          %v1668 = vsel %vm1652, %v1611, -inf
          %v1669 = vsel %vm1653, %v1612, -inf
          %v1670 = vsel %vm1654, %v1613, -inf
          %v1671 = vmax.f32 %v1655, %v1656
          %v1672 = vmax.f32 %v1671, %v1657
          %v1673 = vmax.f32 %v1672, %v1658
          %1674 = vmax.xlane.f32.xlu0 %v1673
          %v1675 = vpop.xlane.xlu0 %1674
          %v1676 = vmax.f32 %v1659, %v1660
          %v1677 = vmax.f32 %v1676, %v1661
          %v1678 = vmax.f32 %v1677, %v1662
          %1679 = vmax.xlane.f32.xlu0 %v1678
          %v1680 = vpop.xlane.xlu0 %1679
          %v1681 = vmax.f32 %v1663, %v1664
          %v1682 = vmax.f32 %v1681, %v1665
          %v1683 = vmax.f32 %v1682, %v1666
          %1684 = vmax.xlane.f32.xlu0 %v1683
          %v1685 = vpop.xlane.xlu0 %1684
          %v1686 = vmax.f32 %v1667, %v1668
          %v1687 = vmax.f32 %v1686, %v1669
          %v1688 = vmax.f32 %v1687, %v1670
          %1689 = vmax.xlane.f32.xlu0 %v1688
          %v1690 = vpop.xlane.xlu0 %1689
          %vm1691 = vcmp.eq.s32.totalorder %v872, 14
          %v1692 = vsel %vm1691, %v1675, %v1635
          %v1693 = vsel %vm1691, %v1680, %v1636
          %v1694 = vsel %vm1691, %v1685, %v1637
          %v1695 = vsel %vm1691, %v1690, %v1638
          %vm1696 = vcmp.lt.f32.partialorder %v1655, %v1675
          %vm1697 = vcmp.lt.f32.partialorder %v1656, %v1675
          %vm1698 = vcmp.lt.f32.partialorder %v1657, %v1675
          %vm1699 = vcmp.lt.f32.partialorder %v1658, %v1675
          %vm1700 = vcmp.lt.f32.partialorder %v1659, %v1680
          %vm1701 = vcmp.lt.f32.partialorder %v1660, %v1680
          %vm1702 = vcmp.lt.f32.partialorder %v1661, %v1680
          %vm1703 = vcmp.lt.f32.partialorder %v1662, %v1680
          %vm1704 = vcmp.lt.f32.partialorder %v1663, %v1685
          %vm1705 = vcmp.lt.f32.partialorder %v1664, %v1685
          %vm1706 = vcmp.lt.f32.partialorder %v1665, %v1685
          %vm1707 = vcmp.lt.f32.partialorder %v1666, %v1685
          %vm1708 = vcmp.lt.f32.partialorder %v1667, %v1690
          %vm1709 = vcmp.lt.f32.partialorder %v1668, %v1690
          %vm1710 = vcmp.lt.f32.partialorder %v1669, %v1690
          %vm1711 = vcmp.lt.f32.partialorder %v1670, %v1690
          %v1712 = vsel %vm1696, %v1655, -inf
          %v1713 = vsel %vm1697, %v1656, -inf
          %v1714 = vsel %vm1698, %v1657, -inf
          %v1715 = vsel %vm1699, %v1658, -inf
          %v1716 = vsel %vm1700, %v1659, -inf
          %v1717 = vsel %vm1701, %v1660, -inf
          %v1718 = vsel %vm1702, %v1661, -inf
          %v1719 = vsel %vm1703, %v1662, -inf
          %v1720 = vsel %vm1704, %v1663, -inf
          %v1721 = vsel %vm1705, %v1664, -inf
          %v1722 = vsel %vm1706, %v1665, -inf
          %v1723 = vsel %vm1707, %v1666, -inf
          %v1724 = vsel %vm1708, %v1667, -inf
          %v1725 = vsel %vm1709, %v1668, -inf
          %v1726 = vsel %vm1710, %v1669, -inf
          %v1727 = vsel %vm1711, %v1670, -inf
          %v1728 = vmax.f32 %v1712, %v1713
          %v1729 = vmax.f32 %v1728, %v1714
          %v1730 = vmax.f32 %v1729, %v1715
          %1731 = vmax.xlane.f32.xlu0 %v1730
          %v1732 = vpop.xlane.xlu0 %1731
          %v1733 = vmax.f32 %v1716, %v1717
          %v1734 = vmax.f32 %v1733, %v1718
          %v1735 = vmax.f32 %v1734, %v1719
          %1736 = vmax.xlane.f32.xlu0 %v1735
          %v1737 = vpop.xlane.xlu0 %1736
          %v1738 = vmax.f32 %v1720, %v1721
          %v1739 = vmax.f32 %v1738, %v1722
          %v1740 = vmax.f32 %v1739, %v1723
          %1741 = vmax.xlane.f32.xlu0 %v1740
          %v1742 = vpop.xlane.xlu0 %1741
          %v1743 = vmax.f32 %v1724, %v1725
          %v1744 = vmax.f32 %v1743, %v1726
          %v1745 = vmax.f32 %v1744, %v1727
          %1746 = vmax.xlane.f32.xlu0 %v1745
          %v1747 = vpop.xlane.xlu0 %1746
          %vm1748 = vcmp.eq.s32.totalorder %v872, 15
          %v1749 = vsel %vm1748, %v1732, %v1692
          %v1750 = vsel %vm1748, %v1737, %v1693
          %v1751 = vsel %vm1748, %v1742, %v1694
          %v1752 = vsel %vm1748, %v1747, %v1695
          %s1753 = smul.u32 %s38, 128
          %s1754 = sshra.s32 %s1753, 7
          %s1755 = sand.u32 %s1753, 127
          %s1756 = smul.addr %s1754, 8
          %s1757 = scalar_lea.vmem [#allocation5], %s1756
          %1758 = vst [vmem:[%s1757] sm:$0xff] %v1749
          %1759 = vst [vmem:[%s1757 + $0x10] sm:$0xff] %v1750
          %1760 = vst [vmem:[%s1757 + $0x20] sm:$0xff] %v1751
          %1761 = vst [vmem:[%s1757 + $0x30] sm:$0xff] %v1752
        $region64: #{tpu_custom_call.1} parent=39 // pred_fallthru
          _
        %p1762 = scmp.eq.s32.totalorder %s38, 2
        // Predicated region
        $region65: #{tpu_custom_call.1} parent=39 // pred_check
          %p1763 = pneg %p1762
        $region66: #{tpu_custom_call.1} parent=39 // pred_check_branch
          %1765 = sbr.rel (%p1763) target = $region68
        $region67: #{tpu_custom_call.1} parent=39 // pred_region
          %v1766 = vld [vmem:[#allocation5] sm:$0xff]
          %v1767 = vld [vmem:[#allocation5 + $0x8] sm:$0xff]
          %v1768 = vld [vmem:[#allocation5 + $0x10] sm:$0xff]
          %v1769 = vld [vmem:[#allocation5 + $0x18] sm:$0xff]
          %v1770 = vld [vmem:[#allocation5 + $0x20] sm:$0xff]
          %v1771 = vld [vmem:[#allocation5 + $0x28] sm:$0xff]
          %v1772 = vld [vmem:[#allocation5 + $0x30] sm:$0xff]
          %v1773 = vld [vmem:[#allocation5 + $0x38] sm:$0xff]
          %v1774 = vmax.f32 %v1766, %v1767
          %1775 = vmax.xlane.f32.xlu0 %v1774
          %v1776 = vpop.xlane.xlu0 %1775
          %v1777 = vmax.f32 %v1768, %v1769
          %1778 = vmax.xlane.f32.xlu0 %v1777
          %v1779 = vpop.xlane.xlu0 %1778
          %v1780 = vmax.f32 %v1770, %v1771
          %1781 = vmax.xlane.f32.xlu0 %v1780
          %v1782 = vpop.xlane.xlu0 %1781
          %v1783 = vmax.f32 %v1772, %v1773
          %1784 = vmax.xlane.f32.xlu0 %v1783
          %v1785 = vpop.xlane.xlu0 %1784
          %vm1786 = vcmp.lt.f32.partialorder %v1766, %v1776
          %vm1787 = vcmp.lt.f32.partialorder %v1767, %v1776
          %vm1788 = vcmp.lt.f32.partialorder %v1768, %v1779
          %vm1789 = vcmp.lt.f32.partialorder %v1769, %v1779
          %vm1790 = vcmp.lt.f32.partialorder %v1770, %v1782
          %vm1791 = vcmp.lt.f32.partialorder %v1771, %v1782
          %vm1792 = vcmp.lt.f32.partialorder %v1772, %v1785
          %vm1793 = vcmp.lt.f32.partialorder %v1773, %v1785
          %v1794 = vsel %vm1786, %v1766, -inf
          %v1795 = vsel %vm1787, %v1767, -inf
          %v1796 = vsel %vm1788, %v1768, -inf
          %v1797 = vsel %vm1789, %v1769, -inf
          %v1798 = vsel %vm1790, %v1770, -inf
          %v1799 = vsel %vm1791, %v1771, -inf
          %v1800 = vsel %vm1792, %v1772, -inf
          %v1801 = vsel %vm1793, %v1773, -inf
          %v1802 = vmax.f32 %v1794, %v1795
          %1803 = vmax.xlane.f32.xlu0 %v1802
          %v1804 = vpop.xlane.xlu0 %1803
          %v1805 = vmax.f32 %v1796, %v1797
          %1806 = vmax.xlane.f32.xlu0 %v1805
          %v1807 = vpop.xlane.xlu0 %1806
          %v1808 = vmax.f32 %v1798, %v1799
          %1809 = vmax.xlane.f32.xlu0 %v1808
          %v1810 = vpop.xlane.xlu0 %1809
          %v1811 = vmax.f32 %v1800, %v1801
          %1812 = vmax.xlane.f32.xlu0 %v1811
          %v1813 = vpop.xlane.xlu0 %1812
          %vm1814 = vcmp.lt.f32.partialorder %v1766, %v1804
          %vm1815 = vcmp.lt.f32.partialorder %v1767, %v1804
          %vm1816 = vcmp.lt.f32.partialorder %v1768, %v1807
          %vm1817 = vcmp.lt.f32.partialorder %v1769, %v1807
          %vm1818 = vcmp.lt.f32.partialorder %v1770, %v1810
          %vm1819 = vcmp.lt.f32.partialorder %v1771, %v1810
          %vm1820 = vcmp.lt.f32.partialorder %v1772, %v1813
          %vm1821 = vcmp.lt.f32.partialorder %v1773, %v1813
          %v1822 = vsel %vm1814, %v1766, -inf
          %v1823 = vsel %vm1815, %v1767, -inf
          %v1824 = vsel %vm1816, %v1768, -inf
          %v1825 = vsel %vm1817, %v1769, -inf
          %v1826 = vsel %vm1818, %v1770, -inf
          %v1827 = vsel %vm1819, %v1771, -inf
          %v1828 = vsel %vm1820, %v1772, -inf
          %v1829 = vsel %vm1821, %v1773, -inf
          %v1830 = vmax.f32 %v1822, %v1823
          %1831 = vmax.xlane.f32.xlu0 %v1830
          %v1832 = vpop.xlane.xlu0 %1831
          %v1833 = vmax.f32 %v1824, %v1825
          %1834 = vmax.xlane.f32.xlu0 %v1833
          %v1835 = vpop.xlane.xlu0 %1834
          %v1836 = vmax.f32 %v1826, %v1827
          %1837 = vmax.xlane.f32.xlu0 %v1836
          %v1838 = vpop.xlane.xlu0 %1837
          %v1839 = vmax.f32 %v1828, %v1829
          %1840 = vmax.xlane.f32.xlu0 %v1839
          %v1841 = vpop.xlane.xlu0 %1840
          %vm1842 = vcmp.lt.f32.partialorder %v1766, %v1832
          %vm1843 = vcmp.lt.f32.partialorder %v1767, %v1832
          %vm1844 = vcmp.lt.f32.partialorder %v1768, %v1835
          %vm1845 = vcmp.lt.f32.partialorder %v1769, %v1835
          %vm1846 = vcmp.lt.f32.partialorder %v1770, %v1838
          %vm1847 = vcmp.lt.f32.partialorder %v1771, %v1838
          %vm1848 = vcmp.lt.f32.partialorder %v1772, %v1841
          %vm1849 = vcmp.lt.f32.partialorder %v1773, %v1841
          %v1850 = vsel %vm1842, %v1766, -inf
          %v1851 = vsel %vm1843, %v1767, -inf
          %v1852 = vsel %vm1844, %v1768, -inf
          %v1853 = vsel %vm1845, %v1769, -inf
          %v1854 = vsel %vm1846, %v1770, -inf
          %v1855 = vsel %vm1847, %v1771, -inf
          %v1856 = vsel %vm1848, %v1772, -inf
          %v1857 = vsel %vm1849, %v1773, -inf
          %v1858 = vmax.f32 %v1850, %v1851
          %1859 = vmax.xlane.f32.xlu0 %v1858
          %v1860 = vpop.xlane.xlu0 %1859
          %v1861 = vmax.f32 %v1852, %v1853
          %1862 = vmax.xlane.f32.xlu0 %v1861
          %v1863 = vpop.xlane.xlu0 %1862
          %v1864 = vmax.f32 %v1854, %v1855
          %1865 = vmax.xlane.f32.xlu0 %v1864
          %v1866 = vpop.xlane.xlu0 %1865
          %v1867 = vmax.f32 %v1856, %v1857
          %1868 = vmax.xlane.f32.xlu0 %v1867
          %v1869 = vpop.xlane.xlu0 %1868
          %vm1870 = vcmp.lt.f32.partialorder %v1766, %v1860
          %vm1871 = vcmp.lt.f32.partialorder %v1767, %v1860
          %vm1872 = vcmp.lt.f32.partialorder %v1768, %v1863
          %vm1873 = vcmp.lt.f32.partialorder %v1769, %v1863
          %vm1874 = vcmp.lt.f32.partialorder %v1770, %v1866
          %vm1875 = vcmp.lt.f32.partialorder %v1771, %v1866
          %vm1876 = vcmp.lt.f32.partialorder %v1772, %v1869
          %vm1877 = vcmp.lt.f32.partialorder %v1773, %v1869
          %v1878 = vsel %vm1870, %v1766, -inf
          %v1879 = vsel %vm1871, %v1767, -inf
          %v1880 = vsel %vm1872, %v1768, -inf
          %v1881 = vsel %vm1873, %v1769, -inf
          %v1882 = vsel %vm1874, %v1770, -inf
          %v1883 = vsel %vm1875, %v1771, -inf
          %v1884 = vsel %vm1876, %v1772, -inf
          %v1885 = vsel %vm1877, %v1773, -inf
          %v1886 = vmax.f32 %v1878, %v1879
          %1887 = vmax.xlane.f32.xlu0 %v1886
          %v1888 = vpop.xlane.xlu0 %1887
          %v1889 = vmax.f32 %v1880, %v1881
          %1890 = vmax.xlane.f32.xlu0 %v1889
          %v1891 = vpop.xlane.xlu0 %1890
          %v1892 = vmax.f32 %v1882, %v1883
          %1893 = vmax.xlane.f32.xlu0 %v1892
          %v1894 = vpop.xlane.xlu0 %1893
          %v1895 = vmax.f32 %v1884, %v1885
          %1896 = vmax.xlane.f32.xlu0 %v1895
          %v1897 = vpop.xlane.xlu0 %1896
          %vm1898 = vcmp.lt.f32.partialorder %v1766, %v1888
          %vm1899 = vcmp.lt.f32.partialorder %v1767, %v1888
          %vm1900 = vcmp.lt.f32.partialorder %v1768, %v1891
          %vm1901 = vcmp.lt.f32.partialorder %v1769, %v1891
          %vm1902 = vcmp.lt.f32.partialorder %v1770, %v1894
          %vm1903 = vcmp.lt.f32.partialorder %v1771, %v1894
          %vm1904 = vcmp.lt.f32.partialorder %v1772, %v1897
          %vm1905 = vcmp.lt.f32.partialorder %v1773, %v1897
          %v1906 = vsel %vm1898, %v1766, -inf
          %v1907 = vsel %vm1899, %v1767, -inf
          %v1908 = vsel %vm1900, %v1768, -inf
          %v1909 = vsel %vm1901, %v1769, -inf
          %v1910 = vsel %vm1902, %v1770, -inf
          %v1911 = vsel %vm1903, %v1771, -inf
          %v1912 = vsel %vm1904, %v1772, -inf
          %v1913 = vsel %vm1905, %v1773, -inf
          %v1914 = vmax.f32 %v1906, %v1907
          %1915 = vmax.xlane.f32.xlu0 %v1914
          %v1916 = vpop.xlane.xlu0 %1915
          %v1917 = vmax.f32 %v1908, %v1909
          %1918 = vmax.xlane.f32.xlu0 %v1917
          %v1919 = vpop.xlane.xlu0 %1918
          %v1920 = vmax.f32 %v1910, %v1911
          %1921 = vmax.xlane.f32.xlu0 %v1920
          %v1922 = vpop.xlane.xlu0 %1921
          %v1923 = vmax.f32 %v1912, %v1913
          %1924 = vmax.xlane.f32.xlu0 %v1923
          %v1925 = vpop.xlane.xlu0 %1924
          %vm1926 = vcmp.lt.f32.partialorder %v1766, %v1916
          %vm1927 = vcmp.lt.f32.partialorder %v1767, %v1916
          %vm1928 = vcmp.lt.f32.partialorder %v1768, %v1919
          %vm1929 = vcmp.lt.f32.partialorder %v1769, %v1919
          %vm1930 = vcmp.lt.f32.partialorder %v1770, %v1922
          %vm1931 = vcmp.lt.f32.partialorder %v1771, %v1922
          %vm1932 = vcmp.lt.f32.partialorder %v1772, %v1925
          %vm1933 = vcmp.lt.f32.partialorder %v1773, %v1925
          %v1934 = vsel %vm1926, %v1766, -inf
          %v1935 = vsel %vm1927, %v1767, -inf
          %v1936 = vsel %vm1928, %v1768, -inf
          %v1937 = vsel %vm1929, %v1769, -inf
          %v1938 = vsel %vm1930, %v1770, -inf
          %v1939 = vsel %vm1931, %v1771, -inf
          %v1940 = vsel %vm1932, %v1772, -inf
          %v1941 = vsel %vm1933, %v1773, -inf
          %v1942 = vmax.f32 %v1934, %v1935
          %1943 = vmax.xlane.f32.xlu0 %v1942
          %v1944 = vpop.xlane.xlu0 %1943
          %v1945 = vmax.f32 %v1936, %v1937
          %1946 = vmax.xlane.f32.xlu0 %v1945
          %v1947 = vpop.xlane.xlu0 %1946
          %v1948 = vmax.f32 %v1938, %v1939
          %1949 = vmax.xlane.f32.xlu0 %v1948
          %v1950 = vpop.xlane.xlu0 %1949
          %v1951 = vmax.f32 %v1940, %v1941
          %1952 = vmax.xlane.f32.xlu0 %v1951
          %v1953 = vpop.xlane.xlu0 %1952
          %vm1954 = vcmp.lt.f32.partialorder %v1766, %v1944
          %vm1955 = vcmp.lt.f32.partialorder %v1767, %v1944
          %vm1956 = vcmp.lt.f32.partialorder %v1768, %v1947
          %vm1957 = vcmp.lt.f32.partialorder %v1769, %v1947
          %vm1958 = vcmp.lt.f32.partialorder %v1770, %v1950
          %vm1959 = vcmp.lt.f32.partialorder %v1771, %v1950
          %vm1960 = vcmp.lt.f32.partialorder %v1772, %v1953
          %vm1961 = vcmp.lt.f32.partialorder %v1773, %v1953
          %v1962 = vsel %vm1954, %v1766, -inf
          %v1963 = vsel %vm1955, %v1767, -inf
          %v1964 = vsel %vm1956, %v1768, -inf
          %v1965 = vsel %vm1957, %v1769, -inf
          %v1966 = vsel %vm1958, %v1770, -inf
          %v1967 = vsel %vm1959, %v1771, -inf
          %v1968 = vsel %vm1960, %v1772, -inf
          %v1969 = vsel %vm1961, %v1773, -inf
          %v1970 = vmax.f32 %v1962, %v1963
          %1971 = vmax.xlane.f32.xlu0 %v1970
          %v1972 = vpop.xlane.xlu0 %1971
          %v1973 = vmax.f32 %v1964, %v1965
          %1974 = vmax.xlane.f32.xlu0 %v1973
          %v1975 = vpop.xlane.xlu0 %1974
          %v1976 = vmax.f32 %v1966, %v1967
          %1977 = vmax.xlane.f32.xlu0 %v1976
          %v1978 = vpop.xlane.xlu0 %1977
          %v1979 = vmax.f32 %v1968, %v1969
          %1980 = vmax.xlane.f32.xlu0 %v1979
          %v1981 = vpop.xlane.xlu0 %1980
          %vm1982 = vcmp.lt.f32.partialorder %v1766, %v1972
          %vm1983 = vcmp.lt.f32.partialorder %v1767, %v1972
          %vm1984 = vcmp.lt.f32.partialorder %v1768, %v1975
          %vm1985 = vcmp.lt.f32.partialorder %v1769, %v1975
          %vm1986 = vcmp.lt.f32.partialorder %v1770, %v1978
          %vm1987 = vcmp.lt.f32.partialorder %v1771, %v1978
          %vm1988 = vcmp.lt.f32.partialorder %v1772, %v1981
          %vm1989 = vcmp.lt.f32.partialorder %v1773, %v1981
          %v1990 = vsel %vm1982, %v1766, -inf
          %v1991 = vsel %vm1983, %v1767, -inf
          %v1992 = vsel %vm1984, %v1768, -inf
          %v1993 = vsel %vm1985, %v1769, -inf
          %v1994 = vsel %vm1986, %v1770, -inf
          %v1995 = vsel %vm1987, %v1771, -inf
          %v1996 = vsel %vm1988, %v1772, -inf
          %v1997 = vsel %vm1989, %v1773, -inf
          %v1998 = vmax.f32 %v1990, %v1991
          %1999 = vmax.xlane.f32.xlu0 %v1998
          %v2000 = vpop.xlane.xlu0 %1999
          %v2001 = vmax.f32 %v1992, %v1993
          %2002 = vmax.xlane.f32.xlu0 %v2001
          %v2003 = vpop.xlane.xlu0 %2002
          %v2004 = vmax.f32 %v1994, %v1995
          %2005 = vmax.xlane.f32.xlu0 %v2004
          %v2006 = vpop.xlane.xlu0 %2005
          %v2007 = vmax.f32 %v1996, %v1997
          %2008 = vmax.xlane.f32.xlu0 %v2007
          %v2009 = vpop.xlane.xlu0 %2008
          %vm2010 = vcmp.lt.f32.partialorder %v1766, %v2000
          %vm2011 = vcmp.lt.f32.partialorder %v1767, %v2000
          %vm2012 = vcmp.lt.f32.partialorder %v1768, %v2003
          %vm2013 = vcmp.lt.f32.partialorder %v1769, %v2003
          %vm2014 = vcmp.lt.f32.partialorder %v1770, %v2006
          %vm2015 = vcmp.lt.f32.partialorder %v1771, %v2006
          %vm2016 = vcmp.lt.f32.partialorder %v1772, %v2009
          %vm2017 = vcmp.lt.f32.partialorder %v1773, %v2009
          %v2018 = vsel %vm2010, %v1766, -inf
          %v2019 = vsel %vm2011, %v1767, -inf
          %v2020 = vsel %vm2012, %v1768, -inf
          %v2021 = vsel %vm2013, %v1769, -inf
          %v2022 = vsel %vm2014, %v1770, -inf
          %v2023 = vsel %vm2015, %v1771, -inf
          %v2024 = vsel %vm2016, %v1772, -inf
          %v2025 = vsel %vm2017, %v1773, -inf
          %v2026 = vmax.f32 %v2018, %v2019
          %2027 = vmax.xlane.f32.xlu0 %v2026
          %v2028 = vpop.xlane.xlu0 %2027
          %v2029 = vmax.f32 %v2020, %v2021
          %2030 = vmax.xlane.f32.xlu0 %v2029
          %v2031 = vpop.xlane.xlu0 %2030
          %v2032 = vmax.f32 %v2022, %v2023
          %2033 = vmax.xlane.f32.xlu0 %v2032
          %v2034 = vpop.xlane.xlu0 %2033
          %v2035 = vmax.f32 %v2024, %v2025
          %2036 = vmax.xlane.f32.xlu0 %v2035
          %v2037 = vpop.xlane.xlu0 %2036
          %vm2038 = vcmp.lt.f32.partialorder %v1766, %v2028
          %vm2039 = vcmp.lt.f32.partialorder %v1767, %v2028
          %vm2040 = vcmp.lt.f32.partialorder %v1768, %v2031
          %vm2041 = vcmp.lt.f32.partialorder %v1769, %v2031
          %vm2042 = vcmp.lt.f32.partialorder %v1770, %v2034
          %vm2043 = vcmp.lt.f32.partialorder %v1771, %v2034
          %vm2044 = vcmp.lt.f32.partialorder %v1772, %v2037
          %vm2045 = vcmp.lt.f32.partialorder %v1773, %v2037
          %v2046 = vsel %vm2038, %v1766, -inf
          %v2047 = vsel %vm2039, %v1767, -inf
          %v2048 = vsel %vm2040, %v1768, -inf
          %v2049 = vsel %vm2041, %v1769, -inf
          %v2050 = vsel %vm2042, %v1770, -inf
          %v2051 = vsel %vm2043, %v1771, -inf
          %v2052 = vsel %vm2044, %v1772, -inf
          %v2053 = vsel %vm2045, %v1773, -inf
          %v2054 = vmax.f32 %v2046, %v2047
          %2055 = vmax.xlane.f32.xlu0 %v2054
          %v2056 = vpop.xlane.xlu0 %2055
          %v2057 = vmax.f32 %v2048, %v2049
          %2058 = vmax.xlane.f32.xlu0 %v2057
          %v2059 = vpop.xlane.xlu0 %2058
          %v2060 = vmax.f32 %v2050, %v2051
          %2061 = vmax.xlane.f32.xlu0 %v2060
          %v2062 = vpop.xlane.xlu0 %2061
          %v2063 = vmax.f32 %v2052, %v2053
          %2064 = vmax.xlane.f32.xlu0 %v2063
          %v2065 = vpop.xlane.xlu0 %2064
          %vm2066 = vcmp.lt.f32.partialorder %v1766, %v2056
          %vm2067 = vcmp.lt.f32.partialorder %v1767, %v2056
          %vm2068 = vcmp.lt.f32.partialorder %v1768, %v2059
          %vm2069 = vcmp.lt.f32.partialorder %v1769, %v2059
          %vm2070 = vcmp.lt.f32.partialorder %v1770, %v2062
          %vm2071 = vcmp.lt.f32.partialorder %v1771, %v2062
          %vm2072 = vcmp.lt.f32.partialorder %v1772, %v2065
          %vm2073 = vcmp.lt.f32.partialorder %v1773, %v2065
          %v2074 = vsel %vm2066, %v1766, -inf
          %v2075 = vsel %vm2067, %v1767, -inf
          %v2076 = vsel %vm2068, %v1768, -inf
          %v2077 = vsel %vm2069, %v1769, -inf
          %v2078 = vsel %vm2070, %v1770, -inf
          %v2079 = vsel %vm2071, %v1771, -inf
          %v2080 = vsel %vm2072, %v1772, -inf
          %v2081 = vsel %vm2073, %v1773, -inf
          %v2082 = vmax.f32 %v2074, %v2075
          %2083 = vmax.xlane.f32.xlu0 %v2082
          %v2084 = vpop.xlane.xlu0 %2083
          %v2085 = vmax.f32 %v2076, %v2077
          %2086 = vmax.xlane.f32.xlu0 %v2085
          %v2087 = vpop.xlane.xlu0 %2086
          %v2088 = vmax.f32 %v2078, %v2079
          %2089 = vmax.xlane.f32.xlu0 %v2088
          %v2090 = vpop.xlane.xlu0 %2089
          %v2091 = vmax.f32 %v2080, %v2081
          %2092 = vmax.xlane.f32.xlu0 %v2091
          %v2093 = vpop.xlane.xlu0 %2092
          %vm2094 = vcmp.lt.f32.partialorder %v1766, %v2084
          %vm2095 = vcmp.lt.f32.partialorder %v1767, %v2084
          %vm2096 = vcmp.lt.f32.partialorder %v1768, %v2087
          %vm2097 = vcmp.lt.f32.partialorder %v1769, %v2087
          %vm2098 = vcmp.lt.f32.partialorder %v1770, %v2090
          %vm2099 = vcmp.lt.f32.partialorder %v1771, %v2090
          %vm2100 = vcmp.lt.f32.partialorder %v1772, %v2093
          %vm2101 = vcmp.lt.f32.partialorder %v1773, %v2093
          %v2102 = vsel %vm2094, %v1766, -inf
          %v2103 = vsel %vm2095, %v1767, -inf
          %v2104 = vsel %vm2096, %v1768, -inf
          %v2105 = vsel %vm2097, %v1769, -inf
          %v2106 = vsel %vm2098, %v1770, -inf
          %v2107 = vsel %vm2099, %v1771, -inf
          %v2108 = vsel %vm2100, %v1772, -inf
          %v2109 = vsel %vm2101, %v1773, -inf
          %v2110 = vmax.f32 %v2102, %v2103
          %2111 = vmax.xlane.f32.xlu0 %v2110
          %v2112 = vpop.xlane.xlu0 %2111
          %v2113 = vmax.f32 %v2104, %v2105
          %2114 = vmax.xlane.f32.xlu0 %v2113
          %v2115 = vpop.xlane.xlu0 %2114
          %v2116 = vmax.f32 %v2106, %v2107
          %2117 = vmax.xlane.f32.xlu0 %v2116
          %v2118 = vpop.xlane.xlu0 %2117
          %v2119 = vmax.f32 %v2108, %v2109
          %2120 = vmax.xlane.f32.xlu0 %v2119
          %v2121 = vpop.xlane.xlu0 %2120
          %vm2122 = vcmp.lt.f32.partialorder %v1766, %v2112
          %vm2123 = vcmp.lt.f32.partialorder %v1767, %v2112
          %vm2124 = vcmp.lt.f32.partialorder %v1768, %v2115
          %vm2125 = vcmp.lt.f32.partialorder %v1769, %v2115
          %vm2126 = vcmp.lt.f32.partialorder %v1770, %v2118
          %vm2127 = vcmp.lt.f32.partialorder %v1771, %v2118
          %vm2128 = vcmp.lt.f32.partialorder %v1772, %v2121
          %vm2129 = vcmp.lt.f32.partialorder %v1773, %v2121
          %v2130 = vsel %vm2122, %v1766, -inf
          %v2131 = vsel %vm2123, %v1767, -inf
          %v2132 = vsel %vm2124, %v1768, -inf
          %v2133 = vsel %vm2125, %v1769, -inf
          %v2134 = vsel %vm2126, %v1770, -inf
          %v2135 = vsel %vm2127, %v1771, -inf
          %v2136 = vsel %vm2128, %v1772, -inf
          %v2137 = vsel %vm2129, %v1773, -inf
          %v2138 = vmax.f32 %v2130, %v2131
          %2139 = vmax.xlane.f32.xlu0 %v2138
          %v2140 = vpop.xlane.xlu0 %2139
          %v2141 = vmax.f32 %v2132, %v2133
          %2142 = vmax.xlane.f32.xlu0 %v2141
          %v2143 = vpop.xlane.xlu0 %2142
          %v2144 = vmax.f32 %v2134, %v2135
          %2145 = vmax.xlane.f32.xlu0 %v2144
          %v2146 = vpop.xlane.xlu0 %2145
          %v2147 = vmax.f32 %v2136, %v2137
          %2148 = vmax.xlane.f32.xlu0 %v2147
          %v2149 = vpop.xlane.xlu0 %2148
          %vm2150 = vcmp.lt.f32.partialorder %v1766, %v2140
          %vm2151 = vcmp.lt.f32.partialorder %v1767, %v2140
          %vm2152 = vcmp.lt.f32.partialorder %v1768, %v2143
          %vm2153 = vcmp.lt.f32.partialorder %v1769, %v2143
          %vm2154 = vcmp.lt.f32.partialorder %v1770, %v2146
          %vm2155 = vcmp.lt.f32.partialorder %v1771, %v2146
          %vm2156 = vcmp.lt.f32.partialorder %v1772, %v2149
          %vm2157 = vcmp.lt.f32.partialorder %v1773, %v2149
          %v2158 = vsel %vm2150, %v1766, -inf
          %v2159 = vsel %vm2151, %v1767, -inf
          %v2160 = vsel %vm2152, %v1768, -inf
          %v2161 = vsel %vm2153, %v1769, -inf
          %v2162 = vsel %vm2154, %v1770, -inf
          %v2163 = vsel %vm2155, %v1771, -inf
          %v2164 = vsel %vm2156, %v1772, -inf
          %v2165 = vsel %vm2157, %v1773, -inf
          %v2166 = vmax.f32 %v2158, %v2159
          %2167 = vmax.xlane.f32.xlu0 %v2166
          %v2168 = vpop.xlane.xlu0 %2167
          %v2169 = vmax.f32 %v2160, %v2161
          %2170 = vmax.xlane.f32.xlu0 %v2169
          %v2171 = vpop.xlane.xlu0 %2170
          %v2172 = vmax.f32 %v2162, %v2163
          %2173 = vmax.xlane.f32.xlu0 %v2172
          %v2174 = vpop.xlane.xlu0 %2173
          %v2175 = vmax.f32 %v2164, %v2165
          %2176 = vmax.xlane.f32.xlu0 %v2175
          %v2177 = vpop.xlane.xlu0 %2176
          %vm2178 = vcmp.lt.f32.partialorder %v1766, %v2168
          %vm2179 = vcmp.lt.f32.partialorder %v1767, %v2168
          %vm2180 = vcmp.lt.f32.partialorder %v1768, %v2171
          %vm2181 = vcmp.lt.f32.partialorder %v1769, %v2171
          %vm2182 = vcmp.lt.f32.partialorder %v1770, %v2174
          %vm2183 = vcmp.lt.f32.partialorder %v1771, %v2174
          %vm2184 = vcmp.lt.f32.partialorder %v1772, %v2177
          %vm2185 = vcmp.lt.f32.partialorder %v1773, %v2177
          %v2186 = vsel %vm2178, %v1766, -inf
          %v2187 = vsel %vm2179, %v1767, -inf
          %v2188 = vsel %vm2180, %v1768, -inf
          %v2189 = vsel %vm2181, %v1769, -inf
          %v2190 = vsel %vm2182, %v1770, -inf
          %v2191 = vsel %vm2183, %v1771, -inf
          %v2192 = vsel %vm2184, %v1772, -inf
          %v2193 = vsel %vm2185, %v1773, -inf
          %v2194 = vmax.f32 %v2186, %v2187
          %2195 = vmax.xlane.f32.xlu0 %v2194
          %v2196 = vpop.xlane.xlu0 %2195
          %v2197 = vmax.f32 %v2188, %v2189
          %2198 = vmax.xlane.f32.xlu0 %v2197
          %v2199 = vpop.xlane.xlu0 %2198
          %v2200 = vmax.f32 %v2190, %v2191
          %2201 = vmax.xlane.f32.xlu0 %v2200
          %v2202 = vpop.xlane.xlu0 %2201
          %v2203 = vmax.f32 %v2192, %v2193
          %2204 = vmax.xlane.f32.xlu0 %v2203
          %v2205 = vpop.xlane.xlu0 %2204
          %vm2206 = vcmask 7168
          %2207 = vst.msk [vmem:[#allocation4] sm:$0xff] %vm2206, %v2196
          %2208 = vst.msk [vmem:[#allocation4 + $0x8] sm:$0xff] %vm2206, %v2199
          %2209 = vst.msk [vmem:[#allocation4 + $0x10] sm:$0xff] %vm2206, %v2202
          %2210 = vst.msk [vmem:[#allocation4 + $0x18] sm:$0xff] %vm2206, %v2205
          %2211 = vst [vmem:[%s429] sm:$0xff] 0.0
          %2212 = vst [vmem:[%s429 + $0x8] sm:$0xff] 0.0
          %2213 = vst [vmem:[%s429 + $0x10] sm:$0xff] 0.0
          %2214 = vst [vmem:[%s429 + $0x18] sm:$0xff] 0.0
        $region68: #{tpu_custom_call.1} parent=39 // pred_fallthru
          _
        %p2215 = scmp.ge.s32.totalorder %s38, 2
        // Predicated region
        $region69: #{tpu_custom_call.1} parent=39 // pred_check
          %p2216 = pneg %p2215
        $region70: #{tpu_custom_call.1} parent=39 // pred_check_branch
          %2218 = sbr.rel (%p2216) target = $region72
        $region71: #{tpu_custom_call.1} parent=39 // pred_region
          %s2219 = ssub.s32 %s38, 2
          %s2220 = smul.u32 %s2219, 512
          %s2221 = sshra.s32 %s2220, 7
          %s2222 = sand.u32 %s2220, 127
          %s2223 = smul.addr %s2221, 8
          %s2224 = scalar_lea.vmem [#allocation3], %s2223
          %v2225 = vld [vmem:[%s2224] sm:$0xff]
          %v2226 = vld [vmem:[%s2224 + $0x8] sm:$0xff]
          %v2227 = vld [vmem:[%s2224 + $0x10] sm:$0xff]
          %v2228 = vld [vmem:[%s2224 + $0x18] sm:$0xff]
          %v2229 = vld [vmem:[%s2224 + $0x40] sm:$0xff]
          %v2230 = vld [vmem:[%s2224 + $0x48] sm:$0xff]
          %v2231 = vld [vmem:[%s2224 + $0x50] sm:$0xff]
          %v2232 = vld [vmem:[%s2224 + $0x58] sm:$0xff]
          %v2233 = vld [vmem:[%s2224 + $0x80] sm:$0xff]
          %v2234 = vld [vmem:[%s2224 + $0x88] sm:$0xff]
          %v2235 = vld [vmem:[%s2224 + $0x90] sm:$0xff]
          %v2236 = vld [vmem:[%s2224 + $0x98] sm:$0xff]
          %v2237 = vld [vmem:[%s2224 + $0xc0] sm:$0xff]
          %v2238 = vld [vmem:[%s2224 + $0xc8] sm:$0xff]
          %v2239 = vld [vmem:[%s2224 + $0xd0] sm:$0xff]
          %v2240 = vld [vmem:[%s2224 + $0xd8] sm:$0xff]
          %v2241 = vld [vmem:[#allocation4] sm:$0xff]
          %v2242 = vld [vmem:[#allocation4 + $0x8] sm:$0xff]
          %v2243 = vld [vmem:[#allocation4 + $0x10] sm:$0xff]
          %v2244 = vld [vmem:[#allocation4 + $0x18] sm:$0xff]
          %2246 = vset.pattern.permute.xlu0 0
          %2247 = vperm.xlu0 %2246, %v2241
          %v2248 = vpop.permute.xlu0 %2247
          %2251 = vset.pattern.permute.xlu0 0
          %2252 = vperm.xlu0 %2251, %v2242
          %v2253 = vpop.permute.xlu0 %2252
          %2256 = vset.pattern.permute.xlu0 0
          %2257 = vperm.xlu0 %2256, %v2243
          %v2258 = vpop.permute.xlu0 %2257
          %2261 = vset.pattern.permute.xlu0 0
          %2262 = vperm.xlu0 %2261, %v2244
          %v2263 = vpop.permute.xlu0 %2262
          %vm2265 = vcmp.ge.f32.partialorder %v2225, %v2248
          %vm2266 = vcmp.ge.f32.partialorder %v2226, %v2248
          %vm2267 = vcmp.ge.f32.partialorder %v2227, %v2248
          %vm2268 = vcmp.ge.f32.partialorder %v2228, %v2248
          %vm2269 = vcmp.ge.f32.partialorder %v2229, %v2253
          %vm2270 = vcmp.ge.f32.partialorder %v2230, %v2253
          %vm2271 = vcmp.ge.f32.partialorder %v2231, %v2253
          %vm2272 = vcmp.ge.f32.partialorder %v2232, %v2253
          %vm2273 = vcmp.ge.f32.partialorder %v2233, %v2258
          %vm2274 = vcmp.ge.f32.partialorder %v2234, %v2258
          %vm2275 = vcmp.ge.f32.partialorder %v2235, %v2258
          %vm2276 = vcmp.ge.f32.partialorder %v2236, %v2258
          %vm2277 = vcmp.ge.f32.partialorder %v2237, %v2263
          %vm2278 = vcmp.ge.f32.partialorder %v2238, %v2263
          %vm2279 = vcmp.ge.f32.partialorder %v2239, %v2263
          %vm2280 = vcmp.ge.f32.partialorder %v2240, %v2263
          %v2281 = vsel %vm2265, %v2225, 0.0
          %v2282 = vsel %vm2266, %v2226, 0.0
          %v2283 = vsel %vm2267, %v2227, 0.0
          %v2284 = vsel %vm2268, %v2228, 0.0
          %v2285 = vsel %vm2269, %v2229, 0.0
          %v2286 = vsel %vm2270, %v2230, 0.0
          %v2287 = vsel %vm2271, %v2231, 0.0
          %v2288 = vsel %vm2272, %v2232, 0.0
          %v2289 = vsel %vm2273, %v2233, 0.0
          %v2290 = vsel %vm2274, %v2234, 0.0
          %v2291 = vsel %vm2275, %v2235, 0.0
          %v2292 = vsel %vm2276, %v2236, 0.0
          %v2293 = vsel %vm2277, %v2237, 0.0
          %v2294 = vsel %vm2278, %v2238, 0.0
          %v2295 = vsel %vm2279, %v2239, 0.0
          %v2296 = vsel %vm2280, %v2240, 0.0
          %2297 = vst [vmem:[%s436] sm:$0xff] %v2281
          %2298 = vst [vmem:[%s436 + $0x8] sm:$0xff] %v2282
          %2299 = vst [vmem:[%s436 + $0x10] sm:$0xff] %v2283
          %2300 = vst [vmem:[%s436 + $0x18] sm:$0xff] %v2284
          %2301 = vst [vmem:[%s436 + $0x20] sm:$0xff] %v2285
          %2302 = vst [vmem:[%s436 + $0x28] sm:$0xff] %v2286
          %2303 = vst [vmem:[%s436 + $0x30] sm:$0xff] %v2287
          %2304 = vst [vmem:[%s436 + $0x38] sm:$0xff] %v2288
          %2305 = vst [vmem:[%s436 + $0x40] sm:$0xff] %v2289
          %2306 = vst [vmem:[%s436 + $0x48] sm:$0xff] %v2290
          %2307 = vst [vmem:[%s436 + $0x50] sm:$0xff] %v2291
          %2308 = vst [vmem:[%s436 + $0x58] sm:$0xff] %v2292
          %2309 = vst [vmem:[%s436 + $0x60] sm:$0xff] %v2293
          %2310 = vst [vmem:[%s436 + $0x68] sm:$0xff] %v2294
          %2311 = vst [vmem:[%s436 + $0x70] sm:$0xff] %v2295
          %2312 = vst [vmem:[%s436 + $0x78] sm:$0xff] %v2296
          %v2313 = vld [vmem:[%s429] sm:$0xff]
          %v2314 = vld [vmem:[%s429 + $0x8] sm:$0xff]
          %v2315 = vld [vmem:[%s429 + $0x10] sm:$0xff]
          %v2316 = vld [vmem:[%s429 + $0x18] sm:$0xff]
          %v2317 = vpack.c.bf16 %v2285, %v2281
          %v2318 = vpack.c.bf16 %v2286, %v2282
          %v2319 = vpack.c.bf16 %v2287, %v2283
          %v2320 = vpack.c.bf16 %v2288, %v2284
          %v2321 = vpack.c.bf16 %v2293, %v2289
          %v2322 = vpack.c.bf16 %v2294, %v2290
          %v2323 = vpack.c.bf16 %v2295, %v2291
          %v2324 = vpack.c.bf16 %v2296, %v2292
          %v2325 = vld [vmem:[%s388] sm:$0xf]
          %v2326 = vld [vmem:[%s388 + $0x4] sm:$0xf]
          %v2327 = vld [vmem:[%s388 + $0x8] sm:$0xf]
          %v2328 = vld [vmem:[%s388 + $0xc] sm:$0xf]
          %v2329 = vld [vmem:[%s388 + $0x10] sm:$0xf]
          %v2330 = vld [vmem:[%s388 + $0x14] sm:$0xf]
          %v2331 = vld [vmem:[%s388 + $0x18] sm:$0xf]
          %v2332 = vld [vmem:[%s388 + $0x1c] sm:$0xf]
          %v2333 = vld [vmem:[%s388 + $0x20] sm:$0xf]
          %v2334 = vld [vmem:[%s388 + $0x24] sm:$0xf]
          %v2335 = vld [vmem:[%s388 + $0x28] sm:$0xf]
          %v2336 = vld [vmem:[%s388 + $0x2c] sm:$0xf]
          %v2337 = vld [vmem:[%s388 + $0x30] sm:$0xf]
          %v2338 = vld [vmem:[%s388 + $0x34] sm:$0xf]
          %v2339 = vld [vmem:[%s388 + $0x38] sm:$0xf]
          %v2340 = vld [vmem:[%s388 + $0x3c] sm:$0xf]
          %v2341 = vld [vmem:[%s388 + $0x40] sm:$0xf]
          %v2342 = vld [vmem:[%s388 + $0x44] sm:$0xf]
          %v2343 = vld [vmem:[%s388 + $0x48] sm:$0xf]
          %v2344 = vld [vmem:[%s388 + $0x4c] sm:$0xf]
          %v2345 = vld [vmem:[%s388 + $0x50] sm:$0xf]
          %v2346 = vld [vmem:[%s388 + $0x54] sm:$0xf]
          %v2347 = vld [vmem:[%s388 + $0x58] sm:$0xf]
          %v2348 = vld [vmem:[%s388 + $0x5c] sm:$0xf]
          %v2349 = vld [vmem:[%s388 + $0x60] sm:$0xf]
          %v2350 = vld [vmem:[%s388 + $0x64] sm:$0xf]
          %v2351 = vld [vmem:[%s388 + $0x68] sm:$0xf]
          %v2352 = vld [vmem:[%s388 + $0x6c] sm:$0xf]
          %v2353 = vld [vmem:[%s388 + $0x70] sm:$0xf]
          %v2354 = vld [vmem:[%s388 + $0x74] sm:$0xf]
          %v2355 = vld [vmem:[%s388 + $0x78] sm:$0xf]
          %v2356 = vld [vmem:[%s388 + $0x7c] sm:$0xf]
          %v2357 = vld [vmem:[%s388 + $0x80] sm:$0xf]
          %v2358 = vld [vmem:[%s388 + $0x84] sm:$0xf]
          %v2359 = vld [vmem:[%s388 + $0x88] sm:$0xf]
          %v2360 = vld [vmem:[%s388 + $0x8c] sm:$0xf]
          %v2361 = vld [vmem:[%s388 + $0x90] sm:$0xf]
          %v2362 = vld [vmem:[%s388 + $0x94] sm:$0xf]
          %v2363 = vld [vmem:[%s388 + $0x98] sm:$0xf]
          %v2364 = vld [vmem:[%s388 + $0x9c] sm:$0xf]
          %v2365 = vld [vmem:[%s388 + $0xa0] sm:$0xf]
          %v2366 = vld [vmem:[%s388 + $0xa4] sm:$0xf]
          %v2367 = vld [vmem:[%s388 + $0xa8] sm:$0xf]
          %v2368 = vld [vmem:[%s388 + $0xac] sm:$0xf]
          %v2369 = vld [vmem:[%s388 + $0xb0] sm:$0xf]
          %v2370 = vld [vmem:[%s388 + $0xb4] sm:$0xf]
          %v2371 = vld [vmem:[%s388 + $0xb8] sm:$0xf]
          %v2372 = vld [vmem:[%s388 + $0xbc] sm:$0xf]
          %v2373 = vld [vmem:[%s388 + $0xc0] sm:$0xf]
          %v2374 = vld [vmem:[%s388 + $0xc4] sm:$0xf]
          %v2375 = vld [vmem:[%s388 + $0xc8] sm:$0xf]
          %v2376 = vld [vmem:[%s388 + $0xcc] sm:$0xf]
          %v2377 = vld [vmem:[%s388 + $0xd0] sm:$0xf]
          %v2378 = vld [vmem:[%s388 + $0xd4] sm:$0xf]
          %v2379 = vld [vmem:[%s388 + $0xd8] sm:$0xf]
          %v2380 = vld [vmem:[%s388 + $0xdc] sm:$0xf]
          %v2381 = vld [vmem:[%s388 + $0xe0] sm:$0xf]
          %v2382 = vld [vmem:[%s388 + $0xe4] sm:$0xf]
          %v2383 = vld [vmem:[%s388 + $0xe8] sm:$0xf]
          %v2384 = vld [vmem:[%s388 + $0xec] sm:$0xf]
          %v2385 = vld [vmem:[%s388 + $0xf0] sm:$0xf]
          %v2386 = vld [vmem:[%s388 + $0xf4] sm:$0xf]
          %v2387 = vld [vmem:[%s388 + $0xf8] sm:$0xf]
          %v2388 = vld [vmem:[%s388 + $0xfc] sm:$0xf]
          %v2453 = vunpack.c.l.b16 %v2325
          %v2454 = vunpack.c.l.b16 %v2326
          %v2455 = vunpack.c.l.b16 %v2327
          %v2456 = vunpack.c.l.b16 %v2328
          %v2457 = vunpack.c.l.b16 %v2329
          %v2458 = vunpack.c.l.b16 %v2330
          %v2459 = vunpack.c.l.b16 %v2331
          %v2460 = vunpack.c.l.b16 %v2332
          %v2461 = vunpack.c.l.b16 %v2333
          %v2462 = vunpack.c.l.b16 %v2334
          %v2463 = vunpack.c.l.b16 %v2335
          %v2464 = vunpack.c.l.b16 %v2336
          %v2465 = vunpack.c.l.b16 %v2337
          %v2466 = vunpack.c.l.b16 %v2338
          %v2467 = vunpack.c.l.b16 %v2339
          %v2468 = vunpack.c.l.b16 %v2340
          %v2469 = vunpack.c.l.b16 %v2341
          %v2470 = vunpack.c.l.b16 %v2342
          %v2471 = vunpack.c.l.b16 %v2343
          %v2472 = vunpack.c.l.b16 %v2344
          %v2473 = vunpack.c.l.b16 %v2345
          %v2474 = vunpack.c.l.b16 %v2346
          %v2475 = vunpack.c.l.b16 %v2347
          %v2476 = vunpack.c.l.b16 %v2348
          %v2477 = vunpack.c.l.b16 %v2349
          %v2478 = vunpack.c.l.b16 %v2350
          %v2479 = vunpack.c.l.b16 %v2351
          %v2480 = vunpack.c.l.b16 %v2352
          %v2481 = vunpack.c.l.b16 %v2353
          %v2482 = vunpack.c.l.b16 %v2354
          %v2483 = vunpack.c.l.b16 %v2355
          %v2484 = vunpack.c.l.b16 %v2356
          %v2485 = vunpack.c.l.b16 %v2357
          %v2486 = vunpack.c.l.b16 %v2358
          %v2487 = vunpack.c.l.b16 %v2359
          %v2488 = vunpack.c.l.b16 %v2360
          %v2489 = vunpack.c.l.b16 %v2361
          %v2490 = vunpack.c.l.b16 %v2362
          %v2491 = vunpack.c.l.b16 %v2363
          %v2492 = vunpack.c.l.b16 %v2364
          %v2493 = vunpack.c.l.b16 %v2365
          %v2494 = vunpack.c.l.b16 %v2366
          %v2495 = vunpack.c.l.b16 %v2367
          %v2496 = vunpack.c.l.b16 %v2368
          %v2497 = vunpack.c.l.b16 %v2369
          %v2498 = vunpack.c.l.b16 %v2370
          %v2499 = vunpack.c.l.b16 %v2371
          %v2500 = vunpack.c.l.b16 %v2372
          %v2501 = vunpack.c.l.b16 %v2373
          %v2502 = vunpack.c.l.b16 %v2374
          %v2503 = vunpack.c.l.b16 %v2375
          %v2504 = vunpack.c.l.b16 %v2376
          %v2505 = vunpack.c.l.b16 %v2377
          %v2506 = vunpack.c.l.b16 %v2378
          %v2507 = vunpack.c.l.b16 %v2379
          %v2508 = vunpack.c.l.b16 %v2380
          %v2509 = vunpack.c.l.b16 %v2381
          %v2510 = vunpack.c.l.b16 %v2382
          %v2511 = vunpack.c.l.b16 %v2383
          %v2512 = vunpack.c.l.b16 %v2384
          %v2513 = vunpack.c.l.b16 %v2385
          %v2514 = vunpack.c.l.b16 %v2386
          %v2515 = vunpack.c.l.b16 %v2387
          %v2516 = vunpack.c.l.b16 %v2388
          %v2517 = vpack.c.b16 %v2454, %v2453
          %v2518 = vpack.c.b16 %v2456, %v2455
          %v2519 = vpack.c.b16 %v2458, %v2457
          %v2520 = vpack.c.b16 %v2460, %v2459
          %v2521 = vpack.c.b16 %v2462, %v2461
          %v2522 = vpack.c.b16 %v2464, %v2463
          %v2523 = vpack.c.b16 %v2466, %v2465
          %v2524 = vpack.c.b16 %v2468, %v2467
          %v2525 = vpack.c.b16 %v2470, %v2469
          %v2526 = vpack.c.b16 %v2472, %v2471
          %v2527 = vpack.c.b16 %v2474, %v2473
          %v2528 = vpack.c.b16 %v2476, %v2475
          %v2529 = vpack.c.b16 %v2478, %v2477
          %v2530 = vpack.c.b16 %v2480, %v2479
          %v2531 = vpack.c.b16 %v2482, %v2481
          %v2532 = vpack.c.b16 %v2484, %v2483
          %v2533 = vpack.c.b16 %v2486, %v2485
          %v2534 = vpack.c.b16 %v2488, %v2487
          %v2535 = vpack.c.b16 %v2490, %v2489
          %v2536 = vpack.c.b16 %v2492, %v2491
          %v2537 = vpack.c.b16 %v2494, %v2493
          %v2538 = vpack.c.b16 %v2496, %v2495
          %v2539 = vpack.c.b16 %v2498, %v2497
          %v2540 = vpack.c.b16 %v2500, %v2499
          %v2541 = vpack.c.b16 %v2502, %v2501
          %v2542 = vpack.c.b16 %v2504, %v2503
          %v2543 = vpack.c.b16 %v2506, %v2505
          %v2544 = vpack.c.b16 %v2508, %v2507
          %v2545 = vpack.c.b16 %v2510, %v2509
          %v2546 = vpack.c.b16 %v2512, %v2511
          %v2547 = vpack.c.b16 %v2514, %v2513
          %v2548 = vpack.c.b16 %v2516, %v2515
          %2581 = vmatprep.subr.bf16.mxu0 0
          %2582 = vmatpush1.bf16.msra.mxu0 %v2524
          %2583 = vmatprep.subr.bf16.mxu0 0
          %2584 = vmatpush1.bf16.msra.mxu0 %v2523
          %2585 = vmatprep.subr.bf16.mxu0 0
          %2586 = vmatpush1.bf16.msra.mxu0 %v2522
          %2587 = vmatprep.subr.bf16.mxu0 0
          %2588 = vmatpush1.bf16.msra.mxu0 %v2521
          %2589 = vmatprep.subr.bf16.mxu0 0
          %2590 = vmatpush1.bf16.msra.mxu0 %v2520
          %2591 = vmatprep.subr.bf16.mxu0 0
          %2592 = vmatpush1.bf16.msra.mxu0 %v2519
          %2593 = vmatprep.subr.bf16.mxu0 0
          %2594 = vmatpush1.bf16.msra.mxu0 %v2518
          %2595 = vmatprep.subr.bf16.mxu0 0
          %2596 = vmatpush1.bf16.msra.mxu0 %v2517
          %2597 = vmatprep.subr.bf16.mxu0 0
          %2598 = vmatpush2.bf16.msra.mxu0 %v2532
          %2599 = vmatprep.subr.bf16.mxu0 0
          %2600 = vmatpush2.bf16.msra.mxu0 %v2531
          %2601 = vmatprep.subr.bf16.mxu0 0
          %2602 = vmatpush2.bf16.msra.mxu0 %v2530
          %2603 = vmatprep.subr.bf16.mxu0 0
          %2604 = vmatpush2.bf16.msra.mxu0 %v2529
          %2605 = vmatprep.subr.bf16.mxu0 0
          %2606 = vmatpush2.bf16.msra.mxu0 %v2528
          %2607 = vmatprep.subr.bf16.mxu0 0
          %2608 = vmatpush2.bf16.msra.mxu0 %v2527
          %2609 = vmatprep.subr.bf16.mxu0 0
          %2610 = vmatpush2.bf16.msra.mxu0 %v2526
          %2611 = vmatprep.subr.bf16.mxu0 0
          %2612 = vmatpush2.bf16.msra.mxu0 %v2525
          %2613 = vmatprep.mubr.bf16.mxu0 %v2318
          %2614 = vmatmul.mubr.bf16.gmra.mxu0 %v2317
          %v2615 = vpop.f32.mrf.mxu0
          %v2616 = vadd.f32 0.0, %v2615
          %v2617 = vpop.f32.mrf.mxu0
          %v2618 = vpop.f32.mrf.mxu0
          %v2619 = vadd.f32 0.0, %v2618
          %v2620 = vpop.f32.mrf.mxu0
          %2621 = vmatprep.mubr.bf16.mxu0 %v2322
          %2622 = vmatmul.mubr.bf16.gmra.mxu0 %v2321
          %v2623 = vpop.f32.mrf.mxu0
          %v2624 = vadd.f32 0.0, %v2623
          %v2625 = vpop.f32.mrf.mxu0
          %v2626 = vpop.f32.mrf.mxu0
          %v2627 = vadd.f32 0.0, %v2626
          %v2628 = vpop.f32.mrf.mxu0
          %2629 = vdwg.mxu0
          %2630 = vmatprep.subr.bf16.mxu0 0
          %2631 = vmatpush1.bf16.msra.mxu0 %v2540
          %2632 = vmatprep.subr.bf16.mxu0 0
          %2633 = vmatpush1.bf16.msra.mxu0 %v2539
          %2634 = vmatprep.subr.bf16.mxu0 0
          %2635 = vmatpush1.bf16.msra.mxu0 %v2538
          %2636 = vmatprep.subr.bf16.mxu0 0
          %2637 = vmatpush1.bf16.msra.mxu0 %v2537
          %2638 = vmatprep.subr.bf16.mxu0 0
          %2639 = vmatpush1.bf16.msra.mxu0 %v2536
          %2640 = vmatprep.subr.bf16.mxu0 0
          %2641 = vmatpush1.bf16.msra.mxu0 %v2535
          %2642 = vmatprep.subr.bf16.mxu0 0
          %2643 = vmatpush1.bf16.msra.mxu0 %v2534
          %2644 = vmatprep.subr.bf16.mxu0 0
          %2645 = vmatpush1.bf16.msra.mxu0 %v2533
          %2646 = vmatprep.subr.bf16.mxu0 0
          %2647 = vmatpush2.bf16.msra.mxu0 %v2548
          %2648 = vmatprep.subr.bf16.mxu0 0
          %2649 = vmatpush2.bf16.msra.mxu0 %v2547
          %2650 = vmatprep.subr.bf16.mxu0 0
          %2651 = vmatpush2.bf16.msra.mxu0 %v2546
          %2652 = vmatprep.subr.bf16.mxu0 0
          %2653 = vmatpush2.bf16.msra.mxu0 %v2545
          %2654 = vmatprep.subr.bf16.mxu0 0
          %2655 = vmatpush2.bf16.msra.mxu0 %v2544
          %2656 = vmatprep.subr.bf16.mxu0 0
          %2657 = vmatpush2.bf16.msra.mxu0 %v2543
          %2658 = vmatprep.subr.bf16.mxu0 0
          %2659 = vmatpush2.bf16.msra.mxu0 %v2542
          %2660 = vmatprep.subr.bf16.mxu0 0
          %2661 = vmatpush2.bf16.msra.mxu0 %v2541
          %2662 = vmatprep.mubr.bf16.mxu0 %v2320
          %2663 = vmatmul.mubr.bf16.gmra.mxu0 %v2319
          %v2664 = vpop.f32.mrf.mxu0
          %v2665 = vadd.f32 %v2616, %v2664
          %v2666 = vpop.f32.mrf.mxu0
          %v2667 = vpop.f32.mrf.mxu0
          %v2668 = vadd.f32 %v2619, %v2667
          %v2669 = vpop.f32.mrf.mxu0
          %2670 = vmatprep.mubr.bf16.mxu0 %v2324
          %2671 = vmatmul.mubr.bf16.gmra.mxu0 %v2323
          %v2672 = vpop.f32.mrf.mxu0
          %v2673 = vadd.f32 %v2624, %v2672
          %v2674 = vpop.f32.mrf.mxu0
          %v2675 = vpop.f32.mrf.mxu0
          %v2676 = vadd.f32 %v2627, %v2675
          %v2677 = vpop.f32.mrf.mxu0
          %2678 = vdwg.mxu0
          %v2679 = vadd.f32 %v2313, %v2665
          %v2680 = vadd.f32 %v2314, %v2668
          %v2681 = vadd.f32 %v2315, %v2673
          %v2682 = vadd.f32 %v2316, %v2676
          %2683 = vst [vmem:[%s429] sm:$0xff] %v2679
          %2684 = vst [vmem:[%s429 + $0x8] sm:$0xff] %v2680
          %2685 = vst [vmem:[%s429 + $0x10] sm:$0xff] %v2681
          %2686 = vst [vmem:[%s429 + $0x18] sm:$0xff] %v2682
        $region72: #{tpu_custom_call.1} parent=39 // pred_fallthru
          _
        %p2687 = scmp.eq.s32.totalorder %s38, 3
        // Predicated region
        $region73: #{tpu_custom_call.1} parent=39 // pred_check
          %p2688 = pneg %p2687
        $region74: #{tpu_custom_call.1} parent=39 // pred_check_branch
          %2690 = sbr.rel (%p2688) target = $region76
        $region75: #{tpu_custom_call.1} parent=39 // pred_region
          %v2691 = vld [vmem:[%s429] sm:$0xff]
          %v2692 = vld [vmem:[%s429 + $0x8] sm:$0xff]
          %v2693 = vld [vmem:[%s429 + $0x10] sm:$0xff]
          %v2694 = vld [vmem:[%s429 + $0x18] sm:$0xff]
          %v2695 = vld [vmem:[%s1] sm:$0x1]
          %v2697 = vlaneseq
          %v2698 = vshrl.u32 %v2697, 7
          %v2699 = vsub.s32 0, %v2698
          %v2700 = vrot.slane %v2695, %v2699
          %v2702 = vadd.f32 %v2691, %v2700
          %v2703 = vadd.f32 %v2692, %v2700
          %v2704 = vadd.f32 %v2693, %v2700
          %v2705 = vadd.f32 %v2694, %v2700
          %2706 = vst [vmem:[%s429] sm:$0xff] %v2702
          %2707 = vst [vmem:[%s429 + $0x8] sm:$0xff] %v2703
          %2708 = vst [vmem:[%s429 + $0x10] sm:$0xff] %v2704
          %2709 = vst [vmem:[%s429 + $0x18] sm:$0xff] %v2705
        $region76: #{tpu_custom_call.1} parent=39 // pred_fallthru
          _
        %s2710 = sand.u32 %s192, 1
        %s2711 = scalar_lea.sflag [#allocation8], %s2710
        %s2712 = sand.u32 %s192, 1
        %s2713 = smul.addr %s2712, 32
        %s2714 = scalar_lea.vmem [#allocation14], %s2713
        %s2715 = sand.u32 %s226, 1
        %s2716 = scalar_lea.sflag [#allocation16], %s2715
        %s2717 = sand.u32 %s226, 1
        %s2718 = smul.addr %s2717, 128
        %s2719 = scalar_lea.vmem [#allocation15], %s2718
        // Predicated region
        $region77: #{tpu_custom_call.1} parent=39 // pred_check
          %p2720 = pneg %p202
        $region78: #{tpu_custom_call.1} parent=39 // pred_check_branch
          %2722 = sbr.rel (%p2720) target = $region80
        $region79: #{tpu_custom_call.1} parent=39 // pred_region
          %s2723 = smul.u32 4, %s37
          %s2725 = ssub.s32 512, 512
          %2726 = vsyncadd %s2711, %s2725
          %s2727 = smul.addr %s2723, 128
          %s2728 = scalar_lea.hbm %s5, %s2727
          %s2729 = sshll.u32 %s2714, 4
          %s2730 = int_to_ptr.vmem [resolvable:$true] %s2729
          %2735 = dma.vmem_to_hbm [thread:$0]  %s2730, 512, %s2728, %s2711, 128, 128, 8
        $region80: #{tpu_custom_call.1} parent=39 // pred_fallthru
          _
        // Predicated region
        $region81: #{tpu_custom_call.1} parent=39 // pred_check
          %p2736 = pneg %p236
        $region82: #{tpu_custom_call.1} parent=39 // pred_check_branch
          %2738 = sbr.rel (%p2736) target = $region84
        $region83: #{tpu_custom_call.1} parent=39 // pred_region
          %s2739 = ssub.s32 %s38, 2
          %p2740 = scmp.gt.s32.totalorder %s2739, 0
          %s2741 = scalar_select %p2740, %s2739, 0
          %s2742 = smul.u32 4, %s37
          %s2743 = smul.u32 4, %s2741
          %s2745 = ssub.s32 2048, 2048
          %2746 = vsyncadd %s2716, %s2745
          %s2747 = smul.addr %s2742, 8
          %s2748 = sadd.s32 %s2743, %s2747
          %s2749 = smul.addr %s2748, 128
          %s2750 = scalar_lea.hbm %s6, %s2749
          %s2751 = sshll.u32 %s2719, 4
          %s2752 = int_to_ptr.vmem [resolvable:$true] %s2751
          %2757 = dma.vmem_to_hbm [thread:$0]  %s2752, 2048, %s2750, %s2716, 512, 1024, 32
        $region84: #{tpu_custom_call.1} parent=39 // pred_fallthru
          _
      $region40: #{tpu_custom_call.1} parent=5 // pred_fallthru
        _
      %p2758 = scmp.le.s32.totalorder 2, %s28
      // Predicated region
      $region85: #{tpu_custom_call.1} parent=5 // pred_check
        %p2759 = pneg %p2758
      $region86: #{tpu_custom_call.1} parent=5 // pred_check_branch
        %2761 = sbr.rel (%p2759) target = $region88
      $region87: #{tpu_custom_call.1} parent=5 // pred_region
        %s2762 = ssub.s32 %s28, 2
        // Predicated region
        $region89: #{tpu_custom_call.1} parent=87 // pred_check
          %p2763 = pneg %p208
        $region90: #{tpu_custom_call.1} parent=87 // pred_check_branch
          %2765 = sbr.rel (%p2763) target = $region92
        $region91: #{tpu_custom_call.1} parent=87 // pred_region
          %s2766 = sand.u32 %s193, 1
          %s2767 = scalar_lea.sflag [#allocation8], %s2766
          %s2768 = sand.u32 %s193, 1
          %s2769 = smul.addr %s2768, 32
          %s2770 = scalar_lea.vmem [#allocation14], %s2769
          %2771 = dma.done %s2767, 512
        $region92: #{tpu_custom_call.1} parent=87 // pred_fallthru
          _
        // Predicated region
        $region93: #{tpu_custom_call.1} parent=87 // pred_check
          %p2772 = pneg %p242
        $region94: #{tpu_custom_call.1} parent=87 // pred_check_branch
          %2774 = sbr.rel (%p2772) target = $region96
        $region95: #{tpu_custom_call.1} parent=87 // pred_region
          %s2775 = sand.u32 %s227, 1
          %s2776 = scalar_lea.sflag [#allocation16], %s2775
          %s2777 = sand.u32 %s227, 1
          %s2778 = smul.addr %s2777, 128
          %s2779 = scalar_lea.vmem [#allocation15], %s2778
          %2780 = dma.done %s2776, 2048
        $region96: #{tpu_custom_call.1} parent=87 // pred_fallthru
          _
      $region88: #{tpu_custom_call.1} parent=5 // pred_fallthru
        _
    $region6: #{tpu_custom_call.1} parent=1 // loop_footer
      %s32 = sadd.s32 1, %s28
    $region7: #{tpu_custom_call.1} parent=1 // loop_footer_branch
      %27 = sbr.rel target = $region3
    $region8: #{tpu_custom_call.1} parent=1 // loop_exit
      _
    %2781 = vsyncpa [#allocation7], 1
    %s2782 = scalar_lea.sflag [#allocation7], 1
    %2783 = vsyncpa %s2782, 1
    %2784 = vsyncpa [#allocation10], 1
    %s2785 = scalar_lea.sflag [#allocation10], 1
    %2786 = vsyncpa %s2785, 1
    %2787 = vsyncpa [#allocation13], 1
    %s2788 = scalar_lea.sflag [#allocation13], 1
    %2789 = vsyncpa %s2788, 1
    %2790 = vsyncpa [#allocation8], 1
    %s2791 = scalar_lea.sflag [#allocation8], 1
    %2792 = vsyncpa %s2791, 1
    %2793 = vsyncpa [#allocation16], 1
    %s2794 = scalar_lea.sflag [#allocation16], 1
    %2795 = vsyncpa %s2794, 1

</llo_original>
